<compile_context>
chip_gen: v6e
topology: v6e:2x2x1
jax: 0.10.0
libtpu: 0.0.40
codegen_flags: <defaults>
</compile_context>

<pallas_src>
import functools

import jax
import jax.numpy as jnp
from jax.experimental import pallas as pl
from jax.experimental.pallas import tpu as pltpu


# ----------------------------- fused kernel -------------------------------- #
def _fused_attention_kernel(x_ref, wq_ref, wk_ref, wv_ref, bq_ref, bk_ref,
                            bv_ref, wp_ref, bp_ref, o_ref, *, scale):
    """One grid step = one batch element: qkv proj + MHA + out proj, in VMEM."""
    H = wq_ref.shape[0]
    L, C = x_ref.shape

    x = x_ref[...].astype(jnp.float32)                       # (L, C)
    # Leading-head broadcast so every contraction below is a plain batched
    # (leading-batch) dot_general — no transposes, no per-head slicing.
    xh = jnp.broadcast_to(x[None, :, :], (H, L, C))          # (H, L, C)

    # qkv projection, produced directly in head-major layout (H, L, D).
    # Weights arrive pre-permuted as (H, D, C); biases as (H, 1, D).
    qh = jnp.einsum('hlc,hdc->hld', xh, wq_ref[...],
                    preferred_element_type=jnp.float32) + bq_ref[...]
    kh = jnp.einsum('hlc,hdc->hld', xh, wk_ref[...],
                    preferred_element_type=jnp.float32) + bk_ref[...]
    vh = jnp.einsum('hlc,hdc->hld', xh, wv_ref[...],
                    preferred_element_type=jnp.float32) + bv_ref[...]

    # Scores + softmax (f32, exact), all heads batched on the MXU.
    s = jnp.einsum('hqd,hkd->hqk', qh, kh,
                   preferred_element_type=jnp.float32) * scale   # (H, L, L)
    m = jnp.max(s, axis=-1, keepdims=True)
    p = jnp.exp(s - m)
    p = p * pl.reciprocal(jnp.sum(p, axis=-1, keepdims=True), approx=False)

    oh = jnp.einsum('hqk,hkd->hqd', p, vh,
                    preferred_element_type=jnp.float32)          # (H, L, D)

    # Output projection with the head recombination folded in:
    #   y[l, n] = sum_h sum_d oh[h, l, d] * Wp[h, d, n] + bp[n]
    y = jnp.einsum('hld,hdn->hln', oh, wp_ref[...],
                   preferred_element_type=jnp.float32)           # (H, L, C)
    y = jnp.sum(y, axis=0) + bp_ref[...]                         # (L, C)

    # Single lane-dense token-major store.
    o_ref[...] = y.astype(o_ref.dtype)


# ------------------------------ wrappers ------------------------------------ #
def prepare_params(w_qkv, b_qkv, w_proj, b_proj, num_heads):
    """Permute PyTorch-layout weights ONCE (outside jit) into head-major.

    PyTorch layouts: w_qkv (3C, C), b_qkv (3C,), w_proj (C, C), b_proj (C,).
    qkv output column j decomposes as j = k*C + h*D + d  (K, H, D order).
    """
    three_c, C = w_qkv.shape
    H = num_heads
    D = C // H
    assert three_c == 3 * C and H * D == C

    w4 = jnp.asarray(w_qkv).reshape(3, H, D, C)          # (k, h, d, c_in)
    wq, wk, wv = w4[0], w4[1], w4[2]                     # each (H, D, C)
    b4 = jnp.asarray(b_qkv).reshape(3, H, 1, D)          # (k, h, 1, d)
    bq, bk, bv = b4[0], b4[1], b4[2]

    # proj: y = o @ w_proj.T + b ;  rows of w_proj.T are indexed by h*D + d
    wp = jnp.asarray(w_proj).T.reshape(H, D, C)          # (H, D, C_out)
    bp = jnp.asarray(b_proj).reshape(1, C)
    return wq, wk, wv, bq, bk, bv, wp, bp


def attention_forward(x, wq, wk, wv, bq, bk, bv, wp, bp):
    """x: (B, L, C); weights already head-major (see prepare_params)."""
    B, L, C = x.shape
    H, D, _ = wq.shape
    scale = D ** (-0.5)

    # TODO(synk): this fused path keeps the full (H, L, L) score tensor in
    # VMEM; for long sequences, add a kv-tiled flash-attention grid instead.
    kernel = functools.partial(_fused_attention_kernel, scale=scale)
    const3 = lambda b: (0, 0, 0)   # weights: same block every grid step

    return pl.pallas_call(
        kernel,
        out_shape=jax.ShapeDtypeStruct((B, L, C), jnp.float32),
        grid_spec=pltpu.PrefetchScalarGridSpec(
            num_scalar_prefetch=0,
            grid=(B,),
            in_specs=[
                pl.BlockSpec((None, L, C), lambda b: (b, 0, 0)),   # x
                pl.BlockSpec((H, D, C), const3),                   # wq
                pl.BlockSpec((H, D, C), const3),                   # wk
                pl.BlockSpec((H, D, C), const3),                   # wv
                pl.BlockSpec((H, 1, D), const3),                   # bq
                pl.BlockSpec((H, 1, D), const3),                   # bk
                pl.BlockSpec((H, 1, D), const3),                   # bv
                pl.BlockSpec((H, D, C), const3),                   # wp
                pl.BlockSpec((1, C), lambda b: (0, 0)),            # bp
            ],
            out_specs=pl.BlockSpec((None, L, C), lambda b: (b, 0, 0)),
        ),
        compiler_params=pltpu.CompilerParams(
            dimension_semantics=("parallel",)),
    )(x, wq, wk, wv, bq, bk, bv, wp, bp)


# ------------------------------ reference ----------------------------------- #
def attention_reference(x, w_qkv, b_qkv, w_proj, b_proj, num_heads):
    B, L, C = x.shape
    H = num_heads
    D = C // H
    scale = D ** (-0.5)
    qkv = x @ w_qkv.T + b_qkv
    qkv = qkv.reshape(B, L, 3, H, D).transpose(2, 0, 3, 1, 4)
    q, k, v = qkv[0], qkv[1], qkv[2]
    s = jnp.einsum('bhld,bhmd->bhlm', q, k) * scale
    p = jax.nn.softmax(s, axis=-1)
    o = jnp.einsum('bhlm,bhmd->bhld', p, v)
    o = o.transpose(0, 2, 1, 3).reshape(B, L, C)
    return o @ w_proj.T + b_proj


if __name__ == "__main__":
    # shapes consistent with the module: dim=C=32, num_heads=8 -> head_dim=4
    B, L, C, H = 2, 8, 32, 8

    key = jax.random.PRNGKey(0)
    k1, k2, k3, kx = jax.random.split(key, 4)

    # PyTorch nn.Linear weight layout: (out, in)
    w_qkv = jax.random.normal(k1, (3 * C, C), jnp.float32) * 0.02
    b_qkv = jnp.zeros((3 * C,), jnp.float32)   # qkv_bias=False
    w_proj = jax.random.normal(k2, (C, C), jnp.float32) * 0.02
    b_proj = jax.random.normal(k3, (C,), jnp.float32) * 0.02
    x = jax.random.normal(kx, (B, L, C), jnp.float32)

    # one-time (outside jit) weight permutation into head-major layouts
    params = prepare_params(w_qkv, b_qkv, w_proj, b_proj, num_heads=H)

    fwd = jax.jit(attention_forward)
    out = jax.block_until_ready(fwd(x, *params))

    ref = attention_reference(x, w_qkv, b_qkv, w_proj, b_proj, H)
    assert out.shape == (B, L, C)
    max_err = float(jnp.max(jnp.abs(out - ref)))
    assert jnp.allclose(out, ref, atol=1e-4, rtol=1e-4), max_err

    print("KERNEL_OK")
</pallas_src>

<mosaic_0001>
module attributes {stable_mosaic.version = 11 : i64} {
  func.func @_fused_attention_kernel(%arg0: i32, %arg1: memref<1x8x32xf32, #tpu.memory_space<vmem>>, %arg2: memref<8x4x32xf32, #tpu.memory_space<vmem>>, %arg3: memref<8x4x32xf32, #tpu.memory_space<vmem>>, %arg4: memref<8x4x32xf32, #tpu.memory_space<vmem>>, %arg5: memref<8x1x4xf32, #tpu.memory_space<vmem>>, %arg6: memref<8x1x4xf32, #tpu.memory_space<vmem>>, %arg7: memref<8x1x4xf32, #tpu.memory_space<vmem>>, %arg8: memref<8x4x32xf32, #tpu.memory_space<vmem>>, %arg9: memref<1x32xf32, #tpu.memory_space<vmem>>, %arg10: memref<1x8x32xf32, #tpu.memory_space<vmem>>) attributes {dimension_semantics = [#tpu.dimension_semantics<parallel>], iteration_bounds = array<i64: 2>, scalar_prefetch = 0 : i64, scratch_operands = 0 : i64, tpu.core_type = #tpu.core_type<tc>, window_params = [{transform_indices = @transform_0, window_bounds = array<i64: 1, 8, 32>}, {pipeline_mode = #tpu.pipeline_mode<synchronous>, transform_indices = @transform_1, window_bounds = array<i64: 8, 4, 32>}, {pipeline_mode = #tpu.pipeline_mode<synchronous>, transform_indices = @transform_2, window_bounds = array<i64: 8, 4, 32>}, {pipeline_mode = #tpu.pipeline_mode<synchronous>, transform_indices = @transform_3, window_bounds = array<i64: 8, 4, 32>}, {pipeline_mode = #tpu.pipeline_mode<synchronous>, transform_indices = @transform_4, window_bounds = array<i64: 8, 1, 4>}, {pipeline_mode = #tpu.pipeline_mode<synchronous>, transform_indices = @transform_5, window_bounds = array<i64: 8, 1, 4>}, {pipeline_mode = #tpu.pipeline_mode<synchronous>, transform_indices = @transform_6, window_bounds = array<i64: 8, 1, 4>}, {pipeline_mode = #tpu.pipeline_mode<synchronous>, transform_indices = @transform_7, window_bounds = array<i64: 8, 4, 32>}, {pipeline_mode = #tpu.pipeline_mode<synchronous>, transform_indices = @transform_8, window_bounds = array<i64: 1, 32>}, {transform_indices = @transform_9, window_bounds = array<i64: 1, 8, 32>}]} {
    %c0 = arith.constant 0 : index
    %c0_0 = arith.constant 0 : index
    %c0_1 = arith.constant 0 : index
    %0 = vector.load %arg1[%c0, %c0_0, %c0_1] : memref<1x8x32xf32, #tpu.memory_space<vmem>>, vector<1x8x32xf32>
    %1 = vector.shape_cast %0 : vector<1x8x32xf32> to vector<8x32xf32>
    %2 = vector.shape_cast %1 : vector<8x32xf32> to vector<1x8x32xf32>
    %3 = vector.shape_cast %2 : vector<1x8x32xf32> to vector<1x8x32xf32>
    %4 = vector.broadcast %3 : vector<1x8x32xf32> to vector<8x8x32xf32>
    %c0_2 = arith.constant 0 : index
    %c0_3 = arith.constant 0 : index
    %c0_4 = arith.constant 0 : index
    %5 = vector.load %arg2[%c0_2, %c0_3, %c0_4] : memref<8x4x32xf32, #tpu.memory_space<vmem>>, vector<8x4x32xf32>
    "tpu.trace_start"() <{level = 10 : i32, message = "hlc,hdc->hld"}> : () -> ()
    %cst = arith.constant dense<0.000000e+00> : vector<8x8x4xf32>
    %6 = tpu.matmul %4, %5, %cst {dimension_numbers = #tpu.dot_dimension_numbers<[2], [2], [1], [1], [0, 0, 0, 1, 1, 1], [0], [0]>} : vector<8x8x32xf32>, vector<8x4x32xf32>, vector<8x8x4xf32> -> vector<8x8x4xf32>
    "tpu.trace_stop"() : () -> ()
    %c0_5 = arith.constant 0 : index
    %c0_6 = arith.constant 0 : index
    %c0_7 = arith.constant 0 : index
    %7 = vector.load %arg5[%c0_5, %c0_6, %c0_7] : memref<8x1x4xf32, #tpu.memory_space<vmem>>, vector<8x1x4xf32>
    %8 = vector.broadcast %7 : vector<8x1x4xf32> to vector<8x8x4xf32>
    %9 = arith.addf %6, %8 : vector<8x8x4xf32>
    %c0_8 = arith.constant 0 : index
    %c0_9 = arith.constant 0 : index
    %c0_10 = arith.constant 0 : index
    %10 = vector.load %arg3[%c0_8, %c0_9, %c0_10] : memref<8x4x32xf32, #tpu.memory_space<vmem>>, vector<8x4x32xf32>
    "tpu.trace_start"() <{level = 10 : i32, message = "hlc,hdc->hld"}> : () -> ()
    %cst_11 = arith.constant dense<0.000000e+00> : vector<8x8x4xf32>
    %11 = tpu.matmul %4, %10, %cst_11 {dimension_numbers = #tpu.dot_dimension_numbers<[2], [2], [1], [1], [0, 0, 0, 1, 1, 1], [0], [0]>} : vector<8x8x32xf32>, vector<8x4x32xf32>, vector<8x8x4xf32> -> vector<8x8x4xf32>
    "tpu.trace_stop"() : () -> ()
    %c0_12 = arith.constant 0 : index
    %c0_13 = arith.constant 0 : index
    %c0_14 = arith.constant 0 : index
    %12 = vector.load %arg6[%c0_12, %c0_13, %c0_14] : memref<8x1x4xf32, #tpu.memory_space<vmem>>, vector<8x1x4xf32>
    %13 = vector.broadcast %12 : vector<8x1x4xf32> to vector<8x8x4xf32>
    %14 = arith.addf %11, %13 : vector<8x8x4xf32>
    %c0_15 = arith.constant 0 : index
    %c0_16 = arith.constant 0 : index
    %c0_17 = arith.constant 0 : index
    %15 = vector.load %arg4[%c0_15, %c0_16, %c0_17] : memref<8x4x32xf32, #tpu.memory_space<vmem>>, vector<8x4x32xf32>
    "tpu.trace_start"() <{level = 10 : i32, message = "hlc,hdc->hld"}> : () -> ()
    %cst_18 = arith.constant dense<0.000000e+00> : vector<8x8x4xf32>
    %16 = tpu.matmul %4, %15, %cst_18 {dimension_numbers = #tpu.dot_dimension_numbers<[2], [2], [1], [1], [0, 0, 0, 1, 1, 1], [0], [0]>} : vector<8x8x32xf32>, vector<8x4x32xf32>, vector<8x8x4xf32> -> vector<8x8x4xf32>
    "tpu.trace_stop"() : () -> ()
    %c0_19 = arith.constant 0 : index
    %c0_20 = arith.constant 0 : index
    %c0_21 = arith.constant 0 : index
    %17 = vector.load %arg7[%c0_19, %c0_20, %c0_21] : memref<8x1x4xf32, #tpu.memory_space<vmem>>, vector<8x1x4xf32>
    %18 = vector.broadcast %17 : vector<8x1x4xf32> to vector<8x8x4xf32>
    %19 = arith.addf %16, %18 : vector<8x8x4xf32>
    "tpu.trace_start"() <{level = 10 : i32, message = "hqd,hkd->hqk"}> : () -> ()
    %cst_22 = arith.constant dense<0.000000e+00> : vector<8x8x8xf32>
    %20 = tpu.matmul %9, %14, %cst_22 {dimension_numbers = #tpu.dot_dimension_numbers<[2], [2], [1], [1], [0, 0, 0, 1, 1, 1], [0], [0]>} : vector<8x8x4xf32>, vector<8x8x4xf32>, vector<8x8x8xf32> -> vector<8x8x8xf32>
    "tpu.trace_stop"() : () -> ()
    %cst_23 = arith.constant 5.000000e-01 : f32
    %21 = vector.broadcast %cst_23 : f32 to vector<8x8x8xf32>
    %22 = arith.mulf %20, %21 : vector<8x8x8xf32>
    %cst_24 = arith.constant dense<0xFF800000> : vector<8x8xf32>
    %23 = vector.multi_reduction <maximumf>, %22, %cst_24 [2] : vector<8x8x8xf32> to vector<8x8xf32>
    %24 = vector.shape_cast %23 : vector<8x8xf32> to vector<8x8x1xf32>
    %25 = vector.broadcast %24 : vector<8x8x1xf32> to vector<8x8x8xf32>
    %26 = arith.subf %22, %25 : vector<8x8x8xf32>
    %27 = math.exp %26 : vector<8x8x8xf32>
    %cst_25 = arith.constant dense<0.000000e+00> : vector<8x8xf32>
    %28 = vector.multi_reduction <add>, %27, %cst_25 [2] : vector<8x8x8xf32> to vector<8x8xf32>
    %29 = vector.shape_cast %28 : vector<8x8xf32> to vector<8x8x1xf32>
    %30 = tpu.reciprocal %29 : vector<8x8x1xf32> -> vector<8x8x1xf32>
    %31 = vector.broadcast %30 : vector<8x8x1xf32> to vector<8x8x8xf32>
    %32 = arith.mulf %27, %31 : vector<8x8x8xf32>
    "tpu.trace_start"() <{level = 10 : i32, message = "hqk,hkd->hqd"}> : () -> ()
    %cst_26 = arith.constant dense<0.000000e+00> : vector<8x8x4xf32>
    %33 = tpu.matmul %32, %19, %cst_26 {dimension_numbers = #tpu.dot_dimension_numbers<[2], [1], [1], [2], [0, 0, 0, 1, 1, 2], [0], [0]>} : vector<8x8x8xf32>, vector<8x8x4xf32>, vector<8x8x4xf32> -> vector<8x8x4xf32>
    "tpu.trace_stop"() : () -> ()
    %c0_27 = arith.constant 0 : index
    %c0_28 = arith.constant 0 : index
    %c0_29 = arith.constant 0 : index
    %34 = vector.load %arg8[%c0_27, %c0_28, %c0_29] : memref<8x4x32xf32, #tpu.memory_space<vmem>>, vector<8x4x32xf32>
    "tpu.trace_start"() <{level = 10 : i32, message = "hld,hdn->hln"}> : () -> ()
    %cst_30 = arith.constant dense<0.000000e+00> : vector<8x8x32xf32>
    %35 = tpu.matmul %33, %34, %cst_30 {dimension_numbers = #tpu.dot_dimension_numbers<[2], [1], [1], [2], [0, 0, 0, 1, 1, 2], [0], [0]>} : vector<8x8x4xf32>, vector<8x4x32xf32>, vector<8x8x32xf32> -> vector<8x8x32xf32>
    "tpu.trace_stop"() : () -> ()
    %cst_31 = arith.constant dense<0.000000e+00> : vector<8x32xf32>
    %36 = vector.multi_reduction <add>, %35, %cst_31 [0] : vector<8x8x32xf32> to vector<8x32xf32>
    %c0_32 = arith.constant 0 : index
    %c0_33 = arith.constant 0 : index
    %37 = vector.load %arg9[%c0_32, %c0_33] : memref<1x32xf32, #tpu.memory_space<vmem>>, vector<1x32xf32>
    %38 = vector.broadcast %37 : vector<1x32xf32> to vector<8x32xf32>
    %39 = arith.addf %36, %38 : vector<8x32xf32>
    %c0_34 = arith.constant 0 : index
    %c0_35 = arith.constant 0 : index
    %c0_36 = arith.constant 0 : index
    %40 = vector.load %arg10[%c0_34, %c0_35, %c0_36] : memref<1x8x32xf32, #tpu.memory_space<vmem>>, vector<1x8x32xf32>
    %41 = vector.shape_cast %40 : vector<1x8x32xf32> to vector<8x32xf32>
    %42 = vector.shape_cast %39 : vector<8x32xf32> to vector<1x8x32xf32>
    tpu.vector_store %arg10[%c0_34, %c0_35, %c0_36], %42 {strides = array<i32>} : memref<1x8x32xf32, #tpu.memory_space<vmem>>, vector<1x8x32xf32>,
    return
  }
  func.func @transform_0(%arg0: i32) -> (i32, i32, i32) {
    %c0_i32 = arith.constant 0 : i32
    %c0_i32_0 = arith.constant 0 : i32
    %c0_i32_1 = arith.constant 0 : i32
    return %arg0, %c0_i32, %c0_i32_0 : i32, i32, i32
  }
  func.func @transform_1(%arg0: i32) -> (i32, i32, i32) {
    %c0_i32 = arith.constant 0 : i32
    %c0_i32_0 = arith.constant 0 : i32
    %c0_i32_1 = arith.constant 0 : i32
    %c0_i32_2 = arith.constant 0 : i32
    return %c0_i32, %c0_i32_0, %c0_i32_1 : i32, i32, i32
  }
  func.func @transform_2(%arg0: i32) -> (i32, i32, i32) {
    %c0_i32 = arith.constant 0 : i32
    %c0_i32_0 = arith.constant 0 : i32
    %c0_i32_1 = arith.constant 0 : i32
    %c0_i32_2 = arith.constant 0 : i32
    return %c0_i32, %c0_i32_0, %c0_i32_1 : i32, i32, i32
  }
  func.func @transform_3(%arg0: i32) -> (i32, i32, i32) {
    %c0_i32 = arith.constant 0 : i32
    %c0_i32_0 = arith.constant 0 : i32
    %c0_i32_1 = arith.constant 0 : i32
    %c0_i32_2 = arith.constant 0 : i32
    return %c0_i32, %c0_i32_0, %c0_i32_1 : i32, i32, i32
  }
  func.func @transform_4(%arg0: i32) -> (i32, i32, i32) {
    %c0_i32 = arith.constant 0 : i32
    %c0_i32_0 = arith.constant 0 : i32
    %c0_i32_1 = arith.constant 0 : i32
    %c0_i32_2 = arith.constant 0 : i32
    return %c0_i32, %c0_i32_0, %c0_i32_1 : i32, i32, i32
  }
  func.func @transform_5(%arg0: i32) -> (i32, i32, i32) {
    %c0_i32 = arith.constant 0 : i32
    %c0_i32_0 = arith.constant 0 : i32
    %c0_i32_1 = arith.constant 0 : i32
    %c0_i32_2 = arith.constant 0 : i32
    return %c0_i32, %c0_i32_0, %c0_i32_1 : i32, i32, i32
  }
  func.func @transform_6(%arg0: i32) -> (i32, i32, i32) {
    %c0_i32 = arith.constant 0 : i32
    %c0_i32_0 = arith.constant 0 : i32
    %c0_i32_1 = arith.constant 0 : i32
    %c0_i32_2 = arith.constant 0 : i32
    return %c0_i32, %c0_i32_0, %c0_i32_1 : i32, i32, i32
  }
  func.func @transform_7(%arg0: i32) -> (i32, i32, i32) {
    %c0_i32 = arith.constant 0 : i32
    %c0_i32_0 = arith.constant 0 : i32
    %c0_i32_1 = arith.constant 0 : i32
    %c0_i32_2 = arith.constant 0 : i32
    return %c0_i32, %c0_i32_0, %c0_i32_1 : i32, i32, i32
  }
  func.func @transform_8(%arg0: i32) -> (i32, i32) {
    %c0_i32 = arith.constant 0 : i32
    %c0_i32_0 = arith.constant 0 : i32
    %c0_i32_1 = arith.constant 0 : i32
    return %c0_i32, %c0_i32_0 : i32, i32
  }
  func.func @transform_9(%arg0: i32) -> (i32, i32, i32) {
    %c0_i32 = arith.constant 0 : i32
    %c0_i32_0 = arith.constant 0 : i32
    %c0_i32_1 = arith.constant 0 : i32
    return %arg0, %c0_i32, %c0_i32_0 : i32, i32, i32
  }
}

</mosaic_0001>

<llo_original>
// kernel: attention_forward.1
$region0: #{attention_forward.1}
  #allocation0 [shape = 'u32[]', space=smem, size = 0x4, offset = 0x4, fixed_abs, tag = 'smem constant byte address 0x4 - core index']
  #allocation1 [shape = 'u32[144,128]{1,0:T(1,128)}', space=vmem, size = 0x12000, scoped, tag = 'internal scratch']
  %s0 = inlined_call_operand.hbm [shape: f32[2,8,32], index: 0, kind: input, shape index: {}]
  %s1 = inlined_call_operand.vmem [shape: f32[8,4,32], index: 1, kind: input, shape index: {}]
  %s2 = inlined_call_operand.hbm [shape: f32[8,4,32], index: 2, kind: input, shape index: {}]
  %s3 = inlined_call_operand.hbm [shape: f32[8,4,32], index: 3, kind: input, shape index: {}]
  %s4 = inlined_call_operand.vmem [shape: f32[8,1,4], index: 4, kind: input, shape index: {}]
  %s5 = inlined_call_operand.vmem [shape: f32[8,1,4], index: 5, kind: input, shape index: {}]
  %s6 = inlined_call_operand.vmem [shape: f32[8,1,4], index: 6, kind: input, shape index: {}]
  %s7 = inlined_call_operand.hbm [shape: f32[8,4,32], index: 7, kind: input, shape index: {}]
  %s8 = inlined_call_operand.vmem [shape: f32[1,32], index: 8, kind: input, shape index: {}]
  %s9 = inlined_call_operand.hbm [shape: f32[2,8,32], index: 9, kind: output, shape index: {}]
  %s10 = sld [smem:[#allocation0]]
  $region85: #{attention_forward.1} parent=0
    _
  %s12 = ssub.s32 1, %s10
  %s13 = scalar_select 0, %s12, %s10
  $region1: #{attention_forward.1} parent=0
    #allocation2 [shape = 'u8[8192]{0}', space=vmem, size = 0x2000, scoped, tag = 'input window, operand 0']
    #allocation3 [shape = 's32[2]{0}', space=sflag, size = 0x8, scoped, tag = 'scoped memory for attention_forward.1']
    #allocation4 [shape = 's32[2]{0}', space=sflag, size = 0x8, scoped, tag = 'scoped memory for attention_forward.1']
    #allocation5 [shape = 'u8[16384]{0}', space=vmem, size = 0x4000, scoped, tag = 'input window, operand 2, single buffered']
    #allocation6 [shape = 's32[1]{0}', space=sflag, size = 0x4, scoped, tag = 'scoped memory for attention_forward.1']
    #allocation7 [shape = 'u8[16384]{0}', space=vmem, size = 0x4000, scoped, tag = 'input window, operand 3, single buffered']
    #allocation8 [shape = 'u8[16384]{0}', space=vmem, size = 0x4000, scoped, tag = 'input window, operand 7, single buffered']
    #allocation9 [shape = 's32[1]{0}', space=sflag, size = 0x4, scoped, tag = 'scoped memory for attention_forward.1']
    #allocation10 [shape = 'u8[8192]{0}', space=vmem, size = 0x2000, scoped, tag = 'output window, operand 0']
    %14 = vsyncpa [#allocation3], 0
    %s15 = scalar_lea.sflag [#allocation3], 1
    %16 = vsyncpa %s15, 0
    %17 = vsyncpa [#allocation6], 0
    %18 = vsyncpa [#allocation9], 0
    %19 = vsyncpa [#allocation4], 0
    %s20 = scalar_lea.sflag [#allocation4], 1
    %21 = vsyncpa %s20, 0
    loop: start=0, step=1, limit=4
    $region2: #{attention_forward.1} parent=1 // loop_pre_header
      _
    $region3: #{attention_forward.1} parent=1 // loop_header
      %s23 = sphi 0, %s27
      %p24 = scmp.ge.s32.totalorder %s23, 4
      %s33 = sphi 0, %s35
      %s36 = sphi 0, %s33
      %s37 = sphi 0, %s36
      %s53 = sphi 0, %s37
      %s57 = sphi 0, %s57
      %s59 = sphi 0, %s57
      %s60 = sphi 0, %s59
      %s74 = sphi 0, %s60
      %s78 = sphi 0, %s78
      %s80 = sphi 0, %s78
      %s81 = sphi 0, %s80
      %s95 = sphi 0, %s81
      %s99 = sphi 0, %s99
      %s101 = sphi 0, %s99
      %s102 = sphi 0, %s101
      %s116 = sphi 0, %s102
      %s120 = sphi 0, %s120
      %s122 = sphi 0, %s120
      %s123 = sphi 0, %s122
      %s137 = sphi 0, %s123
      %s141 = sphi 0, %s141
      %s143 = sphi 0, %s141
      %s144 = sphi 0, %s143
      %s158 = sphi 0, %s144
      %s162 = sphi 0, %s162
      %s164 = sphi 0, %s162
      %s165 = sphi 0, %s164
      %s179 = sphi 0, %s165
      %s183 = sphi 0, %s183
      %s185 = sphi 0, %s183
      %s186 = sphi 0, %s185
      %s200 = sphi 0, %s186
      %s204 = sphi 0, %s204
      %s206 = sphi 0, %s204
      %s207 = sphi 0, %s206
      %s221 = sphi 0, %s207
      %s227 = sphi 0, %s229
      %s230 = sphi 0, %s227
      %s231 = sphi 0, %s230
      %s247 = sphi 0, %s231
    $region4: #{attention_forward.1} parent=1 // loop_header_branch
      %26 = sbr.rel (%p24) target = $region8
    $region5: #{attention_forward.1} parent=1 // loop_body
      %s28 = ssub.s32 %s23, 1
      %s29 = ssub.s32 %s23, 2
      %s30 = sadd.s32 %s23, 1
      %s31 = ssub.s32 %s23, %s30
      %p32 = scmp.eq.s32.totalorder %s31, 0
      %s34 = sadd.s32 %s33, 1
      %s35 = scalar_select %p32, %s33, %s34
      %p38 = pneg %p32
      %p39 = scmp.eq.s32.totalorder %s23, 1
      %p40 = por %p38, %p39
      %p41 = scmp.ne.s32.totalorder %s33, %s36
      %p42 = scmp.eq.s32.totalorder %s23, 0
      %p43 = por %p41, %p42
      %p44 = scmp.ne.s32.totalorder %s33, %s36
      %p45 = scmp.eq.s32.totalorder %s28, 1
      %p46 = por %p44, %p45
      %p47 = scmp.ne.s32.totalorder %s36, %s37
      %p48 = scmp.eq.s32.totalorder %s28, 0
      %p49 = por %p47, %p48
      %p50 = scmp.ne.s32.totalorder %s36, %s37
      %p51 = scmp.eq.s32.totalorder %s29, 1
      %p52 = por %p50, %p51
      %p54 = scmp.ne.s32.totalorder %s37, %s53
      %p55 = scmp.eq.s32.totalorder %s29, 0
      %p56 = por %p54, %p55
      %s58 = sadd.s32 %s57, 1
      %p61 = scmp.eq.s32.totalorder %s23, 1
      %p62 = scmp.ne.s32.totalorder %s57, %s59
      %p63 = scmp.eq.s32.totalorder %s23, 0
      %p64 = por %p62, %p63
      %p65 = scmp.ne.s32.totalorder %s57, %s59
      %p66 = scmp.eq.s32.totalorder %s28, 1
      %p67 = por %p65, %p66
      %p68 = scmp.ne.s32.totalorder %s59, %s60
      %p69 = scmp.eq.s32.totalorder %s28, 0
      %p70 = por %p68, %p69
      %p71 = scmp.ne.s32.totalorder %s59, %s60
      %p72 = scmp.eq.s32.totalorder %s29, 1
      %p73 = por %p71, %p72
      %p75 = scmp.ne.s32.totalorder %s60, %s74
      %p76 = scmp.eq.s32.totalorder %s29, 0
      %p77 = por %p75, %p76
      %s79 = sadd.s32 %s78, 1
      %p82 = scmp.eq.s32.totalorder %s23, 1
      %p83 = scmp.ne.s32.totalorder %s78, %s80
      %p84 = scmp.eq.s32.totalorder %s23, 0
      %p85 = por %p83, %p84
      %p86 = scmp.ne.s32.totalorder %s78, %s80
      %p87 = scmp.eq.s32.totalorder %s28, 1
      %p88 = por %p86, %p87
      %p89 = scmp.ne.s32.totalorder %s80, %s81
      %p90 = scmp.eq.s32.totalorder %s28, 0
      %p91 = por %p89, %p90
      %p92 = scmp.ne.s32.totalorder %s80, %s81
      %p93 = scmp.eq.s32.totalorder %s29, 1
      %p94 = por %p92, %p93
      %p96 = scmp.ne.s32.totalorder %s81, %s95
      %p97 = scmp.eq.s32.totalorder %s29, 0
      %p98 = por %p96, %p97
      %s100 = sadd.s32 %s99, 1
      %p103 = scmp.eq.s32.totalorder %s23, 1
      %p104 = scmp.ne.s32.totalorder %s99, %s101
      %p105 = scmp.eq.s32.totalorder %s23, 0
      %p106 = por %p104, %p105
      %p107 = scmp.ne.s32.totalorder %s99, %s101
      %p108 = scmp.eq.s32.totalorder %s28, 1
      %p109 = por %p107, %p108
      %p110 = scmp.ne.s32.totalorder %s101, %s102
      %p111 = scmp.eq.s32.totalorder %s28, 0
      %p112 = por %p110, %p111
      %p113 = scmp.ne.s32.totalorder %s101, %s102
      %p114 = scmp.eq.s32.totalorder %s29, 1
      %p115 = por %p113, %p114
      %p117 = scmp.ne.s32.totalorder %s102, %s116
      %p118 = scmp.eq.s32.totalorder %s29, 0
      %p119 = por %p117, %p118
      %s121 = sadd.s32 %s120, 1
      %p124 = scmp.eq.s32.totalorder %s23, 1
      %p125 = scmp.ne.s32.totalorder %s120, %s122
      %p126 = scmp.eq.s32.totalorder %s23, 0
      %p127 = por %p125, %p126
      %p128 = scmp.ne.s32.totalorder %s120, %s122
      %p129 = scmp.eq.s32.totalorder %s28, 1
      %p130 = por %p128, %p129
      %p131 = scmp.ne.s32.totalorder %s122, %s123
      %p132 = scmp.eq.s32.totalorder %s28, 0
      %p133 = por %p131, %p132
      %p134 = scmp.ne.s32.totalorder %s122, %s123
      %p135 = scmp.eq.s32.totalorder %s29, 1
      %p136 = por %p134, %p135
      %p138 = scmp.ne.s32.totalorder %s123, %s137
      %p139 = scmp.eq.s32.totalorder %s29, 0
      %p140 = por %p138, %p139
      %s142 = sadd.s32 %s141, 1
      %p145 = scmp.eq.s32.totalorder %s23, 1
      %p146 = scmp.ne.s32.totalorder %s141, %s143
      %p147 = scmp.eq.s32.totalorder %s23, 0
      %p148 = por %p146, %p147
      %p149 = scmp.ne.s32.totalorder %s141, %s143
      %p150 = scmp.eq.s32.totalorder %s28, 1
      %p151 = por %p149, %p150
      %p152 = scmp.ne.s32.totalorder %s143, %s144
      %p153 = scmp.eq.s32.totalorder %s28, 0
      %p154 = por %p152, %p153
      %p155 = scmp.ne.s32.totalorder %s143, %s144
      %p156 = scmp.eq.s32.totalorder %s29, 1
      %p157 = por %p155, %p156
      %p159 = scmp.ne.s32.totalorder %s144, %s158
      %p160 = scmp.eq.s32.totalorder %s29, 0
      %p161 = por %p159, %p160
      %s163 = sadd.s32 %s162, 1
      %p166 = scmp.eq.s32.totalorder %s23, 1
      %p167 = scmp.ne.s32.totalorder %s162, %s164
      %p168 = scmp.eq.s32.totalorder %s23, 0
      %p169 = por %p167, %p168
      %p170 = scmp.ne.s32.totalorder %s162, %s164
      %p171 = scmp.eq.s32.totalorder %s28, 1
      %p172 = por %p170, %p171
      %p173 = scmp.ne.s32.totalorder %s164, %s165
      %p174 = scmp.eq.s32.totalorder %s28, 0
      %p175 = por %p173, %p174
      %p176 = scmp.ne.s32.totalorder %s164, %s165
      %p177 = scmp.eq.s32.totalorder %s29, 1
      %p178 = por %p176, %p177
      %p180 = scmp.ne.s32.totalorder %s165, %s179
      %p181 = scmp.eq.s32.totalorder %s29, 0
      %p182 = por %p180, %p181
      %s184 = sadd.s32 %s183, 1
      %p187 = scmp.eq.s32.totalorder %s23, 1
      %p188 = scmp.ne.s32.totalorder %s183, %s185
      %p189 = scmp.eq.s32.totalorder %s23, 0
      %p190 = por %p188, %p189
      %p191 = scmp.ne.s32.totalorder %s183, %s185
      %p192 = scmp.eq.s32.totalorder %s28, 1
      %p193 = por %p191, %p192
      %p194 = scmp.ne.s32.totalorder %s185, %s186
      %p195 = scmp.eq.s32.totalorder %s28, 0
      %p196 = por %p194, %p195
      %p197 = scmp.ne.s32.totalorder %s185, %s186
      %p198 = scmp.eq.s32.totalorder %s29, 1
      %p199 = por %p197, %p198
      %p201 = scmp.ne.s32.totalorder %s186, %s200
      %p202 = scmp.eq.s32.totalorder %s29, 0
      %p203 = por %p201, %p202
      %s205 = sadd.s32 %s204, 1
      %p208 = scmp.eq.s32.totalorder %s23, 1
      %p209 = scmp.ne.s32.totalorder %s204, %s206
      %p210 = scmp.eq.s32.totalorder %s23, 0
      %p211 = por %p209, %p210
      %p212 = scmp.ne.s32.totalorder %s204, %s206
      %p213 = scmp.eq.s32.totalorder %s28, 1
      %p214 = por %p212, %p213
      %p215 = scmp.ne.s32.totalorder %s206, %s207
      %p216 = scmp.eq.s32.totalorder %s28, 0
      %p217 = por %p215, %p216
      %p218 = scmp.ne.s32.totalorder %s206, %s207
      %p219 = scmp.eq.s32.totalorder %s29, 1
      %p220 = por %p218, %p219
      %p222 = scmp.ne.s32.totalorder %s207, %s221
      %p223 = scmp.eq.s32.totalorder %s29, 0
      %p224 = por %p222, %p223
      %s225 = ssub.s32 %s23, %s30
      %p226 = scmp.eq.s32.totalorder %s225, 0
      %s228 = sadd.s32 %s227, 1
      %s229 = scalar_select %p226, %s227, %s228
      %p232 = pneg %p226
      %p233 = scmp.eq.s32.totalorder %s23, 1
      %p234 = por %p232, %p233
      %p235 = scmp.ne.s32.totalorder %s227, %s230
      %p236 = scmp.eq.s32.totalorder %s23, 0
      %p237 = por %p235, %p236
      %p238 = scmp.ne.s32.totalorder %s227, %s230
      %p239 = scmp.eq.s32.totalorder %s28, 1
      %p240 = por %p238, %p239
      %p241 = scmp.ne.s32.totalorder %s230, %s231
      %p242 = scmp.eq.s32.totalorder %s28, 0
      %p243 = por %p241, %p242
      %p244 = scmp.ne.s32.totalorder %s230, %s231
      %p245 = scmp.eq.s32.totalorder %s29, 1
      %p246 = por %p244, %p245
      %p248 = scmp.ne.s32.totalorder %s231, %s247
      %p249 = scmp.eq.s32.totalorder %s29, 0
      %p250 = por %p248, %p249
      %p251 = scmp.le.s32.totalorder 1, %s23
      %p252 = scmp.lt.s32.totalorder %s23, 3
      %p253 = pnand %p251, %p252
      %p254 = pneg %p253
      // Predicated region
      $region9: #{attention_forward.1} parent=5 // pred_check
        _
      $region10: #{attention_forward.1} parent=5 // pred_check_branch
        %256 = sbr.rel (%p253) target = $region12
      $region11: #{attention_forward.1} parent=5 // pred_region
        %s257 = ssub.s32 %s23, 1
        // Predicated region
        $region13: #{attention_forward.1} parent=11 // pred_check
          %p258 = pneg %p70
        $region14: #{attention_forward.1} parent=11 // pred_check_branch
          %260 = sbr.rel (%p258) target = $region16
        $region15: #{attention_forward.1} parent=11 // pred_region
          _
        $region16: #{attention_forward.1} parent=11 // pred_fallthru
          _
        // Predicated region
        $region17: #{attention_forward.1} parent=11 // pred_check
          %p261 = pneg %p91
        $region18: #{attention_forward.1} parent=11 // pred_check_branch
          %263 = sbr.rel (%p261) target = $region20
        $region19: #{attention_forward.1} parent=11 // pred_region
          %s265 = ssub.s32 512, 512
          %266 = vsyncadd [#allocation6], %s265
          %s267 = sshll.u32 [#allocation5], 4
          %s268 = int_to_ptr.vmem [resolvable:$true] %s267
          %273 = dma.hbm_to_vmem [thread:$0]  %s2, 512, %s268, [#allocation6], 64, 64, 4
        $region20: #{attention_forward.1} parent=11 // pred_fallthru
          _
        // Predicated region
        $region21: #{attention_forward.1} parent=11 // pred_check
          %p274 = pneg %p112
        $region22: #{attention_forward.1} parent=11 // pred_check_branch
          %276 = sbr.rel (%p274) target = $region24
        $region23: #{attention_forward.1} parent=11 // pred_region
          %s278 = ssub.s32 512, 512
          %279 = vsyncadd [#allocation6], %s278
          %s280 = sshll.u32 [#allocation7], 4
          %s281 = int_to_ptr.vmem [resolvable:$true] %s280
          %286 = dma.hbm_to_vmem [thread:$0]  %s3, 512, %s281, [#allocation6], 64, 64, 4
        $region24: #{attention_forward.1} parent=11 // pred_fallthru
          _
        // Predicated region
        $region25: #{attention_forward.1} parent=11 // pred_check
          %p287 = pneg %p133
        $region26: #{attention_forward.1} parent=11 // pred_check_branch
          %289 = sbr.rel (%p287) target = $region28
        $region27: #{attention_forward.1} parent=11 // pred_region
          _
        $region28: #{attention_forward.1} parent=11 // pred_fallthru
          _
        // Predicated region
        $region29: #{attention_forward.1} parent=11 // pred_check
          %p290 = pneg %p154
        $region30: #{attention_forward.1} parent=11 // pred_check_branch
          %292 = sbr.rel (%p290) target = $region32
        $region31: #{attention_forward.1} parent=11 // pred_region
          _
        $region32: #{attention_forward.1} parent=11 // pred_fallthru
          _
        // Predicated region
        $region33: #{attention_forward.1} parent=11 // pred_check
          %p293 = pneg %p175
        $region34: #{attention_forward.1} parent=11 // pred_check_branch
          %295 = sbr.rel (%p293) target = $region36
        $region35: #{attention_forward.1} parent=11 // pred_region
          _
        $region36: #{attention_forward.1} parent=11 // pred_fallthru
          _
        // Predicated region
        $region37: #{attention_forward.1} parent=11 // pred_check
          %p296 = pneg %p196
        $region38: #{attention_forward.1} parent=11 // pred_check_branch
          %298 = sbr.rel (%p296) target = $region40
        $region39: #{attention_forward.1} parent=11 // pred_region
          %s300 = ssub.s32 512, 512
          %301 = vsyncadd [#allocation9], %s300
          %s302 = sshll.u32 [#allocation8], 4
          %s303 = int_to_ptr.vmem [resolvable:$true] %s302
          %308 = dma.hbm_to_vmem [thread:$0]  %s7, 512, %s303, [#allocation9], 64, 64, 4
        $region40: #{attention_forward.1} parent=11 // pred_fallthru
          _
        // Predicated region
        $region41: #{attention_forward.1} parent=11 // pred_check
          %p309 = pneg %p217
        $region42: #{attention_forward.1} parent=11 // pred_check_branch
          %311 = sbr.rel (%p309) target = $region44
        $region43: #{attention_forward.1} parent=11 // pred_region
          _
        $region44: #{attention_forward.1} parent=11 // pred_fallthru
          _
      $region12: #{attention_forward.1} parent=5 // pred_fallthru
        _
      %p312 = scmp.lt.s32.totalorder %s23, 2
      // Predicated region
      $region45: #{attention_forward.1} parent=5 // pred_check
        %p313 = pneg %p312
      $region46: #{attention_forward.1} parent=5 // pred_check_branch
        %315 = sbr.rel (%p313) target = $region48
      $region47: #{attention_forward.1} parent=5 // pred_region
        // Predicated region
        $region49: #{attention_forward.1} parent=47 // pred_check
          %p316 = pneg %p43
        $region50: #{attention_forward.1} parent=47 // pred_check_branch
          %318 = sbr.rel (%p316) target = $region52
        $region51: #{attention_forward.1} parent=47 // pred_region
          %s319 = sand.u32 %s33, 1
          %s320 = scalar_lea.sflag [#allocation3], %s319
          %s321 = sand.u32 %s33, 1
          %s322 = smul.addr %s321, 8
          %s323 = scalar_lea.vmem [#allocation2], %s322
          %s325 = ssub.s32 128, 128
          %326 = vsyncadd %s320, %s325
          %s327 = smul.addr %s23, 128
          %s328 = scalar_lea.hbm %s0, %s327
          %s330 = sshll.u32 %s323, 4
          %s331 = int_to_ptr.vmem [resolvable:$true] %s330
          %333 = dma.hbm_to_vmem [thread:$0]  %s328, 128, %s331, %s320
        $region52: #{attention_forward.1} parent=47 // pred_fallthru
          _
      $region48: #{attention_forward.1} parent=5 // pred_fallthru
        _
      %p334 = scmp.le.s32.totalorder 1, %s23
      %p335 = scmp.lt.s32.totalorder %s23, 3
      %p336 = pnand %p334, %p335
      %p337 = pneg %p336
      // Predicated region
      $region53: #{attention_forward.1} parent=5 // pred_check
        _
      $region54: #{attention_forward.1} parent=5 // pred_check_branch
        %339 = sbr.rel (%p336) target = $region56
      $region55: #{attention_forward.1} parent=5 // pred_region
        %s340 = ssub.s32 %s23, 1
        %s341 = sand.u32 %s36, 1
        %s342 = scalar_lea.sflag [#allocation3], %s341
        %s343 = sand.u32 %s36, 1
        %s344 = smul.addr %s343, 8
        %s345 = scalar_lea.vmem [#allocation2], %s344
        // Predicated region
        $region57: #{attention_forward.1} parent=55 // pred_check
          %p346 = pneg %p49
        $region58: #{attention_forward.1} parent=55 // pred_check_branch
          %348 = sbr.rel (%p346) target = $region60
        $region59: #{attention_forward.1} parent=55 // pred_region
          %349 = dma.done %s342, 128
        $region60: #{attention_forward.1} parent=55 // pred_fallthru
          _
        // Predicated region
        $region61: #{attention_forward.1} parent=55 // pred_check
          %p350 = pneg %p91
        $region62: #{attention_forward.1} parent=55 // pred_check_branch
          %352 = sbr.rel (%p350) target = $region64
        $region63: #{attention_forward.1} parent=55 // pred_region
          %353 = dma.done [#allocation6], 512
        $region64: #{attention_forward.1} parent=55 // pred_fallthru
          _
        // Predicated region
        $region65: #{attention_forward.1} parent=55 // pred_check
          %p354 = pneg %p112
        $region66: #{attention_forward.1} parent=55 // pred_check_branch
          %356 = sbr.rel (%p354) target = $region68
        $region67: #{attention_forward.1} parent=55 // pred_region
          %357 = dma.done [#allocation6], 512
        $region68: #{attention_forward.1} parent=55 // pred_fallthru
          _
        // Predicated region
        $region69: #{attention_forward.1} parent=55 // pred_check
          %p358 = pneg %p196
        $region70: #{attention_forward.1} parent=55 // pred_check_branch
          %360 = sbr.rel (%p358) target = $region72
        $region71: #{attention_forward.1} parent=55 // pred_region
          %361 = dma.done [#allocation9], 512
        $region72: #{attention_forward.1} parent=55 // pred_fallthru
          _
        %s362 = sand.u32 %s36, 1
        %s363 = scalar_lea.sflag [#allocation3], %s362
        %s364 = sand.u32 %s36, 1
        %s365 = smul.addr %s364, 8
        %s366 = scalar_lea.vmem [#allocation2], %s365
        %p367 = pneg %p49
        %p368 = pneg %p46
        %p369 = pneg %p70
        %p370 = pneg %p67
        %p371 = pneg %p91
        %p372 = pneg %p88
        %p373 = pneg %p112
        %p374 = pneg %p109
        %p375 = pneg %p133
        %p376 = pneg %p130
        %p377 = pneg %p154
        %p378 = pneg %p151
        %p379 = pneg %p175
        %p380 = pneg %p172
        %p381 = pneg %p196
        %p382 = pneg %p193
        %p383 = pneg %p217
        %p384 = pneg %p214
        %p385 = pneg %p243
        %p386 = pneg %p240
        %s387 = sand.u32 %s230, 1
        %s388 = scalar_lea.sflag [#allocation4], %s387
        %s389 = sand.u32 %s230, 1
        %s390 = smul.addr %s389, 8
        %s391 = scalar_lea.vmem [#allocation10], %s390
        %v392 = vld [vmem:[%s345] sm:$0xff]
        %v393 = vld [vmem:[%s1] sm:$0xf]
        %v394 = vld [vmem:[%s1 + $0x4] sm:$0xf]
        %v395 = vld [vmem:[%s1 + $0x8] sm:$0xf]
        %v396 = vld [vmem:[%s1 + $0xc] sm:$0xf]
        %v397 = vld [vmem:[%s1 + $0x10] sm:$0xf]
        %v398 = vld [vmem:[%s1 + $0x14] sm:$0xf]
        %v399 = vld [vmem:[%s1 + $0x18] sm:$0xf]
        %v400 = vld [vmem:[%s1 + $0x1c] sm:$0xf]
        %v401 = vld [vmem:[%s4] sm:$0x1]
        %v402 = vld [vmem:[%s4 + $0x1] sm:$0x1]
        %v403 = vld [vmem:[%s4 + $0x2] sm:$0x1]
        %v404 = vld [vmem:[%s4 + $0x3] sm:$0x1]
        %v405 = vld [vmem:[%s4 + $0x4] sm:$0x1]
        %v406 = vld [vmem:[%s4 + $0x5] sm:$0x1]
        %v407 = vld [vmem:[%s4 + $0x6] sm:$0x1]
        %v408 = vld [vmem:[%s4 + $0x7] sm:$0x1]
        %v417 = vlaneseq
        %v418 = vshrl.u32 %v417, 7
        %v419 = vsub.s32 0, %v418
        %v420 = vrot.slane %v401, %v419
        %v421 = vlaneseq
        %v422 = vshrl.u32 %v421, 7
        %v423 = vsub.s32 0, %v422
        %v424 = vrot.slane %v402, %v423
        %v425 = vlaneseq
        %v426 = vshrl.u32 %v425, 7
        %v427 = vsub.s32 0, %v426
        %v428 = vrot.slane %v403, %v427
        %v429 = vlaneseq
        %v430 = vshrl.u32 %v429, 7
        %v431 = vsub.s32 0, %v430
        %v432 = vrot.slane %v404, %v431
        %v433 = vlaneseq
        %v434 = vshrl.u32 %v433, 7
        %v435 = vsub.s32 0, %v434
        %v436 = vrot.slane %v405, %v435
        %v437 = vlaneseq
        %v438 = vshrl.u32 %v437, 7
        %v439 = vsub.s32 0, %v438
        %v440 = vrot.slane %v406, %v439
        %v441 = vlaneseq
        %v442 = vshrl.u32 %v441, 7
        %v443 = vsub.s32 0, %v442
        %v444 = vrot.slane %v407, %v443
        %v445 = vlaneseq
        %v446 = vshrl.u32 %v445, 7
        %v447 = vsub.s32 0, %v446
        %v448 = vrot.slane %v408, %v447
        %vm457 = vcmask 261120
        %v459 = vsel %vm457, %v392, 0
        %v462 = vsel %vm457, %v393, 0
        %464 = vmatprep.subr.mxu0 0.0
        %465 = vmatpush1.xpose.msra.mxu0 0.0
        %466 = vmatprep.subr.mxu0 0.0
        %467 = vmatpush1.xpose.msra.mxu0 0.0
        %468 = vmatprep.subr.mxu0 0.0
        %469 = vmatpush1.xpose.msra.mxu0 0.0
        %470 = vmatprep.subr.mxu0 0.0
        %471 = vmatpush1.xpose.msra.mxu0 0.0
        %472 = vmatprep.subr.mxu0 0.0
        %473 = vmatpush1.xpose.msra.mxu0 0.0
        %474 = vmatprep.subr.mxu0 0.0
        %475 = vmatpush1.xpose.msra.mxu0 0.0
        %476 = vmatprep.subr.mxu0 0.0
        %477 = vmatpush1.xpose.msra.mxu0 0.0
        %478 = vmatprep.subr.mxu0 0.0
        %479 = vmatpush1.xpose.msra.mxu0 0.0
        %480 = vmatprep.subr.mxu0 0.0
        %481 = vmatpush1.xpose.msra.mxu0 0.0
        %482 = vmatprep.subr.mxu0 0.0
        %483 = vmatpush1.xpose.msra.mxu0 0.0
        %484 = vmatprep.subr.mxu0 0.0
        %485 = vmatpush1.xpose.msra.mxu0 0.0
        %486 = vmatprep.subr.mxu0 0.0
        %487 = vmatpush1.xpose.msra.mxu0 0.0
        %488 = vmatprep.subr.mxu0 0.0
        %489 = vmatpush1.xpose.msra.mxu0 0.0
        %490 = vmatprep.subr.mxu0 0.0
        %491 = vmatpush1.xpose.msra.mxu0 0.0
        %492 = vmatprep.subr.mxu0 0.0
        %493 = vmatpush1.xpose.msra.mxu0 0.0
        %494 = vmatprep.subr.mxu0 0.0
        %495 = vmatpush1.xpose.msra.mxu0 %v462
        %496 = vmatprep.subr.mxu0 0.0
        %497 = vmatpush2.xpose.msra.mxu0 0.0
        %498 = vmatprep.subr.mxu0 0.0
        %499 = vmatpush2.xpose.msra.mxu0 0.0
        %500 = vmatprep.subr.mxu0 0.0
        %501 = vmatpush2.xpose.msra.mxu0 0.0
        %502 = vmatprep.subr.mxu0 0.0
        %503 = vmatpush2.xpose.msra.mxu0 0.0
        %504 = vmatprep.subr.mxu0 0.0
        %505 = vmatpush2.xpose.msra.mxu0 0.0
        %506 = vmatprep.subr.mxu0 0.0
        %507 = vmatpush2.xpose.msra.mxu0 0.0
        %508 = vmatprep.subr.mxu0 0.0
        %509 = vmatpush2.xpose.msra.mxu0 0.0
        %510 = vmatprep.subr.mxu0 0.0
        %511 = vmatpush2.xpose.msra.mxu0 0.0
        %512 = vmatprep.subr.mxu0 0.0
        %513 = vmatpush2.xpose.msra.mxu0 0.0
        %514 = vmatprep.subr.mxu0 0.0
        %515 = vmatpush2.xpose.msra.mxu0 0.0
        %516 = vmatprep.subr.mxu0 0.0
        %517 = vmatpush2.xpose.msra.mxu0 0.0
        %518 = vmatprep.subr.mxu0 0.0
        %519 = vmatpush2.xpose.msra.mxu0 0.0
        %520 = vmatprep.subr.mxu0 0.0
        %521 = vmatpush2.xpose.msra.mxu0 0.0
        %522 = vmatprep.subr.mxu0 0.0
        %523 = vmatpush2.xpose.msra.mxu0 0.0
        %524 = vmatprep.subr.mxu0 0.0
        %525 = vmatpush2.xpose.msra.mxu0 0.0
        %526 = vmatprep.subr.mxu0 0.0
        %527 = vmatpush2.xpose.msra.mxu0 0.0
        %528 = vmatprep.mubr.f32.mxu0 0.0
        %529 = vmatmul.mubr.f32.gmra.mxu0 %v459
        %v530 = vpop.f32.mrf.mxu0
        %v531 = vadd.f32 %v420, %v530
        %v532 = vpop.f32.mrf.mxu0
        %533 = vdwg.mxu0
        %v535 = vsel %vm457, %v394, 0
        %537 = vmatprep.subr.mxu0 0.0
        %538 = vmatpush1.xpose.msra.mxu0 0.0
        %539 = vmatprep.subr.mxu0 0.0
        %540 = vmatpush1.xpose.msra.mxu0 0.0
        %541 = vmatprep.subr.mxu0 0.0
        %542 = vmatpush1.xpose.msra.mxu0 0.0
        %543 = vmatprep.subr.mxu0 0.0
        %544 = vmatpush1.xpose.msra.mxu0 0.0
        %545 = vmatprep.subr.mxu0 0.0
        %546 = vmatpush1.xpose.msra.mxu0 0.0
        %547 = vmatprep.subr.mxu0 0.0
        %548 = vmatpush1.xpose.msra.mxu0 0.0
        %549 = vmatprep.subr.mxu0 0.0
        %550 = vmatpush1.xpose.msra.mxu0 0.0
        %551 = vmatprep.subr.mxu0 0.0
        %552 = vmatpush1.xpose.msra.mxu0 0.0
        %553 = vmatprep.subr.mxu0 0.0
        %554 = vmatpush1.xpose.msra.mxu0 0.0
        %555 = vmatprep.subr.mxu0 0.0
        %556 = vmatpush1.xpose.msra.mxu0 0.0
        %557 = vmatprep.subr.mxu0 0.0
        %558 = vmatpush1.xpose.msra.mxu0 0.0
        %559 = vmatprep.subr.mxu0 0.0
        %560 = vmatpush1.xpose.msra.mxu0 0.0
        %561 = vmatprep.subr.mxu0 0.0
        %562 = vmatpush1.xpose.msra.mxu0 0.0
        %563 = vmatprep.subr.mxu0 0.0
        %564 = vmatpush1.xpose.msra.mxu0 0.0
        %565 = vmatprep.subr.mxu0 0.0
        %566 = vmatpush1.xpose.msra.mxu0 0.0
        %567 = vmatprep.subr.mxu0 0.0
        %568 = vmatpush1.xpose.msra.mxu0 %v535
        %569 = vmatprep.subr.mxu0 0.0
        %570 = vmatpush2.xpose.msra.mxu0 0.0
        %571 = vmatprep.subr.mxu0 0.0
        %572 = vmatpush2.xpose.msra.mxu0 0.0
        %573 = vmatprep.subr.mxu0 0.0
        %574 = vmatpush2.xpose.msra.mxu0 0.0
        %575 = vmatprep.subr.mxu0 0.0
        %576 = vmatpush2.xpose.msra.mxu0 0.0
        %577 = vmatprep.subr.mxu0 0.0
        %578 = vmatpush2.xpose.msra.mxu0 0.0
        %579 = vmatprep.subr.mxu0 0.0
        %580 = vmatpush2.xpose.msra.mxu0 0.0
        %581 = vmatprep.subr.mxu0 0.0
        %582 = vmatpush2.xpose.msra.mxu0 0.0
        %583 = vmatprep.subr.mxu0 0.0
        %584 = vmatpush2.xpose.msra.mxu0 0.0
        %585 = vmatprep.subr.mxu0 0.0
        %586 = vmatpush2.xpose.msra.mxu0 0.0
        %587 = vmatprep.subr.mxu0 0.0
        %588 = vmatpush2.xpose.msra.mxu0 0.0
        %589 = vmatprep.subr.mxu0 0.0
        %590 = vmatpush2.xpose.msra.mxu0 0.0
        %591 = vmatprep.subr.mxu0 0.0
        %592 = vmatpush2.xpose.msra.mxu0 0.0
        %593 = vmatprep.subr.mxu0 0.0
        %594 = vmatpush2.xpose.msra.mxu0 0.0
        %595 = vmatprep.subr.mxu0 0.0
        %596 = vmatpush2.xpose.msra.mxu0 0.0
        %597 = vmatprep.subr.mxu0 0.0
        %598 = vmatpush2.xpose.msra.mxu0 0.0
        %599 = vmatprep.subr.mxu0 0.0
        %600 = vmatpush2.xpose.msra.mxu0 0.0
        %601 = vmatprep.mubr.f32.mxu0 0.0
        %602 = vmatmul.mubr.f32.gmra.mxu0 %v459
        %v603 = vpop.f32.mrf.mxu0
        %v604 = vadd.f32 %v424, %v603
        %v605 = vpop.f32.mrf.mxu0
        %606 = vdwg.mxu0
        %v608 = vsel %vm457, %v395, 0
        %610 = vmatprep.subr.mxu0 0.0
        %611 = vmatpush1.xpose.msra.mxu0 0.0
        %612 = vmatprep.subr.mxu0 0.0
        %613 = vmatpush1.xpose.msra.mxu0 0.0
        %614 = vmatprep.subr.mxu0 0.0
        %615 = vmatpush1.xpose.msra.mxu0 0.0
        %616 = vmatprep.subr.mxu0 0.0
        %617 = vmatpush1.xpose.msra.mxu0 0.0
        %618 = vmatprep.subr.mxu0 0.0
        %619 = vmatpush1.xpose.msra.mxu0 0.0
        %620 = vmatprep.subr.mxu0 0.0
        %621 = vmatpush1.xpose.msra.mxu0 0.0
        %622 = vmatprep.subr.mxu0 0.0
        %623 = vmatpush1.xpose.msra.mxu0 0.0
        %624 = vmatprep.subr.mxu0 0.0
        %625 = vmatpush1.xpose.msra.mxu0 0.0
        %626 = vmatprep.subr.mxu0 0.0
        %627 = vmatpush1.xpose.msra.mxu0 0.0
        %628 = vmatprep.subr.mxu0 0.0
        %629 = vmatpush1.xpose.msra.mxu0 0.0
        %630 = vmatprep.subr.mxu0 0.0
        %631 = vmatpush1.xpose.msra.mxu0 0.0
        %632 = vmatprep.subr.mxu0 0.0
        %633 = vmatpush1.xpose.msra.mxu0 0.0
        %634 = vmatprep.subr.mxu0 0.0
        %635 = vmatpush1.xpose.msra.mxu0 0.0
        %636 = vmatprep.subr.mxu0 0.0
        %637 = vmatpush1.xpose.msra.mxu0 0.0
        %638 = vmatprep.subr.mxu0 0.0
        %639 = vmatpush1.xpose.msra.mxu0 0.0
        %640 = vmatprep.subr.mxu0 0.0
        %641 = vmatpush1.xpose.msra.mxu0 %v608
        %642 = vmatprep.subr.mxu0 0.0
        %643 = vmatpush2.xpose.msra.mxu0 0.0
        %644 = vmatprep.subr.mxu0 0.0
        %645 = vmatpush2.xpose.msra.mxu0 0.0
        %646 = vmatprep.subr.mxu0 0.0
        %647 = vmatpush2.xpose.msra.mxu0 0.0
        %648 = vmatprep.subr.mxu0 0.0
        %649 = vmatpush2.xpose.msra.mxu0 0.0
        %650 = vmatprep.subr.mxu0 0.0
        %651 = vmatpush2.xpose.msra.mxu0 0.0
        %652 = vmatprep.subr.mxu0 0.0
        %653 = vmatpush2.xpose.msra.mxu0 0.0
        %654 = vmatprep.subr.mxu0 0.0
        %655 = vmatpush2.xpose.msra.mxu0 0.0
        %656 = vmatprep.subr.mxu0 0.0
        %657 = vmatpush2.xpose.msra.mxu0 0.0
        %658 = vmatprep.subr.mxu0 0.0
        %659 = vmatpush2.xpose.msra.mxu0 0.0
        %660 = vmatprep.subr.mxu0 0.0
        %661 = vmatpush2.xpose.msra.mxu0 0.0
        %662 = vmatprep.subr.mxu0 0.0
        %663 = vmatpush2.xpose.msra.mxu0 0.0
        %664 = vmatprep.subr.mxu0 0.0
        %665 = vmatpush2.xpose.msra.mxu0 0.0
        %666 = vmatprep.subr.mxu0 0.0
        %667 = vmatpush2.xpose.msra.mxu0 0.0
        %668 = vmatprep.subr.mxu0 0.0
        %669 = vmatpush2.xpose.msra.mxu0 0.0
        %670 = vmatprep.subr.mxu0 0.0
        %671 = vmatpush2.xpose.msra.mxu0 0.0
        %672 = vmatprep.subr.mxu0 0.0
        %673 = vmatpush2.xpose.msra.mxu0 0.0
        %674 = vmatprep.mubr.f32.mxu0 0.0
        %675 = vmatmul.mubr.f32.gmra.mxu0 %v459
        %v676 = vpop.f32.mrf.mxu0
        %v677 = vadd.f32 %v428, %v676
        %v678 = vpop.f32.mrf.mxu0
        %679 = vdwg.mxu0
        %v681 = vsel %vm457, %v396, 0
        %683 = vmatprep.subr.mxu0 0.0
        %684 = vmatpush1.xpose.msra.mxu0 0.0
        %685 = vmatprep.subr.mxu0 0.0
        %686 = vmatpush1.xpose.msra.mxu0 0.0
        %687 = vmatprep.subr.mxu0 0.0
        %688 = vmatpush1.xpose.msra.mxu0 0.0
        %689 = vmatprep.subr.mxu0 0.0
        %690 = vmatpush1.xpose.msra.mxu0 0.0
        %691 = vmatprep.subr.mxu0 0.0
        %692 = vmatpush1.xpose.msra.mxu0 0.0
        %693 = vmatprep.subr.mxu0 0.0
        %694 = vmatpush1.xpose.msra.mxu0 0.0
        %695 = vmatprep.subr.mxu0 0.0
        %696 = vmatpush1.xpose.msra.mxu0 0.0
        %697 = vmatprep.subr.mxu0 0.0
        %698 = vmatpush1.xpose.msra.mxu0 0.0
        %699 = vmatprep.subr.mxu0 0.0
        %700 = vmatpush1.xpose.msra.mxu0 0.0
        %701 = vmatprep.subr.mxu0 0.0
        %702 = vmatpush1.xpose.msra.mxu0 0.0
        %703 = vmatprep.subr.mxu0 0.0
        %704 = vmatpush1.xpose.msra.mxu0 0.0
        %705 = vmatprep.subr.mxu0 0.0
        %706 = vmatpush1.xpose.msra.mxu0 0.0
        %707 = vmatprep.subr.mxu0 0.0
        %708 = vmatpush1.xpose.msra.mxu0 0.0
        %709 = vmatprep.subr.mxu0 0.0
        %710 = vmatpush1.xpose.msra.mxu0 0.0
        %711 = vmatprep.subr.mxu0 0.0
        %712 = vmatpush1.xpose.msra.mxu0 0.0
        %713 = vmatprep.subr.mxu0 0.0
        %714 = vmatpush1.xpose.msra.mxu0 %v681
        %715 = vmatprep.subr.mxu0 0.0
        %716 = vmatpush2.xpose.msra.mxu0 0.0
        %717 = vmatprep.subr.mxu0 0.0
        %718 = vmatpush2.xpose.msra.mxu0 0.0
        %719 = vmatprep.subr.mxu0 0.0
        %720 = vmatpush2.xpose.msra.mxu0 0.0
        %721 = vmatprep.subr.mxu0 0.0
        %722 = vmatpush2.xpose.msra.mxu0 0.0
        %723 = vmatprep.subr.mxu0 0.0
        %724 = vmatpush2.xpose.msra.mxu0 0.0
        %725 = vmatprep.subr.mxu0 0.0
        %726 = vmatpush2.xpose.msra.mxu0 0.0
        %727 = vmatprep.subr.mxu0 0.0
        %728 = vmatpush2.xpose.msra.mxu0 0.0
        %729 = vmatprep.subr.mxu0 0.0
        %730 = vmatpush2.xpose.msra.mxu0 0.0
        %731 = vmatprep.subr.mxu0 0.0
        %732 = vmatpush2.xpose.msra.mxu0 0.0
        %733 = vmatprep.subr.mxu0 0.0
        %734 = vmatpush2.xpose.msra.mxu0 0.0
        %735 = vmatprep.subr.mxu0 0.0
        %736 = vmatpush2.xpose.msra.mxu0 0.0
        %737 = vmatprep.subr.mxu0 0.0
        %738 = vmatpush2.xpose.msra.mxu0 0.0
        %739 = vmatprep.subr.mxu0 0.0
        %740 = vmatpush2.xpose.msra.mxu0 0.0
        %741 = vmatprep.subr.mxu0 0.0
        %742 = vmatpush2.xpose.msra.mxu0 0.0
        %743 = vmatprep.subr.mxu0 0.0
        %744 = vmatpush2.xpose.msra.mxu0 0.0
        %745 = vmatprep.subr.mxu0 0.0
        %746 = vmatpush2.xpose.msra.mxu0 0.0
        %747 = vmatprep.mubr.f32.mxu0 0.0
        %748 = vmatmul.mubr.f32.gmra.mxu0 %v459
        %v749 = vpop.f32.mrf.mxu0
        %v750 = vadd.f32 %v432, %v749
        %v751 = vpop.f32.mrf.mxu0
        %752 = vdwg.mxu0
        %v754 = vsel %vm457, %v397, 0
        %756 = vmatprep.subr.mxu0 0.0
        %757 = vmatpush1.xpose.msra.mxu0 0.0
        %758 = vmatprep.subr.mxu0 0.0
        %759 = vmatpush1.xpose.msra.mxu0 0.0
        %760 = vmatprep.subr.mxu0 0.0
        %761 = vmatpush1.xpose.msra.mxu0 0.0
        %762 = vmatprep.subr.mxu0 0.0
        %763 = vmatpush1.xpose.msra.mxu0 0.0
        %764 = vmatprep.subr.mxu0 0.0
        %765 = vmatpush1.xpose.msra.mxu0 0.0
        %766 = vmatprep.subr.mxu0 0.0
        %767 = vmatpush1.xpose.msra.mxu0 0.0
        %768 = vmatprep.subr.mxu0 0.0
        %769 = vmatpush1.xpose.msra.mxu0 0.0
        %770 = vmatprep.subr.mxu0 0.0
        %771 = vmatpush1.xpose.msra.mxu0 0.0
        %772 = vmatprep.subr.mxu0 0.0
        %773 = vmatpush1.xpose.msra.mxu0 0.0
        %774 = vmatprep.subr.mxu0 0.0
        %775 = vmatpush1.xpose.msra.mxu0 0.0
        %776 = vmatprep.subr.mxu0 0.0
        %777 = vmatpush1.xpose.msra.mxu0 0.0
        %778 = vmatprep.subr.mxu0 0.0
        %779 = vmatpush1.xpose.msra.mxu0 0.0
        %780 = vmatprep.subr.mxu0 0.0
        %781 = vmatpush1.xpose.msra.mxu0 0.0
        %782 = vmatprep.subr.mxu0 0.0
        %783 = vmatpush1.xpose.msra.mxu0 0.0
        %784 = vmatprep.subr.mxu0 0.0
        %785 = vmatpush1.xpose.msra.mxu0 0.0
        %786 = vmatprep.subr.mxu0 0.0
        %787 = vmatpush1.xpose.msra.mxu0 %v754
        %788 = vmatprep.subr.mxu0 0.0
        %789 = vmatpush2.xpose.msra.mxu0 0.0
        %790 = vmatprep.subr.mxu0 0.0
        %791 = vmatpush2.xpose.msra.mxu0 0.0
        %792 = vmatprep.subr.mxu0 0.0
        %793 = vmatpush2.xpose.msra.mxu0 0.0
        %794 = vmatprep.subr.mxu0 0.0
        %795 = vmatpush2.xpose.msra.mxu0 0.0
        %796 = vmatprep.subr.mxu0 0.0
        %797 = vmatpush2.xpose.msra.mxu0 0.0
        %798 = vmatprep.subr.mxu0 0.0
        %799 = vmatpush2.xpose.msra.mxu0 0.0
        %800 = vmatprep.subr.mxu0 0.0
        %801 = vmatpush2.xpose.msra.mxu0 0.0
        %802 = vmatprep.subr.mxu0 0.0
        %803 = vmatpush2.xpose.msra.mxu0 0.0
        %804 = vmatprep.subr.mxu0 0.0
        %805 = vmatpush2.xpose.msra.mxu0 0.0
        %806 = vmatprep.subr.mxu0 0.0
        %807 = vmatpush2.xpose.msra.mxu0 0.0
        %808 = vmatprep.subr.mxu0 0.0
        %809 = vmatpush2.xpose.msra.mxu0 0.0
        %810 = vmatprep.subr.mxu0 0.0
        %811 = vmatpush2.xpose.msra.mxu0 0.0
        %812 = vmatprep.subr.mxu0 0.0
        %813 = vmatpush2.xpose.msra.mxu0 0.0
        %814 = vmatprep.subr.mxu0 0.0
        %815 = vmatpush2.xpose.msra.mxu0 0.0
        %816 = vmatprep.subr.mxu0 0.0
        %817 = vmatpush2.xpose.msra.mxu0 0.0
        %818 = vmatprep.subr.mxu0 0.0
        %819 = vmatpush2.xpose.msra.mxu0 0.0
        %820 = vmatprep.mubr.f32.mxu0 0.0
        %821 = vmatmul.mubr.f32.gmra.mxu0 %v459
        %v822 = vpop.f32.mrf.mxu0
        %v823 = vadd.f32 %v436, %v822
        %v824 = vpop.f32.mrf.mxu0
        %825 = vdwg.mxu0
        %v827 = vsel %vm457, %v398, 0
        %829 = vmatprep.subr.mxu0 0.0
        %830 = vmatpush1.xpose.msra.mxu0 0.0
        %831 = vmatprep.subr.mxu0 0.0
        %832 = vmatpush1.xpose.msra.mxu0 0.0
        %833 = vmatprep.subr.mxu0 0.0
        %834 = vmatpush1.xpose.msra.mxu0 0.0
        %835 = vmatprep.subr.mxu0 0.0
        %836 = vmatpush1.xpose.msra.mxu0 0.0
        %837 = vmatprep.subr.mxu0 0.0
        %838 = vmatpush1.xpose.msra.mxu0 0.0
        %839 = vmatprep.subr.mxu0 0.0
        %840 = vmatpush1.xpose.msra.mxu0 0.0
        %841 = vmatprep.subr.mxu0 0.0
        %842 = vmatpush1.xpose.msra.mxu0 0.0
        %843 = vmatprep.subr.mxu0 0.0
        %844 = vmatpush1.xpose.msra.mxu0 0.0
        %845 = vmatprep.subr.mxu0 0.0
        %846 = vmatpush1.xpose.msra.mxu0 0.0
        %847 = vmatprep.subr.mxu0 0.0
        %848 = vmatpush1.xpose.msra.mxu0 0.0
        %849 = vmatprep.subr.mxu0 0.0
        %850 = vmatpush1.xpose.msra.mxu0 0.0
        %851 = vmatprep.subr.mxu0 0.0
        %852 = vmatpush1.xpose.msra.mxu0 0.0
        %853 = vmatprep.subr.mxu0 0.0
        %854 = vmatpush1.xpose.msra.mxu0 0.0
        %855 = vmatprep.subr.mxu0 0.0
        %856 = vmatpush1.xpose.msra.mxu0 0.0
        %857 = vmatprep.subr.mxu0 0.0
        %858 = vmatpush1.xpose.msra.mxu0 0.0
        %859 = vmatprep.subr.mxu0 0.0
        %860 = vmatpush1.xpose.msra.mxu0 %v827
        %861 = vmatprep.subr.mxu0 0.0
        %862 = vmatpush2.xpose.msra.mxu0 0.0
        %863 = vmatprep.subr.mxu0 0.0
        %864 = vmatpush2.xpose.msra.mxu0 0.0
        %865 = vmatprep.subr.mxu0 0.0
        %866 = vmatpush2.xpose.msra.mxu0 0.0
        %867 = vmatprep.subr.mxu0 0.0
        %868 = vmatpush2.xpose.msra.mxu0 0.0
        %869 = vmatprep.subr.mxu0 0.0
        %870 = vmatpush2.xpose.msra.mxu0 0.0
        %871 = vmatprep.subr.mxu0 0.0
        %872 = vmatpush2.xpose.msra.mxu0 0.0
        %873 = vmatprep.subr.mxu0 0.0
        %874 = vmatpush2.xpose.msra.mxu0 0.0
        %875 = vmatprep.subr.mxu0 0.0
        %876 = vmatpush2.xpose.msra.mxu0 0.0
        %877 = vmatprep.subr.mxu0 0.0
        %878 = vmatpush2.xpose.msra.mxu0 0.0
        %879 = vmatprep.subr.mxu0 0.0
        %880 = vmatpush2.xpose.msra.mxu0 0.0
        %881 = vmatprep.subr.mxu0 0.0
        %882 = vmatpush2.xpose.msra.mxu0 0.0
        %883 = vmatprep.subr.mxu0 0.0
        %884 = vmatpush2.xpose.msra.mxu0 0.0
        %885 = vmatprep.subr.mxu0 0.0
        %886 = vmatpush2.xpose.msra.mxu0 0.0
        %887 = vmatprep.subr.mxu0 0.0
        %888 = vmatpush2.xpose.msra.mxu0 0.0
        %889 = vmatprep.subr.mxu0 0.0
        %890 = vmatpush2.xpose.msra.mxu0 0.0
        %891 = vmatprep.subr.mxu0 0.0
        %892 = vmatpush2.xpose.msra.mxu0 0.0
        %893 = vmatprep.mubr.f32.mxu0 0.0
        %894 = vmatmul.mubr.f32.gmra.mxu0 %v459
        %v895 = vpop.f32.mrf.mxu0
        %v896 = vadd.f32 %v440, %v895
        %v897 = vpop.f32.mrf.mxu0
        %898 = vdwg.mxu0
        %v900 = vsel %vm457, %v399, 0
        %902 = vmatprep.subr.mxu0 0.0
        %903 = vmatpush1.xpose.msra.mxu0 0.0
        %904 = vmatprep.subr.mxu0 0.0
        %905 = vmatpush1.xpose.msra.mxu0 0.0
        %906 = vmatprep.subr.mxu0 0.0
        %907 = vmatpush1.xpose.msra.mxu0 0.0
        %908 = vmatprep.subr.mxu0 0.0
        %909 = vmatpush1.xpose.msra.mxu0 0.0
        %910 = vmatprep.subr.mxu0 0.0
        %911 = vmatpush1.xpose.msra.mxu0 0.0
        %912 = vmatprep.subr.mxu0 0.0
        %913 = vmatpush1.xpose.msra.mxu0 0.0
        %914 = vmatprep.subr.mxu0 0.0
        %915 = vmatpush1.xpose.msra.mxu0 0.0
        %916 = vmatprep.subr.mxu0 0.0
        %917 = vmatpush1.xpose.msra.mxu0 0.0
        %918 = vmatprep.subr.mxu0 0.0
        %919 = vmatpush1.xpose.msra.mxu0 0.0
        %920 = vmatprep.subr.mxu0 0.0
        %921 = vmatpush1.xpose.msra.mxu0 0.0
        %922 = vmatprep.subr.mxu0 0.0
        %923 = vmatpush1.xpose.msra.mxu0 0.0
        %924 = vmatprep.subr.mxu0 0.0
        %925 = vmatpush1.xpose.msra.mxu0 0.0
        %926 = vmatprep.subr.mxu0 0.0
        %927 = vmatpush1.xpose.msra.mxu0 0.0
        %928 = vmatprep.subr.mxu0 0.0
        %929 = vmatpush1.xpose.msra.mxu0 0.0
        %930 = vmatprep.subr.mxu0 0.0
        %931 = vmatpush1.xpose.msra.mxu0 0.0
        %932 = vmatprep.subr.mxu0 0.0
        %933 = vmatpush1.xpose.msra.mxu0 %v900
        %934 = vmatprep.subr.mxu0 0.0
        %935 = vmatpush2.xpose.msra.mxu0 0.0
        %936 = vmatprep.subr.mxu0 0.0
        %937 = vmatpush2.xpose.msra.mxu0 0.0
        %938 = vmatprep.subr.mxu0 0.0
        %939 = vmatpush2.xpose.msra.mxu0 0.0
        %940 = vmatprep.subr.mxu0 0.0
        %941 = vmatpush2.xpose.msra.mxu0 0.0
        %942 = vmatprep.subr.mxu0 0.0
        %943 = vmatpush2.xpose.msra.mxu0 0.0
        %944 = vmatprep.subr.mxu0 0.0
        %945 = vmatpush2.xpose.msra.mxu0 0.0
        %946 = vmatprep.subr.mxu0 0.0
        %947 = vmatpush2.xpose.msra.mxu0 0.0
        %948 = vmatprep.subr.mxu0 0.0
        %949 = vmatpush2.xpose.msra.mxu0 0.0
        %950 = vmatprep.subr.mxu0 0.0
        %951 = vmatpush2.xpose.msra.mxu0 0.0
        %952 = vmatprep.subr.mxu0 0.0
        %953 = vmatpush2.xpose.msra.mxu0 0.0
        %954 = vmatprep.subr.mxu0 0.0
        %955 = vmatpush2.xpose.msra.mxu0 0.0
        %956 = vmatprep.subr.mxu0 0.0
        %957 = vmatpush2.xpose.msra.mxu0 0.0
        %958 = vmatprep.subr.mxu0 0.0
        %959 = vmatpush2.xpose.msra.mxu0 0.0
        %960 = vmatprep.subr.mxu0 0.0
        %961 = vmatpush2.xpose.msra.mxu0 0.0
        %962 = vmatprep.subr.mxu0 0.0
        %963 = vmatpush2.xpose.msra.mxu0 0.0
        %964 = vmatprep.subr.mxu0 0.0
        %965 = vmatpush2.xpose.msra.mxu0 0.0
        %966 = vmatprep.mubr.f32.mxu0 0.0
        %967 = vmatmul.mubr.f32.gmra.mxu0 %v459
        %v968 = vpop.f32.mrf.mxu0
        %v969 = vadd.f32 %v444, %v968
        %v970 = vpop.f32.mrf.mxu0
        %971 = vdwg.mxu0
        %v973 = vsel %vm457, %v400, 0
        %975 = vmatprep.subr.mxu0 0.0
        %976 = vmatpush1.xpose.msra.mxu0 0.0
        %977 = vmatprep.subr.mxu0 0.0
        %978 = vmatpush1.xpose.msra.mxu0 0.0
        %979 = vmatprep.subr.mxu0 0.0
        %980 = vmatpush1.xpose.msra.mxu0 0.0
        %981 = vmatprep.subr.mxu0 0.0
        %982 = vmatpush1.xpose.msra.mxu0 0.0
        %983 = vmatprep.subr.mxu0 0.0
        %984 = vmatpush1.xpose.msra.mxu0 0.0
        %985 = vmatprep.subr.mxu0 0.0
        %986 = vmatpush1.xpose.msra.mxu0 0.0
        %987 = vmatprep.subr.mxu0 0.0
        %988 = vmatpush1.xpose.msra.mxu0 0.0
        %989 = vmatprep.subr.mxu0 0.0
        %990 = vmatpush1.xpose.msra.mxu0 0.0
        %991 = vmatprep.subr.mxu0 0.0
        %992 = vmatpush1.xpose.msra.mxu0 0.0
        %993 = vmatprep.subr.mxu0 0.0
        %994 = vmatpush1.xpose.msra.mxu0 0.0
        %995 = vmatprep.subr.mxu0 0.0
        %996 = vmatpush1.xpose.msra.mxu0 0.0
        %997 = vmatprep.subr.mxu0 0.0
        %998 = vmatpush1.xpose.msra.mxu0 0.0
        %999 = vmatprep.subr.mxu0 0.0
        %1000 = vmatpush1.xpose.msra.mxu0 0.0
        %1001 = vmatprep.subr.mxu0 0.0
        %1002 = vmatpush1.xpose.msra.mxu0 0.0
        %1003 = vmatprep.subr.mxu0 0.0
        %1004 = vmatpush1.xpose.msra.mxu0 0.0
        %1005 = vmatprep.subr.mxu0 0.0
        %1006 = vmatpush1.xpose.msra.mxu0 %v973
        %1007 = vmatprep.subr.mxu0 0.0
        %1008 = vmatpush2.xpose.msra.mxu0 0.0
        %1009 = vmatprep.subr.mxu0 0.0
        %1010 = vmatpush2.xpose.msra.mxu0 0.0
        %1011 = vmatprep.subr.mxu0 0.0
        %1012 = vmatpush2.xpose.msra.mxu0 0.0
        %1013 = vmatprep.subr.mxu0 0.0
        %1014 = vmatpush2.xpose.msra.mxu0 0.0
        %1015 = vmatprep.subr.mxu0 0.0
        %1016 = vmatpush2.xpose.msra.mxu0 0.0
        %1017 = vmatprep.subr.mxu0 0.0
        %1018 = vmatpush2.xpose.msra.mxu0 0.0
        %1019 = vmatprep.subr.mxu0 0.0
        %1020 = vmatpush2.xpose.msra.mxu0 0.0
        %1021 = vmatprep.subr.mxu0 0.0
        %1022 = vmatpush2.xpose.msra.mxu0 0.0
        %1023 = vmatprep.subr.mxu0 0.0
        %1024 = vmatpush2.xpose.msra.mxu0 0.0
        %1025 = vmatprep.subr.mxu0 0.0
        %1026 = vmatpush2.xpose.msra.mxu0 0.0
        %1027 = vmatprep.subr.mxu0 0.0
        %1028 = vmatpush2.xpose.msra.mxu0 0.0
        %1029 = vmatprep.subr.mxu0 0.0
        %1030 = vmatpush2.xpose.msra.mxu0 0.0
        %1031 = vmatprep.subr.mxu0 0.0
        %1032 = vmatpush2.xpose.msra.mxu0 0.0
        %1033 = vmatprep.subr.mxu0 0.0
        %1034 = vmatpush2.xpose.msra.mxu0 0.0
        %1035 = vmatprep.subr.mxu0 0.0
        %1036 = vmatpush2.xpose.msra.mxu0 0.0
        %1037 = vmatprep.subr.mxu0 0.0
        %1038 = vmatpush2.xpose.msra.mxu0 0.0
        %1039 = vmatprep.mubr.f32.mxu0 0.0
        %1040 = vmatmul.mubr.f32.gmra.mxu0 %v459
        %v1041 = vpop.f32.mrf.mxu0
        %v1042 = vadd.f32 %v448, %v1041
        %v1043 = vpop.f32.mrf.mxu0
        %1044 = vdwg.mxu0
        %v1045 = vld [vmem:[#allocation5] sm:$0xf]
        %v1046 = vld [vmem:[#allocation5 + $0x4] sm:$0xf]
        %v1047 = vld [vmem:[#allocation5 + $0x8] sm:$0xf]
        %v1048 = vld [vmem:[#allocation5 + $0xc] sm:$0xf]
        %v1049 = vld [vmem:[#allocation5 + $0x10] sm:$0xf]
        %v1050 = vld [vmem:[#allocation5 + $0x14] sm:$0xf]
        %v1051 = vld [vmem:[#allocation5 + $0x18] sm:$0xf]
        %v1052 = vld [vmem:[#allocation5 + $0x1c] sm:$0xf]
        %v1053 = vld [vmem:[%s5] sm:$0x1]
        %v1054 = vld [vmem:[%s5 + $0x1] sm:$0x1]
        %v1055 = vld [vmem:[%s5 + $0x2] sm:$0x1]
        %v1056 = vld [vmem:[%s5 + $0x3] sm:$0x1]
        %v1057 = vld [vmem:[%s5 + $0x4] sm:$0x1]
        %v1058 = vld [vmem:[%s5 + $0x5] sm:$0x1]
        %v1059 = vld [vmem:[%s5 + $0x6] sm:$0x1]
        %v1060 = vld [vmem:[%s5 + $0x7] sm:$0x1]
        %v1069 = vlaneseq
        %v1070 = vshrl.u32 %v1069, 7
        %v1071 = vsub.s32 0, %v1070
        %v1072 = vrot.slane %v1053, %v1071
        %v1073 = vlaneseq
        %v1074 = vshrl.u32 %v1073, 7
        %v1075 = vsub.s32 0, %v1074
        %v1076 = vrot.slane %v1054, %v1075
        %v1077 = vlaneseq
        %v1078 = vshrl.u32 %v1077, 7
        %v1079 = vsub.s32 0, %v1078
        %v1080 = vrot.slane %v1055, %v1079
        %v1081 = vlaneseq
        %v1082 = vshrl.u32 %v1081, 7
        %v1083 = vsub.s32 0, %v1082
        %v1084 = vrot.slane %v1056, %v1083
        %v1085 = vlaneseq
        %v1086 = vshrl.u32 %v1085, 7
        %v1087 = vsub.s32 0, %v1086
        %v1088 = vrot.slane %v1057, %v1087
        %v1089 = vlaneseq
        %v1090 = vshrl.u32 %v1089, 7
        %v1091 = vsub.s32 0, %v1090
        %v1092 = vrot.slane %v1058, %v1091
        %v1093 = vlaneseq
        %v1094 = vshrl.u32 %v1093, 7
        %v1095 = vsub.s32 0, %v1094
        %v1096 = vrot.slane %v1059, %v1095
        %v1097 = vlaneseq
        %v1098 = vshrl.u32 %v1097, 7
        %v1099 = vsub.s32 0, %v1098
        %v1100 = vrot.slane %v1060, %v1099
        %v1110 = vsel %vm457, %v1045, 0
        %1112 = vmatprep.subr.mxu0 0.0
        %1113 = vmatpush1.xpose.msra.mxu0 0.0
        %1114 = vmatprep.subr.mxu0 0.0
        %1115 = vmatpush1.xpose.msra.mxu0 0.0
        %1116 = vmatprep.subr.mxu0 0.0
        %1117 = vmatpush1.xpose.msra.mxu0 0.0
        %1118 = vmatprep.subr.mxu0 0.0
        %1119 = vmatpush1.xpose.msra.mxu0 0.0
        %1120 = vmatprep.subr.mxu0 0.0
        %1121 = vmatpush1.xpose.msra.mxu0 0.0
        %1122 = vmatprep.subr.mxu0 0.0
        %1123 = vmatpush1.xpose.msra.mxu0 0.0
        %1124 = vmatprep.subr.mxu0 0.0
        %1125 = vmatpush1.xpose.msra.mxu0 0.0
        %1126 = vmatprep.subr.mxu0 0.0
        %1127 = vmatpush1.xpose.msra.mxu0 0.0
        %1128 = vmatprep.subr.mxu0 0.0
        %1129 = vmatpush1.xpose.msra.mxu0 0.0
        %1130 = vmatprep.subr.mxu0 0.0
        %1131 = vmatpush1.xpose.msra.mxu0 0.0
        %1132 = vmatprep.subr.mxu0 0.0
        %1133 = vmatpush1.xpose.msra.mxu0 0.0
        %1134 = vmatprep.subr.mxu0 0.0
        %1135 = vmatpush1.xpose.msra.mxu0 0.0
        %1136 = vmatprep.subr.mxu0 0.0
        %1137 = vmatpush1.xpose.msra.mxu0 0.0
        %1138 = vmatprep.subr.mxu0 0.0
        %1139 = vmatpush1.xpose.msra.mxu0 0.0
        %1140 = vmatprep.subr.mxu0 0.0
        %1141 = vmatpush1.xpose.msra.mxu0 0.0
        %1142 = vmatprep.subr.mxu0 0.0
        %1143 = vmatpush1.xpose.msra.mxu0 %v1110
        %1144 = vmatprep.subr.mxu0 0.0
        %1145 = vmatpush2.xpose.msra.mxu0 0.0
        %1146 = vmatprep.subr.mxu0 0.0
        %1147 = vmatpush2.xpose.msra.mxu0 0.0
        %1148 = vmatprep.subr.mxu0 0.0
        %1149 = vmatpush2.xpose.msra.mxu0 0.0
        %1150 = vmatprep.subr.mxu0 0.0
        %1151 = vmatpush2.xpose.msra.mxu0 0.0
        %1152 = vmatprep.subr.mxu0 0.0
        %1153 = vmatpush2.xpose.msra.mxu0 0.0
        %1154 = vmatprep.subr.mxu0 0.0
        %1155 = vmatpush2.xpose.msra.mxu0 0.0
        %1156 = vmatprep.subr.mxu0 0.0
        %1157 = vmatpush2.xpose.msra.mxu0 0.0
        %1158 = vmatprep.subr.mxu0 0.0
        %1159 = vmatpush2.xpose.msra.mxu0 0.0
        %1160 = vmatprep.subr.mxu0 0.0
        %1161 = vmatpush2.xpose.msra.mxu0 0.0
        %1162 = vmatprep.subr.mxu0 0.0
        %1163 = vmatpush2.xpose.msra.mxu0 0.0
        %1164 = vmatprep.subr.mxu0 0.0
        %1165 = vmatpush2.xpose.msra.mxu0 0.0
        %1166 = vmatprep.subr.mxu0 0.0
        %1167 = vmatpush2.xpose.msra.mxu0 0.0
        %1168 = vmatprep.subr.mxu0 0.0
        %1169 = vmatpush2.xpose.msra.mxu0 0.0
        %1170 = vmatprep.subr.mxu0 0.0
        %1171 = vmatpush2.xpose.msra.mxu0 0.0
        %1172 = vmatprep.subr.mxu0 0.0
        %1173 = vmatpush2.xpose.msra.mxu0 0.0
        %1174 = vmatprep.subr.mxu0 0.0
        %1175 = vmatpush2.xpose.msra.mxu0 0.0
        %1176 = vmatprep.mubr.f32.mxu0 0.0
        %1177 = vmatmul.mubr.f32.gmra.mxu0 %v459
        %v1178 = vpop.f32.mrf.mxu0
        %v1179 = vadd.f32 %v1072, %v1178
        %v1180 = vpop.f32.mrf.mxu0
        %1181 = vdwg.mxu0
        %v1183 = vsel %vm457, %v1046, 0
        %1185 = vmatprep.subr.mxu0 0.0
        %1186 = vmatpush1.xpose.msra.mxu0 0.0
        %1187 = vmatprep.subr.mxu0 0.0
        %1188 = vmatpush1.xpose.msra.mxu0 0.0
        %1189 = vmatprep.subr.mxu0 0.0
        %1190 = vmatpush1.xpose.msra.mxu0 0.0
        %1191 = vmatprep.subr.mxu0 0.0
        %1192 = vmatpush1.xpose.msra.mxu0 0.0
        %1193 = vmatprep.subr.mxu0 0.0
        %1194 = vmatpush1.xpose.msra.mxu0 0.0
        %1195 = vmatprep.subr.mxu0 0.0
        %1196 = vmatpush1.xpose.msra.mxu0 0.0
        %1197 = vmatprep.subr.mxu0 0.0
        %1198 = vmatpush1.xpose.msra.mxu0 0.0
        %1199 = vmatprep.subr.mxu0 0.0
        %1200 = vmatpush1.xpose.msra.mxu0 0.0
        %1201 = vmatprep.subr.mxu0 0.0
        %1202 = vmatpush1.xpose.msra.mxu0 0.0
        %1203 = vmatprep.subr.mxu0 0.0
        %1204 = vmatpush1.xpose.msra.mxu0 0.0
        %1205 = vmatprep.subr.mxu0 0.0
        %1206 = vmatpush1.xpose.msra.mxu0 0.0
        %1207 = vmatprep.subr.mxu0 0.0
        %1208 = vmatpush1.xpose.msra.mxu0 0.0
        %1209 = vmatprep.subr.mxu0 0.0
        %1210 = vmatpush1.xpose.msra.mxu0 0.0
        %1211 = vmatprep.subr.mxu0 0.0
        %1212 = vmatpush1.xpose.msra.mxu0 0.0
        %1213 = vmatprep.subr.mxu0 0.0
        %1214 = vmatpush1.xpose.msra.mxu0 0.0
        %1215 = vmatprep.subr.mxu0 0.0
        %1216 = vmatpush1.xpose.msra.mxu0 %v1183
        %1217 = vmatprep.subr.mxu0 0.0
        %1218 = vmatpush2.xpose.msra.mxu0 0.0
        %1219 = vmatprep.subr.mxu0 0.0
        %1220 = vmatpush2.xpose.msra.mxu0 0.0
        %1221 = vmatprep.subr.mxu0 0.0
        %1222 = vmatpush2.xpose.msra.mxu0 0.0
        %1223 = vmatprep.subr.mxu0 0.0
        %1224 = vmatpush2.xpose.msra.mxu0 0.0
        %1225 = vmatprep.subr.mxu0 0.0
        %1226 = vmatpush2.xpose.msra.mxu0 0.0
        %1227 = vmatprep.subr.mxu0 0.0
        %1228 = vmatpush2.xpose.msra.mxu0 0.0
        %1229 = vmatprep.subr.mxu0 0.0
        %1230 = vmatpush2.xpose.msra.mxu0 0.0
        %1231 = vmatprep.subr.mxu0 0.0
        %1232 = vmatpush2.xpose.msra.mxu0 0.0
        %1233 = vmatprep.subr.mxu0 0.0
        %1234 = vmatpush2.xpose.msra.mxu0 0.0
        %1235 = vmatprep.subr.mxu0 0.0
        %1236 = vmatpush2.xpose.msra.mxu0 0.0
        %1237 = vmatprep.subr.mxu0 0.0
        %1238 = vmatpush2.xpose.msra.mxu0 0.0
        %1239 = vmatprep.subr.mxu0 0.0
        %1240 = vmatpush2.xpose.msra.mxu0 0.0
        %1241 = vmatprep.subr.mxu0 0.0
        %1242 = vmatpush2.xpose.msra.mxu0 0.0
        %1243 = vmatprep.subr.mxu0 0.0
        %1244 = vmatpush2.xpose.msra.mxu0 0.0
        %1245 = vmatprep.subr.mxu0 0.0
        %1246 = vmatpush2.xpose.msra.mxu0 0.0
        %1247 = vmatprep.subr.mxu0 0.0
        %1248 = vmatpush2.xpose.msra.mxu0 0.0
        %1249 = vmatprep.mubr.f32.mxu0 0.0
        %1250 = vmatmul.mubr.f32.gmra.mxu0 %v459
        %v1251 = vpop.f32.mrf.mxu0
        %v1252 = vadd.f32 %v1076, %v1251
        %v1253 = vpop.f32.mrf.mxu0
        %1254 = vdwg.mxu0
        %v1256 = vsel %vm457, %v1047, 0
        %1258 = vmatprep.subr.mxu0 0.0
        %1259 = vmatpush1.xpose.msra.mxu0 0.0
        %1260 = vmatprep.subr.mxu0 0.0
        %1261 = vmatpush1.xpose.msra.mxu0 0.0
        %1262 = vmatprep.subr.mxu0 0.0
        %1263 = vmatpush1.xpose.msra.mxu0 0.0
        %1264 = vmatprep.subr.mxu0 0.0
        %1265 = vmatpush1.xpose.msra.mxu0 0.0
        %1266 = vmatprep.subr.mxu0 0.0
        %1267 = vmatpush1.xpose.msra.mxu0 0.0
        %1268 = vmatprep.subr.mxu0 0.0
        %1269 = vmatpush1.xpose.msra.mxu0 0.0
        %1270 = vmatprep.subr.mxu0 0.0
        %1271 = vmatpush1.xpose.msra.mxu0 0.0
        %1272 = vmatprep.subr.mxu0 0.0
        %1273 = vmatpush1.xpose.msra.mxu0 0.0
        %1274 = vmatprep.subr.mxu0 0.0
        %1275 = vmatpush1.xpose.msra.mxu0 0.0
        %1276 = vmatprep.subr.mxu0 0.0
        %1277 = vmatpush1.xpose.msra.mxu0 0.0
        %1278 = vmatprep.subr.mxu0 0.0
        %1279 = vmatpush1.xpose.msra.mxu0 0.0
        %1280 = vmatprep.subr.mxu0 0.0
        %1281 = vmatpush1.xpose.msra.mxu0 0.0
        %1282 = vmatprep.subr.mxu0 0.0
        %1283 = vmatpush1.xpose.msra.mxu0 0.0
        %1284 = vmatprep.subr.mxu0 0.0
        %1285 = vmatpush1.xpose.msra.mxu0 0.0
        %1286 = vmatprep.subr.mxu0 0.0
        %1287 = vmatpush1.xpose.msra.mxu0 0.0
        %1288 = vmatprep.subr.mxu0 0.0
        %1289 = vmatpush1.xpose.msra.mxu0 %v1256
        %1290 = vmatprep.subr.mxu0 0.0
        %1291 = vmatpush2.xpose.msra.mxu0 0.0
        %1292 = vmatprep.subr.mxu0 0.0
        %1293 = vmatpush2.xpose.msra.mxu0 0.0
        %1294 = vmatprep.subr.mxu0 0.0
        %1295 = vmatpush2.xpose.msra.mxu0 0.0
        %1296 = vmatprep.subr.mxu0 0.0
        %1297 = vmatpush2.xpose.msra.mxu0 0.0
        %1298 = vmatprep.subr.mxu0 0.0
        %1299 = vmatpush2.xpose.msra.mxu0 0.0
        %1300 = vmatprep.subr.mxu0 0.0
        %1301 = vmatpush2.xpose.msra.mxu0 0.0
        %1302 = vmatprep.subr.mxu0 0.0
        %1303 = vmatpush2.xpose.msra.mxu0 0.0
        %1304 = vmatprep.subr.mxu0 0.0
        %1305 = vmatpush2.xpose.msra.mxu0 0.0
        %1306 = vmatprep.subr.mxu0 0.0
        %1307 = vmatpush2.xpose.msra.mxu0 0.0
        %1308 = vmatprep.subr.mxu0 0.0
        %1309 = vmatpush2.xpose.msra.mxu0 0.0
        %1310 = vmatprep.subr.mxu0 0.0
        %1311 = vmatpush2.xpose.msra.mxu0 0.0
        %1312 = vmatprep.subr.mxu0 0.0
        %1313 = vmatpush2.xpose.msra.mxu0 0.0
        %1314 = vmatprep.subr.mxu0 0.0
        %1315 = vmatpush2.xpose.msra.mxu0 0.0
        %1316 = vmatprep.subr.mxu0 0.0
        %1317 = vmatpush2.xpose.msra.mxu0 0.0
        %1318 = vmatprep.subr.mxu0 0.0
        %1319 = vmatpush2.xpose.msra.mxu0 0.0
        %1320 = vmatprep.subr.mxu0 0.0
        %1321 = vmatpush2.xpose.msra.mxu0 0.0
        %1322 = vmatprep.mubr.f32.mxu0 0.0
        %1323 = vmatmul.mubr.f32.gmra.mxu0 %v459
        %v1324 = vpop.f32.mrf.mxu0
        %v1325 = vadd.f32 %v1080, %v1324
        %v1326 = vpop.f32.mrf.mxu0
        %1327 = vdwg.mxu0
        %v1329 = vsel %vm457, %v1048, 0
        %1331 = vmatprep.subr.mxu0 0.0
        %1332 = vmatpush1.xpose.msra.mxu0 0.0
        %1333 = vmatprep.subr.mxu0 0.0
        %1334 = vmatpush1.xpose.msra.mxu0 0.0
        %1335 = vmatprep.subr.mxu0 0.0
        %1336 = vmatpush1.xpose.msra.mxu0 0.0
        %1337 = vmatprep.subr.mxu0 0.0
        %1338 = vmatpush1.xpose.msra.mxu0 0.0
        %1339 = vmatprep.subr.mxu0 0.0
        %1340 = vmatpush1.xpose.msra.mxu0 0.0
        %1341 = vmatprep.subr.mxu0 0.0
        %1342 = vmatpush1.xpose.msra.mxu0 0.0
        %1343 = vmatprep.subr.mxu0 0.0
        %1344 = vmatpush1.xpose.msra.mxu0 0.0
        %1345 = vmatprep.subr.mxu0 0.0
        %1346 = vmatpush1.xpose.msra.mxu0 0.0
        %1347 = vmatprep.subr.mxu0 0.0
        %1348 = vmatpush1.xpose.msra.mxu0 0.0
        %1349 = vmatprep.subr.mxu0 0.0
        %1350 = vmatpush1.xpose.msra.mxu0 0.0
        %1351 = vmatprep.subr.mxu0 0.0
        %1352 = vmatpush1.xpose.msra.mxu0 0.0
        %1353 = vmatprep.subr.mxu0 0.0
        %1354 = vmatpush1.xpose.msra.mxu0 0.0
        %1355 = vmatprep.subr.mxu0 0.0
        %1356 = vmatpush1.xpose.msra.mxu0 0.0
        %1357 = vmatprep.subr.mxu0 0.0
        %1358 = vmatpush1.xpose.msra.mxu0 0.0
        %1359 = vmatprep.subr.mxu0 0.0
        %1360 = vmatpush1.xpose.msra.mxu0 0.0
        %1361 = vmatprep.subr.mxu0 0.0
        %1362 = vmatpush1.xpose.msra.mxu0 %v1329
        %1363 = vmatprep.subr.mxu0 0.0
        %1364 = vmatpush2.xpose.msra.mxu0 0.0
        %1365 = vmatprep.subr.mxu0 0.0
        %1366 = vmatpush2.xpose.msra.mxu0 0.0
        %1367 = vmatprep.subr.mxu0 0.0
        %1368 = vmatpush2.xpose.msra.mxu0 0.0
        %1369 = vmatprep.subr.mxu0 0.0
        %1370 = vmatpush2.xpose.msra.mxu0 0.0
        %1371 = vmatprep.subr.mxu0 0.0
        %1372 = vmatpush2.xpose.msra.mxu0 0.0
        %1373 = vmatprep.subr.mxu0 0.0
        %1374 = vmatpush2.xpose.msra.mxu0 0.0
        %1375 = vmatprep.subr.mxu0 0.0
        %1376 = vmatpush2.xpose.msra.mxu0 0.0
        %1377 = vmatprep.subr.mxu0 0.0
        %1378 = vmatpush2.xpose.msra.mxu0 0.0
        %1379 = vmatprep.subr.mxu0 0.0
        %1380 = vmatpush2.xpose.msra.mxu0 0.0
        %1381 = vmatprep.subr.mxu0 0.0
        %1382 = vmatpush2.xpose.msra.mxu0 0.0
        %1383 = vmatprep.subr.mxu0 0.0
        %1384 = vmatpush2.xpose.msra.mxu0 0.0
        %1385 = vmatprep.subr.mxu0 0.0
        %1386 = vmatpush2.xpose.msra.mxu0 0.0
        %1387 = vmatprep.subr.mxu0 0.0
        %1388 = vmatpush2.xpose.msra.mxu0 0.0
        %1389 = vmatprep.subr.mxu0 0.0
        %1390 = vmatpush2.xpose.msra.mxu0 0.0
        %1391 = vmatprep.subr.mxu0 0.0
        %1392 = vmatpush2.xpose.msra.mxu0 0.0
        %1393 = vmatprep.subr.mxu0 0.0
        %1394 = vmatpush2.xpose.msra.mxu0 0.0
        %1395 = vmatprep.mubr.f32.mxu0 0.0
        %1396 = vmatmul.mubr.f32.gmra.mxu0 %v459
        %v1397 = vpop.f32.mrf.mxu0
        %v1398 = vadd.f32 %v1084, %v1397
        %v1399 = vpop.f32.mrf.mxu0
        %1400 = vdwg.mxu0
        %v1402 = vsel %vm457, %v1049, 0
        %1404 = vmatprep.subr.mxu0 0.0
        %1405 = vmatpush1.xpose.msra.mxu0 0.0
        %1406 = vmatprep.subr.mxu0 0.0
        %1407 = vmatpush1.xpose.msra.mxu0 0.0
        %1408 = vmatprep.subr.mxu0 0.0
        %1409 = vmatpush1.xpose.msra.mxu0 0.0
        %1410 = vmatprep.subr.mxu0 0.0
        %1411 = vmatpush1.xpose.msra.mxu0 0.0
        %1412 = vmatprep.subr.mxu0 0.0
        %1413 = vmatpush1.xpose.msra.mxu0 0.0
        %1414 = vmatprep.subr.mxu0 0.0
        %1415 = vmatpush1.xpose.msra.mxu0 0.0
        %1416 = vmatprep.subr.mxu0 0.0
        %1417 = vmatpush1.xpose.msra.mxu0 0.0
        %1418 = vmatprep.subr.mxu0 0.0
        %1419 = vmatpush1.xpose.msra.mxu0 0.0
        %1420 = vmatprep.subr.mxu0 0.0
        %1421 = vmatpush1.xpose.msra.mxu0 0.0
        %1422 = vmatprep.subr.mxu0 0.0
        %1423 = vmatpush1.xpose.msra.mxu0 0.0
        %1424 = vmatprep.subr.mxu0 0.0
        %1425 = vmatpush1.xpose.msra.mxu0 0.0
        %1426 = vmatprep.subr.mxu0 0.0
        %1427 = vmatpush1.xpose.msra.mxu0 0.0
        %1428 = vmatprep.subr.mxu0 0.0
        %1429 = vmatpush1.xpose.msra.mxu0 0.0
        %1430 = vmatprep.subr.mxu0 0.0
        %1431 = vmatpush1.xpose.msra.mxu0 0.0
        %1432 = vmatprep.subr.mxu0 0.0
        %1433 = vmatpush1.xpose.msra.mxu0 0.0
        %1434 = vmatprep.subr.mxu0 0.0
        %1435 = vmatpush1.xpose.msra.mxu0 %v1402
        %1436 = vmatprep.subr.mxu0 0.0
        %1437 = vmatpush2.xpose.msra.mxu0 0.0
        %1438 = vmatprep.subr.mxu0 0.0
        %1439 = vmatpush2.xpose.msra.mxu0 0.0
        %1440 = vmatprep.subr.mxu0 0.0
        %1441 = vmatpush2.xpose.msra.mxu0 0.0
        %1442 = vmatprep.subr.mxu0 0.0
        %1443 = vmatpush2.xpose.msra.mxu0 0.0
        %1444 = vmatprep.subr.mxu0 0.0
        %1445 = vmatpush2.xpose.msra.mxu0 0.0
        %1446 = vmatprep.subr.mxu0 0.0
        %1447 = vmatpush2.xpose.msra.mxu0 0.0
        %1448 = vmatprep.subr.mxu0 0.0
        %1449 = vmatpush2.xpose.msra.mxu0 0.0
        %1450 = vmatprep.subr.mxu0 0.0
        %1451 = vmatpush2.xpose.msra.mxu0 0.0
        %1452 = vmatprep.subr.mxu0 0.0
        %1453 = vmatpush2.xpose.msra.mxu0 0.0
        %1454 = vmatprep.subr.mxu0 0.0
        %1455 = vmatpush2.xpose.msra.mxu0 0.0
        %1456 = vmatprep.subr.mxu0 0.0
        %1457 = vmatpush2.xpose.msra.mxu0 0.0
        %1458 = vmatprep.subr.mxu0 0.0
        %1459 = vmatpush2.xpose.msra.mxu0 0.0
        %1460 = vmatprep.subr.mxu0 0.0
        %1461 = vmatpush2.xpose.msra.mxu0 0.0
        %1462 = vmatprep.subr.mxu0 0.0
        %1463 = vmatpush2.xpose.msra.mxu0 0.0
        %1464 = vmatprep.subr.mxu0 0.0
        %1465 = vmatpush2.xpose.msra.mxu0 0.0
        %1466 = vmatprep.subr.mxu0 0.0
        %1467 = vmatpush2.xpose.msra.mxu0 0.0
        %1468 = vmatprep.mubr.f32.mxu0 0.0
        %1469 = vmatmul.mubr.f32.gmra.mxu0 %v459
        %v1470 = vpop.f32.mrf.mxu0
        %v1471 = vadd.f32 %v1088, %v1470
        %v1472 = vpop.f32.mrf.mxu0
        %1473 = vdwg.mxu0
        %v1475 = vsel %vm457, %v1050, 0
        %1477 = vmatprep.subr.mxu0 0.0
        %1478 = vmatpush1.xpose.msra.mxu0 0.0
        %1479 = vmatprep.subr.mxu0 0.0
        %1480 = vmatpush1.xpose.msra.mxu0 0.0
        %1481 = vmatprep.subr.mxu0 0.0
        %1482 = vmatpush1.xpose.msra.mxu0 0.0
        %1483 = vmatprep.subr.mxu0 0.0
        %1484 = vmatpush1.xpose.msra.mxu0 0.0
        %1485 = vmatprep.subr.mxu0 0.0
        %1486 = vmatpush1.xpose.msra.mxu0 0.0
        %1487 = vmatprep.subr.mxu0 0.0
        %1488 = vmatpush1.xpose.msra.mxu0 0.0
        %1489 = vmatprep.subr.mxu0 0.0
        %1490 = vmatpush1.xpose.msra.mxu0 0.0
        %1491 = vmatprep.subr.mxu0 0.0
        %1492 = vmatpush1.xpose.msra.mxu0 0.0
        %1493 = vmatprep.subr.mxu0 0.0
        %1494 = vmatpush1.xpose.msra.mxu0 0.0
        %1495 = vmatprep.subr.mxu0 0.0
        %1496 = vmatpush1.xpose.msra.mxu0 0.0
        %1497 = vmatprep.subr.mxu0 0.0
        %1498 = vmatpush1.xpose.msra.mxu0 0.0
        %1499 = vmatprep.subr.mxu0 0.0
        %1500 = vmatpush1.xpose.msra.mxu0 0.0
        %1501 = vmatprep.subr.mxu0 0.0
        %1502 = vmatpush1.xpose.msra.mxu0 0.0
        %1503 = vmatprep.subr.mxu0 0.0
        %1504 = vmatpush1.xpose.msra.mxu0 0.0
        %1505 = vmatprep.subr.mxu0 0.0
        %1506 = vmatpush1.xpose.msra.mxu0 0.0
        %1507 = vmatprep.subr.mxu0 0.0
        %1508 = vmatpush1.xpose.msra.mxu0 %v1475
        %1509 = vmatprep.subr.mxu0 0.0
        %1510 = vmatpush2.xpose.msra.mxu0 0.0
        %1511 = vmatprep.subr.mxu0 0.0
        %1512 = vmatpush2.xpose.msra.mxu0 0.0
        %1513 = vmatprep.subr.mxu0 0.0
        %1514 = vmatpush2.xpose.msra.mxu0 0.0
        %1515 = vmatprep.subr.mxu0 0.0
        %1516 = vmatpush2.xpose.msra.mxu0 0.0
        %1517 = vmatprep.subr.mxu0 0.0
        %1518 = vmatpush2.xpose.msra.mxu0 0.0
        %1519 = vmatprep.subr.mxu0 0.0
        %1520 = vmatpush2.xpose.msra.mxu0 0.0
        %1521 = vmatprep.subr.mxu0 0.0
        %1522 = vmatpush2.xpose.msra.mxu0 0.0
        %1523 = vmatprep.subr.mxu0 0.0
        %1524 = vmatpush2.xpose.msra.mxu0 0.0
        %1525 = vmatprep.subr.mxu0 0.0
        %1526 = vmatpush2.xpose.msra.mxu0 0.0
        %1527 = vmatprep.subr.mxu0 0.0
        %1528 = vmatpush2.xpose.msra.mxu0 0.0
        %1529 = vmatprep.subr.mxu0 0.0
        %1530 = vmatpush2.xpose.msra.mxu0 0.0
        %1531 = vmatprep.subr.mxu0 0.0
        %1532 = vmatpush2.xpose.msra.mxu0 0.0
        %1533 = vmatprep.subr.mxu0 0.0
        %1534 = vmatpush2.xpose.msra.mxu0 0.0
        %1535 = vmatprep.subr.mxu0 0.0
        %1536 = vmatpush2.xpose.msra.mxu0 0.0
        %1537 = vmatprep.subr.mxu0 0.0
        %1538 = vmatpush2.xpose.msra.mxu0 0.0
        %1539 = vmatprep.subr.mxu0 0.0
        %1540 = vmatpush2.xpose.msra.mxu0 0.0
        %1541 = vmatprep.mubr.f32.mxu0 0.0
        %1542 = vmatmul.mubr.f32.gmra.mxu0 %v459
        %v1543 = vpop.f32.mrf.mxu0
        %v1544 = vadd.f32 %v1092, %v1543
        %v1545 = vpop.f32.mrf.mxu0
        %1546 = vdwg.mxu0
        %v1548 = vsel %vm457, %v1051, 0
        %1550 = vmatprep.subr.mxu0 0.0
        %1551 = vmatpush1.xpose.msra.mxu0 0.0
        %1552 = vmatprep.subr.mxu0 0.0
        %1553 = vmatpush1.xpose.msra.mxu0 0.0
        %1554 = vmatprep.subr.mxu0 0.0
        %1555 = vmatpush1.xpose.msra.mxu0 0.0
        %1556 = vmatprep.subr.mxu0 0.0
        %1557 = vmatpush1.xpose.msra.mxu0 0.0
        %1558 = vmatprep.subr.mxu0 0.0
        %1559 = vmatpush1.xpose.msra.mxu0 0.0
        %1560 = vmatprep.subr.mxu0 0.0
        %1561 = vmatpush1.xpose.msra.mxu0 0.0
        %1562 = vmatprep.subr.mxu0 0.0
        %1563 = vmatpush1.xpose.msra.mxu0 0.0
        %1564 = vmatprep.subr.mxu0 0.0
        %1565 = vmatpush1.xpose.msra.mxu0 0.0
        %1566 = vmatprep.subr.mxu0 0.0
        %1567 = vmatpush1.xpose.msra.mxu0 0.0
        %1568 = vmatprep.subr.mxu0 0.0
        %1569 = vmatpush1.xpose.msra.mxu0 0.0
        %1570 = vmatprep.subr.mxu0 0.0
        %1571 = vmatpush1.xpose.msra.mxu0 0.0
        %1572 = vmatprep.subr.mxu0 0.0
        %1573 = vmatpush1.xpose.msra.mxu0 0.0
        %1574 = vmatprep.subr.mxu0 0.0
        %1575 = vmatpush1.xpose.msra.mxu0 0.0
        %1576 = vmatprep.subr.mxu0 0.0
        %1577 = vmatpush1.xpose.msra.mxu0 0.0
        %1578 = vmatprep.subr.mxu0 0.0
        %1579 = vmatpush1.xpose.msra.mxu0 0.0
        %1580 = vmatprep.subr.mxu0 0.0
        %1581 = vmatpush1.xpose.msra.mxu0 %v1548
        %1582 = vmatprep.subr.mxu0 0.0
        %1583 = vmatpush2.xpose.msra.mxu0 0.0
        %1584 = vmatprep.subr.mxu0 0.0
        %1585 = vmatpush2.xpose.msra.mxu0 0.0
        %1586 = vmatprep.subr.mxu0 0.0
        %1587 = vmatpush2.xpose.msra.mxu0 0.0
        %1588 = vmatprep.subr.mxu0 0.0
        %1589 = vmatpush2.xpose.msra.mxu0 0.0
        %1590 = vmatprep.subr.mxu0 0.0
        %1591 = vmatpush2.xpose.msra.mxu0 0.0
        %1592 = vmatprep.subr.mxu0 0.0
        %1593 = vmatpush2.xpose.msra.mxu0 0.0
        %1594 = vmatprep.subr.mxu0 0.0
        %1595 = vmatpush2.xpose.msra.mxu0 0.0
        %1596 = vmatprep.subr.mxu0 0.0
        %1597 = vmatpush2.xpose.msra.mxu0 0.0
        %1598 = vmatprep.subr.mxu0 0.0
        %1599 = vmatpush2.xpose.msra.mxu0 0.0
        %1600 = vmatprep.subr.mxu0 0.0
        %1601 = vmatpush2.xpose.msra.mxu0 0.0
        %1602 = vmatprep.subr.mxu0 0.0
        %1603 = vmatpush2.xpose.msra.mxu0 0.0
        %1604 = vmatprep.subr.mxu0 0.0
        %1605 = vmatpush2.xpose.msra.mxu0 0.0
        %1606 = vmatprep.subr.mxu0 0.0
        %1607 = vmatpush2.xpose.msra.mxu0 0.0
        %1608 = vmatprep.subr.mxu0 0.0
        %1609 = vmatpush2.xpose.msra.mxu0 0.0
        %1610 = vmatprep.subr.mxu0 0.0
        %1611 = vmatpush2.xpose.msra.mxu0 0.0
        %1612 = vmatprep.subr.mxu0 0.0
        %1613 = vmatpush2.xpose.msra.mxu0 0.0
        %1614 = vmatprep.mubr.f32.mxu0 0.0
        %1615 = vmatmul.mubr.f32.gmra.mxu0 %v459
        %v1616 = vpop.f32.mrf.mxu0
        %v1617 = vadd.f32 %v1096, %v1616
        %v1618 = vpop.f32.mrf.mxu0
        %1619 = vdwg.mxu0
        %v1621 = vsel %vm457, %v1052, 0
        %1623 = vmatprep.subr.mxu0 0.0
        %1624 = vmatpush1.xpose.msra.mxu0 0.0
        %1625 = vmatprep.subr.mxu0 0.0
        %1626 = vmatpush1.xpose.msra.mxu0 0.0
        %1627 = vmatprep.subr.mxu0 0.0
        %1628 = vmatpush1.xpose.msra.mxu0 0.0
        %1629 = vmatprep.subr.mxu0 0.0
        %1630 = vmatpush1.xpose.msra.mxu0 0.0
        %1631 = vmatprep.subr.mxu0 0.0
        %1632 = vmatpush1.xpose.msra.mxu0 0.0
        %1633 = vmatprep.subr.mxu0 0.0
        %1634 = vmatpush1.xpose.msra.mxu0 0.0
        %1635 = vmatprep.subr.mxu0 0.0
        %1636 = vmatpush1.xpose.msra.mxu0 0.0
        %1637 = vmatprep.subr.mxu0 0.0
        %1638 = vmatpush1.xpose.msra.mxu0 0.0
        %1639 = vmatprep.subr.mxu0 0.0
        %1640 = vmatpush1.xpose.msra.mxu0 0.0
        %1641 = vmatprep.subr.mxu0 0.0
        %1642 = vmatpush1.xpose.msra.mxu0 0.0
        %1643 = vmatprep.subr.mxu0 0.0
        %1644 = vmatpush1.xpose.msra.mxu0 0.0
        %1645 = vmatprep.subr.mxu0 0.0
        %1646 = vmatpush1.xpose.msra.mxu0 0.0
        %1647 = vmatprep.subr.mxu0 0.0
        %1648 = vmatpush1.xpose.msra.mxu0 0.0
        %1649 = vmatprep.subr.mxu0 0.0
        %1650 = vmatpush1.xpose.msra.mxu0 0.0
        %1651 = vmatprep.subr.mxu0 0.0
        %1652 = vmatpush1.xpose.msra.mxu0 0.0
        %1653 = vmatprep.subr.mxu0 0.0
        %1654 = vmatpush1.xpose.msra.mxu0 %v1621
        %1655 = vmatprep.subr.mxu0 0.0
        %1656 = vmatpush2.xpose.msra.mxu0 0.0
        %1657 = vmatprep.subr.mxu0 0.0
        %1658 = vmatpush2.xpose.msra.mxu0 0.0
        %1659 = vmatprep.subr.mxu0 0.0
        %1660 = vmatpush2.xpose.msra.mxu0 0.0
        %1661 = vmatprep.subr.mxu0 0.0
        %1662 = vmatpush2.xpose.msra.mxu0 0.0
        %1663 = vmatprep.subr.mxu0 0.0
        %1664 = vmatpush2.xpose.msra.mxu0 0.0
        %1665 = vmatprep.subr.mxu0 0.0
        %1666 = vmatpush2.xpose.msra.mxu0 0.0
        %1667 = vmatprep.subr.mxu0 0.0
        %1668 = vmatpush2.xpose.msra.mxu0 0.0
        %1669 = vmatprep.subr.mxu0 0.0
        %1670 = vmatpush2.xpose.msra.mxu0 0.0
        %1671 = vmatprep.subr.mxu0 0.0
        %1672 = vmatpush2.xpose.msra.mxu0 0.0
        %1673 = vmatprep.subr.mxu0 0.0
        %1674 = vmatpush2.xpose.msra.mxu0 0.0
        %1675 = vmatprep.subr.mxu0 0.0
        %1676 = vmatpush2.xpose.msra.mxu0 0.0
        %1677 = vmatprep.subr.mxu0 0.0
        %1678 = vmatpush2.xpose.msra.mxu0 0.0
        %1679 = vmatprep.subr.mxu0 0.0
        %1680 = vmatpush2.xpose.msra.mxu0 0.0
        %1681 = vmatprep.subr.mxu0 0.0
        %1682 = vmatpush2.xpose.msra.mxu0 0.0
        %1683 = vmatprep.subr.mxu0 0.0
        %1684 = vmatpush2.xpose.msra.mxu0 0.0
        %1685 = vmatprep.subr.mxu0 0.0
        %1686 = vmatpush2.xpose.msra.mxu0 0.0
        %1687 = vmatprep.mubr.f32.mxu0 0.0
        %1688 = vmatmul.mubr.f32.gmra.mxu0 %v459
        %v1689 = vpop.f32.mrf.mxu0
        %v1690 = vadd.f32 %v1100, %v1689
        %v1691 = vpop.f32.mrf.mxu0
        %1692 = vdwg.mxu0
        %v1693 = vld [vmem:[#allocation7] sm:$0xf]
        %v1694 = vld [vmem:[#allocation7 + $0x4] sm:$0xf]
        %v1695 = vld [vmem:[#allocation7 + $0x8] sm:$0xf]
        %v1696 = vld [vmem:[#allocation7 + $0xc] sm:$0xf]
        %v1697 = vld [vmem:[#allocation7 + $0x10] sm:$0xf]
        %v1698 = vld [vmem:[#allocation7 + $0x14] sm:$0xf]
        %v1699 = vld [vmem:[#allocation7 + $0x18] sm:$0xf]
        %v1700 = vld [vmem:[#allocation7 + $0x1c] sm:$0xf]
        %v1701 = vld [vmem:[%s6] sm:$0x1]
        %v1702 = vld [vmem:[%s6 + $0x1] sm:$0x1]
        %v1703 = vld [vmem:[%s6 + $0x2] sm:$0x1]
        %v1704 = vld [vmem:[%s6 + $0x3] sm:$0x1]
        %v1705 = vld [vmem:[%s6 + $0x4] sm:$0x1]
        %v1706 = vld [vmem:[%s6 + $0x5] sm:$0x1]
        %v1707 = vld [vmem:[%s6 + $0x6] sm:$0x1]
        %v1708 = vld [vmem:[%s6 + $0x7] sm:$0x1]
        %v1717 = vlaneseq
        %v1718 = vshrl.u32 %v1717, 7
        %v1719 = vsub.s32 0, %v1718
        %v1720 = vrot.slane %v1701, %v1719
        %v1721 = vlaneseq
        %v1722 = vshrl.u32 %v1721, 7
        %v1723 = vsub.s32 0, %v1722
        %v1724 = vrot.slane %v1702, %v1723
        %v1725 = vlaneseq
        %v1726 = vshrl.u32 %v1725, 7
        %v1727 = vsub.s32 0, %v1726
        %v1728 = vrot.slane %v1703, %v1727
        %v1729 = vlaneseq
        %v1730 = vshrl.u32 %v1729, 7
        %v1731 = vsub.s32 0, %v1730
        %v1732 = vrot.slane %v1704, %v1731
        %v1733 = vlaneseq
        %v1734 = vshrl.u32 %v1733, 7
        %v1735 = vsub.s32 0, %v1734
        %v1736 = vrot.slane %v1705, %v1735
        %v1737 = vlaneseq
        %v1738 = vshrl.u32 %v1737, 7
        %v1739 = vsub.s32 0, %v1738
        %v1740 = vrot.slane %v1706, %v1739
        %v1741 = vlaneseq
        %v1742 = vshrl.u32 %v1741, 7
        %v1743 = vsub.s32 0, %v1742
        %v1744 = vrot.slane %v1707, %v1743
        %v1745 = vlaneseq
        %v1746 = vshrl.u32 %v1745, 7
        %v1747 = vsub.s32 0, %v1746
        %v1748 = vrot.slane %v1708, %v1747
        %v1758 = vsel %vm457, %v1693, 0
        %1760 = vmatprep.subr.mxu0 0.0
        %1761 = vmatpush1.xpose.msra.mxu0 0.0
        %1762 = vmatprep.subr.mxu0 0.0
        %1763 = vmatpush1.xpose.msra.mxu0 0.0
        %1764 = vmatprep.subr.mxu0 0.0
        %1765 = vmatpush1.xpose.msra.mxu0 0.0
        %1766 = vmatprep.subr.mxu0 0.0
        %1767 = vmatpush1.xpose.msra.mxu0 0.0
        %1768 = vmatprep.subr.mxu0 0.0
        %1769 = vmatpush1.xpose.msra.mxu0 0.0
        %1770 = vmatprep.subr.mxu0 0.0
        %1771 = vmatpush1.xpose.msra.mxu0 0.0
        %1772 = vmatprep.subr.mxu0 0.0
        %1773 = vmatpush1.xpose.msra.mxu0 0.0
        %1774 = vmatprep.subr.mxu0 0.0
        %1775 = vmatpush1.xpose.msra.mxu0 0.0
        %1776 = vmatprep.subr.mxu0 0.0
        %1777 = vmatpush1.xpose.msra.mxu0 0.0
        %1778 = vmatprep.subr.mxu0 0.0
        %1779 = vmatpush1.xpose.msra.mxu0 0.0
        %1780 = vmatprep.subr.mxu0 0.0
        %1781 = vmatpush1.xpose.msra.mxu0 0.0
        %1782 = vmatprep.subr.mxu0 0.0
        %1783 = vmatpush1.xpose.msra.mxu0 0.0
        %1784 = vmatprep.subr.mxu0 0.0
        %1785 = vmatpush1.xpose.msra.mxu0 0.0
        %1786 = vmatprep.subr.mxu0 0.0
        %1787 = vmatpush1.xpose.msra.mxu0 0.0
        %1788 = vmatprep.subr.mxu0 0.0
        %1789 = vmatpush1.xpose.msra.mxu0 0.0
        %1790 = vmatprep.subr.mxu0 0.0
        %1791 = vmatpush1.xpose.msra.mxu0 %v1758
        %1792 = vmatprep.subr.mxu0 0.0
        %1793 = vmatpush2.xpose.msra.mxu0 0.0
        %1794 = vmatprep.subr.mxu0 0.0
        %1795 = vmatpush2.xpose.msra.mxu0 0.0
        %1796 = vmatprep.subr.mxu0 0.0
        %1797 = vmatpush2.xpose.msra.mxu0 0.0
        %1798 = vmatprep.subr.mxu0 0.0
        %1799 = vmatpush2.xpose.msra.mxu0 0.0
        %1800 = vmatprep.subr.mxu0 0.0
        %1801 = vmatpush2.xpose.msra.mxu0 0.0
        %1802 = vmatprep.subr.mxu0 0.0
        %1803 = vmatpush2.xpose.msra.mxu0 0.0
        %1804 = vmatprep.subr.mxu0 0.0
        %1805 = vmatpush2.xpose.msra.mxu0 0.0
        %1806 = vmatprep.subr.mxu0 0.0
        %1807 = vmatpush2.xpose.msra.mxu0 0.0
        %1808 = vmatprep.subr.mxu0 0.0
        %1809 = vmatpush2.xpose.msra.mxu0 0.0
        %1810 = vmatprep.subr.mxu0 0.0
        %1811 = vmatpush2.xpose.msra.mxu0 0.0
        %1812 = vmatprep.subr.mxu0 0.0
        %1813 = vmatpush2.xpose.msra.mxu0 0.0
        %1814 = vmatprep.subr.mxu0 0.0
        %1815 = vmatpush2.xpose.msra.mxu0 0.0
        %1816 = vmatprep.subr.mxu0 0.0
        %1817 = vmatpush2.xpose.msra.mxu0 0.0
        %1818 = vmatprep.subr.mxu0 0.0
        %1819 = vmatpush2.xpose.msra.mxu0 0.0
        %1820 = vmatprep.subr.mxu0 0.0
        %1821 = vmatpush2.xpose.msra.mxu0 0.0
        %1822 = vmatprep.subr.mxu0 0.0
        %1823 = vmatpush2.xpose.msra.mxu0 0.0
        %1824 = vmatprep.mubr.f32.mxu0 0.0
        %1825 = vmatmul.mubr.f32.gmra.mxu0 %v459
        %v1826 = vpop.f32.mrf.mxu0
        %v1827 = vadd.f32 %v1720, %v1826
        %v1828 = vpop.f32.mrf.mxu0
        %1829 = vdwg.mxu0
        %v1831 = vsel %vm457, %v1694, 0
        %1833 = vmatprep.subr.mxu0 0.0
        %1834 = vmatpush1.xpose.msra.mxu0 0.0
        %1835 = vmatprep.subr.mxu0 0.0
        %1836 = vmatpush1.xpose.msra.mxu0 0.0
        %1837 = vmatprep.subr.mxu0 0.0
        %1838 = vmatpush1.xpose.msra.mxu0 0.0
        %1839 = vmatprep.subr.mxu0 0.0
        %1840 = vmatpush1.xpose.msra.mxu0 0.0
        %1841 = vmatprep.subr.mxu0 0.0
        %1842 = vmatpush1.xpose.msra.mxu0 0.0
        %1843 = vmatprep.subr.mxu0 0.0
        %1844 = vmatpush1.xpose.msra.mxu0 0.0
        %1845 = vmatprep.subr.mxu0 0.0
        %1846 = vmatpush1.xpose.msra.mxu0 0.0
        %1847 = vmatprep.subr.mxu0 0.0
        %1848 = vmatpush1.xpose.msra.mxu0 0.0
        %1849 = vmatprep.subr.mxu0 0.0
        %1850 = vmatpush1.xpose.msra.mxu0 0.0
        %1851 = vmatprep.subr.mxu0 0.0
        %1852 = vmatpush1.xpose.msra.mxu0 0.0
        %1853 = vmatprep.subr.mxu0 0.0
        %1854 = vmatpush1.xpose.msra.mxu0 0.0
        %1855 = vmatprep.subr.mxu0 0.0
        %1856 = vmatpush1.xpose.msra.mxu0 0.0
        %1857 = vmatprep.subr.mxu0 0.0
        %1858 = vmatpush1.xpose.msra.mxu0 0.0
        %1859 = vmatprep.subr.mxu0 0.0
        %1860 = vmatpush1.xpose.msra.mxu0 0.0
        %1861 = vmatprep.subr.mxu0 0.0
        %1862 = vmatpush1.xpose.msra.mxu0 0.0
        %1863 = vmatprep.subr.mxu0 0.0
        %1864 = vmatpush1.xpose.msra.mxu0 %v1831
        %1865 = vmatprep.subr.mxu0 0.0
        %1866 = vmatpush2.xpose.msra.mxu0 0.0
        %1867 = vmatprep.subr.mxu0 0.0
        %1868 = vmatpush2.xpose.msra.mxu0 0.0
        %1869 = vmatprep.subr.mxu0 0.0
        %1870 = vmatpush2.xpose.msra.mxu0 0.0
        %1871 = vmatprep.subr.mxu0 0.0
        %1872 = vmatpush2.xpose.msra.mxu0 0.0
        %1873 = vmatprep.subr.mxu0 0.0
        %1874 = vmatpush2.xpose.msra.mxu0 0.0
        %1875 = vmatprep.subr.mxu0 0.0
        %1876 = vmatpush2.xpose.msra.mxu0 0.0
        %1877 = vmatprep.subr.mxu0 0.0
        %1878 = vmatpush2.xpose.msra.mxu0 0.0
        %1879 = vmatprep.subr.mxu0 0.0
        %1880 = vmatpush2.xpose.msra.mxu0 0.0
        %1881 = vmatprep.subr.mxu0 0.0
        %1882 = vmatpush2.xpose.msra.mxu0 0.0
        %1883 = vmatprep.subr.mxu0 0.0
        %1884 = vmatpush2.xpose.msra.mxu0 0.0
        %1885 = vmatprep.subr.mxu0 0.0
        %1886 = vmatpush2.xpose.msra.mxu0 0.0
        %1887 = vmatprep.subr.mxu0 0.0
        %1888 = vmatpush2.xpose.msra.mxu0 0.0
        %1889 = vmatprep.subr.mxu0 0.0
        %1890 = vmatpush2.xpose.msra.mxu0 0.0
        %1891 = vmatprep.subr.mxu0 0.0
        %1892 = vmatpush2.xpose.msra.mxu0 0.0
        %1893 = vmatprep.subr.mxu0 0.0
        %1894 = vmatpush2.xpose.msra.mxu0 0.0
        %1895 = vmatprep.subr.mxu0 0.0
        %1896 = vmatpush2.xpose.msra.mxu0 0.0
        %1897 = vmatprep.mubr.f32.mxu0 0.0
        %1898 = vmatmul.mubr.f32.gmra.mxu0 %v459
        %v1899 = vpop.f32.mrf.mxu0
        %v1900 = vadd.f32 %v1724, %v1899
        %v1901 = vpop.f32.mrf.mxu0
        %1902 = vdwg.mxu0
        %v1904 = vsel %vm457, %v1695, 0
        %1906 = vmatprep.subr.mxu0 0.0
        %1907 = vmatpush1.xpose.msra.mxu0 0.0
        %1908 = vmatprep.subr.mxu0 0.0
        %1909 = vmatpush1.xpose.msra.mxu0 0.0
        %1910 = vmatprep.subr.mxu0 0.0
        %1911 = vmatpush1.xpose.msra.mxu0 0.0
        %1912 = vmatprep.subr.mxu0 0.0
        %1913 = vmatpush1.xpose.msra.mxu0 0.0
        %1914 = vmatprep.subr.mxu0 0.0
        %1915 = vmatpush1.xpose.msra.mxu0 0.0
        %1916 = vmatprep.subr.mxu0 0.0
        %1917 = vmatpush1.xpose.msra.mxu0 0.0
        %1918 = vmatprep.subr.mxu0 0.0
        %1919 = vmatpush1.xpose.msra.mxu0 0.0
        %1920 = vmatprep.subr.mxu0 0.0
        %1921 = vmatpush1.xpose.msra.mxu0 0.0
        %1922 = vmatprep.subr.mxu0 0.0
        %1923 = vmatpush1.xpose.msra.mxu0 0.0
        %1924 = vmatprep.subr.mxu0 0.0
        %1925 = vmatpush1.xpose.msra.mxu0 0.0
        %1926 = vmatprep.subr.mxu0 0.0
        %1927 = vmatpush1.xpose.msra.mxu0 0.0
        %1928 = vmatprep.subr.mxu0 0.0
        %1929 = vmatpush1.xpose.msra.mxu0 0.0
        %1930 = vmatprep.subr.mxu0 0.0
        %1931 = vmatpush1.xpose.msra.mxu0 0.0
        %1932 = vmatprep.subr.mxu0 0.0
        %1933 = vmatpush1.xpose.msra.mxu0 0.0
        %1934 = vmatprep.subr.mxu0 0.0
        %1935 = vmatpush1.xpose.msra.mxu0 0.0
        %1936 = vmatprep.subr.mxu0 0.0
        %1937 = vmatpush1.xpose.msra.mxu0 %v1904
        %1938 = vmatprep.subr.mxu0 0.0
        %1939 = vmatpush2.xpose.msra.mxu0 0.0
        %1940 = vmatprep.subr.mxu0 0.0
        %1941 = vmatpush2.xpose.msra.mxu0 0.0
        %1942 = vmatprep.subr.mxu0 0.0
        %1943 = vmatpush2.xpose.msra.mxu0 0.0
        %1944 = vmatprep.subr.mxu0 0.0
        %1945 = vmatpush2.xpose.msra.mxu0 0.0
        %1946 = vmatprep.subr.mxu0 0.0
        %1947 = vmatpush2.xpose.msra.mxu0 0.0
        %1948 = vmatprep.subr.mxu0 0.0
        %1949 = vmatpush2.xpose.msra.mxu0 0.0
        %1950 = vmatprep.subr.mxu0 0.0
        %1951 = vmatpush2.xpose.msra.mxu0 0.0
        %1952 = vmatprep.subr.mxu0 0.0
        %1953 = vmatpush2.xpose.msra.mxu0 0.0
        %1954 = vmatprep.subr.mxu0 0.0
        %1955 = vmatpush2.xpose.msra.mxu0 0.0
        %1956 = vmatprep.subr.mxu0 0.0
        %1957 = vmatpush2.xpose.msra.mxu0 0.0
        %1958 = vmatprep.subr.mxu0 0.0
        %1959 = vmatpush2.xpose.msra.mxu0 0.0
        %1960 = vmatprep.subr.mxu0 0.0
        %1961 = vmatpush2.xpose.msra.mxu0 0.0
        %1962 = vmatprep.subr.mxu0 0.0
        %1963 = vmatpush2.xpose.msra.mxu0 0.0
        %1964 = vmatprep.subr.mxu0 0.0
        %1965 = vmatpush2.xpose.msra.mxu0 0.0
        %1966 = vmatprep.subr.mxu0 0.0
        %1967 = vmatpush2.xpose.msra.mxu0 0.0
        %1968 = vmatprep.subr.mxu0 0.0
        %1969 = vmatpush2.xpose.msra.mxu0 0.0
        %1970 = vmatprep.mubr.f32.mxu0 0.0
        %1971 = vmatmul.mubr.f32.gmra.mxu0 %v459
        %v1972 = vpop.f32.mrf.mxu0
        %v1973 = vadd.f32 %v1728, %v1972
        %v1974 = vpop.f32.mrf.mxu0
        %1975 = vdwg.mxu0
        %v1977 = vsel %vm457, %v1696, 0
        %1979 = vmatprep.subr.mxu0 0.0
        %1980 = vmatpush1.xpose.msra.mxu0 0.0
        %1981 = vmatprep.subr.mxu0 0.0
        %1982 = vmatpush1.xpose.msra.mxu0 0.0
        %1983 = vmatprep.subr.mxu0 0.0
        %1984 = vmatpush1.xpose.msra.mxu0 0.0
        %1985 = vmatprep.subr.mxu0 0.0
        %1986 = vmatpush1.xpose.msra.mxu0 0.0
        %1987 = vmatprep.subr.mxu0 0.0
        %1988 = vmatpush1.xpose.msra.mxu0 0.0
        %1989 = vmatprep.subr.mxu0 0.0
        %1990 = vmatpush1.xpose.msra.mxu0 0.0
        %1991 = vmatprep.subr.mxu0 0.0
        %1992 = vmatpush1.xpose.msra.mxu0 0.0
        %1993 = vmatprep.subr.mxu0 0.0
        %1994 = vmatpush1.xpose.msra.mxu0 0.0
        %1995 = vmatprep.subr.mxu0 0.0
        %1996 = vmatpush1.xpose.msra.mxu0 0.0
        %1997 = vmatprep.subr.mxu0 0.0
        %1998 = vmatpush1.xpose.msra.mxu0 0.0
        %1999 = vmatprep.subr.mxu0 0.0
        %2000 = vmatpush1.xpose.msra.mxu0 0.0
        %2001 = vmatprep.subr.mxu0 0.0
        %2002 = vmatpush1.xpose.msra.mxu0 0.0
        %2003 = vmatprep.subr.mxu0 0.0
        %2004 = vmatpush1.xpose.msra.mxu0 0.0
        %2005 = vmatprep.subr.mxu0 0.0
        %2006 = vmatpush1.xpose.msra.mxu0 0.0
        %2007 = vmatprep.subr.mxu0 0.0
        %2008 = vmatpush1.xpose.msra.mxu0 0.0
        %2009 = vmatprep.subr.mxu0 0.0
        %2010 = vmatpush1.xpose.msra.mxu0 %v1977
        %2011 = vmatprep.subr.mxu0 0.0
        %2012 = vmatpush2.xpose.msra.mxu0 0.0
        %2013 = vmatprep.subr.mxu0 0.0
        %2014 = vmatpush2.xpose.msra.mxu0 0.0
        %2015 = vmatprep.subr.mxu0 0.0
        %2016 = vmatpush2.xpose.msra.mxu0 0.0
        %2017 = vmatprep.subr.mxu0 0.0
        %2018 = vmatpush2.xpose.msra.mxu0 0.0
        %2019 = vmatprep.subr.mxu0 0.0
        %2020 = vmatpush2.xpose.msra.mxu0 0.0
        %2021 = vmatprep.subr.mxu0 0.0
        %2022 = vmatpush2.xpose.msra.mxu0 0.0
        %2023 = vmatprep.subr.mxu0 0.0
        %2024 = vmatpush2.xpose.msra.mxu0 0.0
        %2025 = vmatprep.subr.mxu0 0.0
        %2026 = vmatpush2.xpose.msra.mxu0 0.0
        %2027 = vmatprep.subr.mxu0 0.0
        %2028 = vmatpush2.xpose.msra.mxu0 0.0
        %2029 = vmatprep.subr.mxu0 0.0
        %2030 = vmatpush2.xpose.msra.mxu0 0.0
        %2031 = vmatprep.subr.mxu0 0.0
        %2032 = vmatpush2.xpose.msra.mxu0 0.0
        %2033 = vmatprep.subr.mxu0 0.0
        %2034 = vmatpush2.xpose.msra.mxu0 0.0
        %2035 = vmatprep.subr.mxu0 0.0
        %2036 = vmatpush2.xpose.msra.mxu0 0.0
        %2037 = vmatprep.subr.mxu0 0.0
        %2038 = vmatpush2.xpose.msra.mxu0 0.0
        %2039 = vmatprep.subr.mxu0 0.0
        %2040 = vmatpush2.xpose.msra.mxu0 0.0
        %2041 = vmatprep.subr.mxu0 0.0
        %2042 = vmatpush2.xpose.msra.mxu0 0.0
        %2043 = vmatprep.mubr.f32.mxu0 0.0
        %2044 = vmatmul.mubr.f32.gmra.mxu0 %v459
        %v2045 = vpop.f32.mrf.mxu0
        %v2046 = vadd.f32 %v1732, %v2045
        %v2047 = vpop.f32.mrf.mxu0
        %2048 = vdwg.mxu0
        %v2050 = vsel %vm457, %v1697, 0
        %2052 = vmatprep.subr.mxu0 0.0
        %2053 = vmatpush1.xpose.msra.mxu0 0.0
        %2054 = vmatprep.subr.mxu0 0.0
        %2055 = vmatpush1.xpose.msra.mxu0 0.0
        %2056 = vmatprep.subr.mxu0 0.0
        %2057 = vmatpush1.xpose.msra.mxu0 0.0
        %2058 = vmatprep.subr.mxu0 0.0
        %2059 = vmatpush1.xpose.msra.mxu0 0.0
        %2060 = vmatprep.subr.mxu0 0.0
        %2061 = vmatpush1.xpose.msra.mxu0 0.0
        %2062 = vmatprep.subr.mxu0 0.0
        %2063 = vmatpush1.xpose.msra.mxu0 0.0
        %2064 = vmatprep.subr.mxu0 0.0
        %2065 = vmatpush1.xpose.msra.mxu0 0.0
        %2066 = vmatprep.subr.mxu0 0.0
        %2067 = vmatpush1.xpose.msra.mxu0 0.0
        %2068 = vmatprep.subr.mxu0 0.0
        %2069 = vmatpush1.xpose.msra.mxu0 0.0
        %2070 = vmatprep.subr.mxu0 0.0
        %2071 = vmatpush1.xpose.msra.mxu0 0.0
        %2072 = vmatprep.subr.mxu0 0.0
        %2073 = vmatpush1.xpose.msra.mxu0 0.0
        %2074 = vmatprep.subr.mxu0 0.0
        %2075 = vmatpush1.xpose.msra.mxu0 0.0
        %2076 = vmatprep.subr.mxu0 0.0
        %2077 = vmatpush1.xpose.msra.mxu0 0.0
        %2078 = vmatprep.subr.mxu0 0.0
        %2079 = vmatpush1.xpose.msra.mxu0 0.0
        %2080 = vmatprep.subr.mxu0 0.0
        %2081 = vmatpush1.xpose.msra.mxu0 0.0
        %2082 = vmatprep.subr.mxu0 0.0
        %2083 = vmatpush1.xpose.msra.mxu0 %v2050
        %2084 = vmatprep.subr.mxu0 0.0
        %2085 = vmatpush2.xpose.msra.mxu0 0.0
        %2086 = vmatprep.subr.mxu0 0.0
        %2087 = vmatpush2.xpose.msra.mxu0 0.0
        %2088 = vmatprep.subr.mxu0 0.0
        %2089 = vmatpush2.xpose.msra.mxu0 0.0
        %2090 = vmatprep.subr.mxu0 0.0
        %2091 = vmatpush2.xpose.msra.mxu0 0.0
        %2092 = vmatprep.subr.mxu0 0.0
        %2093 = vmatpush2.xpose.msra.mxu0 0.0
        %2094 = vmatprep.subr.mxu0 0.0
        %2095 = vmatpush2.xpose.msra.mxu0 0.0
        %2096 = vmatprep.subr.mxu0 0.0
        %2097 = vmatpush2.xpose.msra.mxu0 0.0
        %2098 = vmatprep.subr.mxu0 0.0
        %2099 = vmatpush2.xpose.msra.mxu0 0.0
        %2100 = vmatprep.subr.mxu0 0.0
        %2101 = vmatpush2.xpose.msra.mxu0 0.0
        %2102 = vmatprep.subr.mxu0 0.0
        %2103 = vmatpush2.xpose.msra.mxu0 0.0
        %2104 = vmatprep.subr.mxu0 0.0
        %2105 = vmatpush2.xpose.msra.mxu0 0.0
        %2106 = vmatprep.subr.mxu0 0.0
        %2107 = vmatpush2.xpose.msra.mxu0 0.0
        %2108 = vmatprep.subr.mxu0 0.0
        %2109 = vmatpush2.xpose.msra.mxu0 0.0
        %2110 = vmatprep.subr.mxu0 0.0
        %2111 = vmatpush2.xpose.msra.mxu0 0.0
        %2112 = vmatprep.subr.mxu0 0.0
        %2113 = vmatpush2.xpose.msra.mxu0 0.0
        %2114 = vmatprep.subr.mxu0 0.0
        %2115 = vmatpush2.xpose.msra.mxu0 0.0
        %2116 = vmatprep.mubr.f32.mxu0 0.0
        %2117 = vmatmul.mubr.f32.gmra.mxu0 %v459
        %v2118 = vpop.f32.mrf.mxu0
        %v2119 = vadd.f32 %v1736, %v2118
        %v2120 = vpop.f32.mrf.mxu0
        %2121 = vdwg.mxu0
        %v2123 = vsel %vm457, %v1698, 0
        %2125 = vmatprep.subr.mxu0 0.0
        %2126 = vmatpush1.xpose.msra.mxu0 0.0
        %2127 = vmatprep.subr.mxu0 0.0
        %2128 = vmatpush1.xpose.msra.mxu0 0.0
        %2129 = vmatprep.subr.mxu0 0.0
        %2130 = vmatpush1.xpose.msra.mxu0 0.0
        %2131 = vmatprep.subr.mxu0 0.0
        %2132 = vmatpush1.xpose.msra.mxu0 0.0
        %2133 = vmatprep.subr.mxu0 0.0
        %2134 = vmatpush1.xpose.msra.mxu0 0.0
        %2135 = vmatprep.subr.mxu0 0.0
        %2136 = vmatpush1.xpose.msra.mxu0 0.0
        %2137 = vmatprep.subr.mxu0 0.0
        %2138 = vmatpush1.xpose.msra.mxu0 0.0
        %2139 = vmatprep.subr.mxu0 0.0
        %2140 = vmatpush1.xpose.msra.mxu0 0.0
        %2141 = vmatprep.subr.mxu0 0.0
        %2142 = vmatpush1.xpose.msra.mxu0 0.0
        %2143 = vmatprep.subr.mxu0 0.0
        %2144 = vmatpush1.xpose.msra.mxu0 0.0
        %2145 = vmatprep.subr.mxu0 0.0
        %2146 = vmatpush1.xpose.msra.mxu0 0.0
        %2147 = vmatprep.subr.mxu0 0.0
        %2148 = vmatpush1.xpose.msra.mxu0 0.0
        %2149 = vmatprep.subr.mxu0 0.0
        %2150 = vmatpush1.xpose.msra.mxu0 0.0
        %2151 = vmatprep.subr.mxu0 0.0
        %2152 = vmatpush1.xpose.msra.mxu0 0.0
        %2153 = vmatprep.subr.mxu0 0.0
        %2154 = vmatpush1.xpose.msra.mxu0 0.0
        %2155 = vmatprep.subr.mxu0 0.0
        %2156 = vmatpush1.xpose.msra.mxu0 %v2123
        %2157 = vmatprep.subr.mxu0 0.0
        %2158 = vmatpush2.xpose.msra.mxu0 0.0
        %2159 = vmatprep.subr.mxu0 0.0
        %2160 = vmatpush2.xpose.msra.mxu0 0.0
        %2161 = vmatprep.subr.mxu0 0.0
        %2162 = vmatpush2.xpose.msra.mxu0 0.0
        %2163 = vmatprep.subr.mxu0 0.0
        %2164 = vmatpush2.xpose.msra.mxu0 0.0
        %2165 = vmatprep.subr.mxu0 0.0
        %2166 = vmatpush2.xpose.msra.mxu0 0.0
        %2167 = vmatprep.subr.mxu0 0.0
        %2168 = vmatpush2.xpose.msra.mxu0 0.0
        %2169 = vmatprep.subr.mxu0 0.0
        %2170 = vmatpush2.xpose.msra.mxu0 0.0
        %2171 = vmatprep.subr.mxu0 0.0
        %2172 = vmatpush2.xpose.msra.mxu0 0.0
        %2173 = vmatprep.subr.mxu0 0.0
        %2174 = vmatpush2.xpose.msra.mxu0 0.0
        %2175 = vmatprep.subr.mxu0 0.0
        %2176 = vmatpush2.xpose.msra.mxu0 0.0
        %2177 = vmatprep.subr.mxu0 0.0
        %2178 = vmatpush2.xpose.msra.mxu0 0.0
        %2179 = vmatprep.subr.mxu0 0.0
        %2180 = vmatpush2.xpose.msra.mxu0 0.0
        %2181 = vmatprep.subr.mxu0 0.0
        %2182 = vmatpush2.xpose.msra.mxu0 0.0
        %2183 = vmatprep.subr.mxu0 0.0
        %2184 = vmatpush2.xpose.msra.mxu0 0.0
        %2185 = vmatprep.subr.mxu0 0.0
        %2186 = vmatpush2.xpose.msra.mxu0 0.0
        %2187 = vmatprep.subr.mxu0 0.0
        %2188 = vmatpush2.xpose.msra.mxu0 0.0
        %2189 = vmatprep.mubr.f32.mxu0 0.0
        %2190 = vmatmul.mubr.f32.gmra.mxu0 %v459
        %v2191 = vpop.f32.mrf.mxu0
        %v2192 = vadd.f32 %v1740, %v2191
        %v2193 = vpop.f32.mrf.mxu0
        %2194 = vdwg.mxu0
        %v2196 = vsel %vm457, %v1699, 0
        %2198 = vmatprep.subr.mxu0 0.0
        %2199 = vmatpush1.xpose.msra.mxu0 0.0
        %2200 = vmatprep.subr.mxu0 0.0
        %2201 = vmatpush1.xpose.msra.mxu0 0.0
        %2202 = vmatprep.subr.mxu0 0.0
        %2203 = vmatpush1.xpose.msra.mxu0 0.0
        %2204 = vmatprep.subr.mxu0 0.0
        %2205 = vmatpush1.xpose.msra.mxu0 0.0
        %2206 = vmatprep.subr.mxu0 0.0
        %2207 = vmatpush1.xpose.msra.mxu0 0.0
        %2208 = vmatprep.subr.mxu0 0.0
        %2209 = vmatpush1.xpose.msra.mxu0 0.0
        %2210 = vmatprep.subr.mxu0 0.0
        %2211 = vmatpush1.xpose.msra.mxu0 0.0
        %2212 = vmatprep.subr.mxu0 0.0
        %2213 = vmatpush1.xpose.msra.mxu0 0.0
        %2214 = vmatprep.subr.mxu0 0.0
        %2215 = vmatpush1.xpose.msra.mxu0 0.0
        %2216 = vmatprep.subr.mxu0 0.0
        %2217 = vmatpush1.xpose.msra.mxu0 0.0
        %2218 = vmatprep.subr.mxu0 0.0
        %2219 = vmatpush1.xpose.msra.mxu0 0.0
        %2220 = vmatprep.subr.mxu0 0.0
        %2221 = vmatpush1.xpose.msra.mxu0 0.0
        %2222 = vmatprep.subr.mxu0 0.0
        %2223 = vmatpush1.xpose.msra.mxu0 0.0
        %2224 = vmatprep.subr.mxu0 0.0
        %2225 = vmatpush1.xpose.msra.mxu0 0.0
        %2226 = vmatprep.subr.mxu0 0.0
        %2227 = vmatpush1.xpose.msra.mxu0 0.0
        %2228 = vmatprep.subr.mxu0 0.0
        %2229 = vmatpush1.xpose.msra.mxu0 %v2196
        %2230 = vmatprep.subr.mxu0 0.0
        %2231 = vmatpush2.xpose.msra.mxu0 0.0
        %2232 = vmatprep.subr.mxu0 0.0
        %2233 = vmatpush2.xpose.msra.mxu0 0.0
        %2234 = vmatprep.subr.mxu0 0.0
        %2235 = vmatpush2.xpose.msra.mxu0 0.0
        %2236 = vmatprep.subr.mxu0 0.0
        %2237 = vmatpush2.xpose.msra.mxu0 0.0
        %2238 = vmatprep.subr.mxu0 0.0
        %2239 = vmatpush2.xpose.msra.mxu0 0.0
        %2240 = vmatprep.subr.mxu0 0.0
        %2241 = vmatpush2.xpose.msra.mxu0 0.0
        %2242 = vmatprep.subr.mxu0 0.0
        %2243 = vmatpush2.xpose.msra.mxu0 0.0
        %2244 = vmatprep.subr.mxu0 0.0
        %2245 = vmatpush2.xpose.msra.mxu0 0.0
        %2246 = vmatprep.subr.mxu0 0.0
        %2247 = vmatpush2.xpose.msra.mxu0 0.0
        %2248 = vmatprep.subr.mxu0 0.0
        %2249 = vmatpush2.xpose.msra.mxu0 0.0
        %2250 = vmatprep.subr.mxu0 0.0
        %2251 = vmatpush2.xpose.msra.mxu0 0.0
        %2252 = vmatprep.subr.mxu0 0.0
        %2253 = vmatpush2.xpose.msra.mxu0 0.0
        %2254 = vmatprep.subr.mxu0 0.0
        %2255 = vmatpush2.xpose.msra.mxu0 0.0
        %2256 = vmatprep.subr.mxu0 0.0
        %2257 = vmatpush2.xpose.msra.mxu0 0.0
        %2258 = vmatprep.subr.mxu0 0.0
        %2259 = vmatpush2.xpose.msra.mxu0 0.0
        %2260 = vmatprep.subr.mxu0 0.0
        %2261 = vmatpush2.xpose.msra.mxu0 0.0
        %2262 = vmatprep.mubr.f32.mxu0 0.0
        %2263 = vmatmul.mubr.f32.gmra.mxu0 %v459
        %v2264 = vpop.f32.mrf.mxu0
        %v2265 = vadd.f32 %v1744, %v2264
        %v2266 = vpop.f32.mrf.mxu0
        %2267 = vdwg.mxu0
        %v2269 = vsel %vm457, %v1700, 0
        %2271 = vmatprep.subr.mxu0 0.0
        %2272 = vmatpush1.xpose.msra.mxu0 0.0
        %2273 = vmatprep.subr.mxu0 0.0
        %2274 = vmatpush1.xpose.msra.mxu0 0.0
        %2275 = vmatprep.subr.mxu0 0.0
        %2276 = vmatpush1.xpose.msra.mxu0 0.0
        %2277 = vmatprep.subr.mxu0 0.0
        %2278 = vmatpush1.xpose.msra.mxu0 0.0
        %2279 = vmatprep.subr.mxu0 0.0
        %2280 = vmatpush1.xpose.msra.mxu0 0.0
        %2281 = vmatprep.subr.mxu0 0.0
        %2282 = vmatpush1.xpose.msra.mxu0 0.0
        %2283 = vmatprep.subr.mxu0 0.0
        %2284 = vmatpush1.xpose.msra.mxu0 0.0
        %2285 = vmatprep.subr.mxu0 0.0
        %2286 = vmatpush1.xpose.msra.mxu0 0.0
        %2287 = vmatprep.subr.mxu0 0.0
        %2288 = vmatpush1.xpose.msra.mxu0 0.0
        %2289 = vmatprep.subr.mxu0 0.0
        %2290 = vmatpush1.xpose.msra.mxu0 0.0
        %2291 = vmatprep.subr.mxu0 0.0
        %2292 = vmatpush1.xpose.msra.mxu0 0.0
        %2293 = vmatprep.subr.mxu0 0.0
        %2294 = vmatpush1.xpose.msra.mxu0 0.0
        %2295 = vmatprep.subr.mxu0 0.0
        %2296 = vmatpush1.xpose.msra.mxu0 0.0
        %2297 = vmatprep.subr.mxu0 0.0
        %2298 = vmatpush1.xpose.msra.mxu0 0.0
        %2299 = vmatprep.subr.mxu0 0.0
        %2300 = vmatpush1.xpose.msra.mxu0 0.0
        %2301 = vmatprep.subr.mxu0 0.0
        %2302 = vmatpush1.xpose.msra.mxu0 %v2269
        %2303 = vmatprep.subr.mxu0 0.0
        %2304 = vmatpush2.xpose.msra.mxu0 0.0
        %2305 = vmatprep.subr.mxu0 0.0
        %2306 = vmatpush2.xpose.msra.mxu0 0.0
        %2307 = vmatprep.subr.mxu0 0.0
        %2308 = vmatpush2.xpose.msra.mxu0 0.0
        %2309 = vmatprep.subr.mxu0 0.0
        %2310 = vmatpush2.xpose.msra.mxu0 0.0
        %2311 = vmatprep.subr.mxu0 0.0
        %2312 = vmatpush2.xpose.msra.mxu0 0.0
        %2313 = vmatprep.subr.mxu0 0.0
        %2314 = vmatpush2.xpose.msra.mxu0 0.0
        %2315 = vmatprep.subr.mxu0 0.0
        %2316 = vmatpush2.xpose.msra.mxu0 0.0
        %2317 = vmatprep.subr.mxu0 0.0
        %2318 = vmatpush2.xpose.msra.mxu0 0.0
        %2319 = vmatprep.subr.mxu0 0.0
        %2320 = vmatpush2.xpose.msra.mxu0 0.0
        %2321 = vmatprep.subr.mxu0 0.0
        %2322 = vmatpush2.xpose.msra.mxu0 0.0
        %2323 = vmatprep.subr.mxu0 0.0
        %2324 = vmatpush2.xpose.msra.mxu0 0.0
        %2325 = vmatprep.subr.mxu0 0.0
        %2326 = vmatpush2.xpose.msra.mxu0 0.0
        %2327 = vmatprep.subr.mxu0 0.0
        %2328 = vmatpush2.xpose.msra.mxu0 0.0
        %2329 = vmatprep.subr.mxu0 0.0
        %2330 = vmatpush2.xpose.msra.mxu0 0.0
        %2331 = vmatprep.subr.mxu0 0.0
        %2332 = vmatpush2.xpose.msra.mxu0 0.0
        %2333 = vmatprep.subr.mxu0 0.0
        %2334 = vmatpush2.xpose.msra.mxu0 0.0
        %2335 = vmatprep.mubr.f32.mxu0 0.0
        %2336 = vmatmul.mubr.f32.gmra.mxu0 %v459
        %v2337 = vpop.f32.mrf.mxu0
        %v2338 = vadd.f32 %v1748, %v2337
        %v2339 = vpop.f32.mrf.mxu0
        %2340 = vdwg.mxu0
        %vm2341 = vcmask 31744
        %v2343 = vsel %vm2341, %v531, 0
        %v2346 = vsel %vm2341, %v1179, 0
        %2348 = vmatprep.subr.mxu0 0.0
        %2349 = vmatpush1.xpose.msra.mxu0 0.0
        %2350 = vmatprep.subr.mxu0 0.0
        %2351 = vmatpush1.xpose.msra.mxu0 0.0
        %2352 = vmatprep.subr.mxu0 0.0
        %2353 = vmatpush1.xpose.msra.mxu0 0.0
        %2354 = vmatprep.subr.mxu0 0.0
        %2355 = vmatpush1.xpose.msra.mxu0 0.0
        %2356 = vmatprep.subr.mxu0 0.0
        %2357 = vmatpush1.xpose.msra.mxu0 0.0
        %2358 = vmatprep.subr.mxu0 0.0
        %2359 = vmatpush1.xpose.msra.mxu0 0.0
        %2360 = vmatprep.subr.mxu0 0.0
        %2361 = vmatpush1.xpose.msra.mxu0 0.0
        %2362 = vmatprep.subr.mxu0 0.0
        %2363 = vmatpush1.xpose.msra.mxu0 0.0
        %2364 = vmatprep.subr.mxu0 0.0
        %2365 = vmatpush1.xpose.msra.mxu0 0.0
        %2366 = vmatprep.subr.mxu0 0.0
        %2367 = vmatpush1.xpose.msra.mxu0 0.0
        %2368 = vmatprep.subr.mxu0 0.0
        %2369 = vmatpush1.xpose.msra.mxu0 0.0
        %2370 = vmatprep.subr.mxu0 0.0
        %2371 = vmatpush1.xpose.msra.mxu0 0.0
        %2372 = vmatprep.subr.mxu0 0.0
        %2373 = vmatpush1.xpose.msra.mxu0 0.0
        %2374 = vmatprep.subr.mxu0 0.0
        %2375 = vmatpush1.xpose.msra.mxu0 0.0
        %2376 = vmatprep.subr.mxu0 0.0
        %2377 = vmatpush1.xpose.msra.mxu0 0.0
        %2378 = vmatprep.subr.mxu0 0.0
        %2379 = vmatpush1.xpose.msra.mxu0 %v2346
        %2380 = vmatprep.subr.mxu0 0.0
        %2381 = vmatpush2.xpose.msra.mxu0 0.0
        %2382 = vmatprep.subr.mxu0 0.0
        %2383 = vmatpush2.xpose.msra.mxu0 0.0
        %2384 = vmatprep.subr.mxu0 0.0
        %2385 = vmatpush2.xpose.msra.mxu0 0.0
        %2386 = vmatprep.subr.mxu0 0.0
        %2387 = vmatpush2.xpose.msra.mxu0 0.0
        %2388 = vmatprep.subr.mxu0 0.0
        %2389 = vmatpush2.xpose.msra.mxu0 0.0
        %2390 = vmatprep.subr.mxu0 0.0
        %2391 = vmatpush2.xpose.msra.mxu0 0.0
        %2392 = vmatprep.subr.mxu0 0.0
        %2393 = vmatpush2.xpose.msra.mxu0 0.0
        %2394 = vmatprep.subr.mxu0 0.0
        %2395 = vmatpush2.xpose.msra.mxu0 0.0
        %2396 = vmatprep.subr.mxu0 0.0
        %2397 = vmatpush2.xpose.msra.mxu0 0.0
        %2398 = vmatprep.subr.mxu0 0.0
        %2399 = vmatpush2.xpose.msra.mxu0 0.0
        %2400 = vmatprep.subr.mxu0 0.0
        %2401 = vmatpush2.xpose.msra.mxu0 0.0
        %2402 = vmatprep.subr.mxu0 0.0
        %2403 = vmatpush2.xpose.msra.mxu0 0.0
        %2404 = vmatprep.subr.mxu0 0.0
        %2405 = vmatpush2.xpose.msra.mxu0 0.0
        %2406 = vmatprep.subr.mxu0 0.0
        %2407 = vmatpush2.xpose.msra.mxu0 0.0
        %2408 = vmatprep.subr.mxu0 0.0
        %2409 = vmatpush2.xpose.msra.mxu0 0.0
        %2410 = vmatprep.subr.mxu0 0.0
        %2411 = vmatpush2.xpose.msra.mxu0 0.0
        %2412 = vmatprep.mubr.f32.mxu0 0.0
        %2413 = vmatmul.mubr.f32.gmra.mxu0 %v2343
        %v2414 = vpop.f32.mrf.mxu0
        %v2415 = vadd.f32 0.0, %v2414
        %v2416 = vpop.f32.mrf.mxu0
        %2417 = vdwg.mxu0
        %v2419 = vsel %vm2341, %v604, 0
        %v2422 = vsel %vm2341, %v1252, 0
        %2424 = vmatprep.subr.mxu0 0.0
        %2425 = vmatpush1.xpose.msra.mxu0 0.0
        %2426 = vmatprep.subr.mxu0 0.0
        %2427 = vmatpush1.xpose.msra.mxu0 0.0
        %2428 = vmatprep.subr.mxu0 0.0
        %2429 = vmatpush1.xpose.msra.mxu0 0.0
        %2430 = vmatprep.subr.mxu0 0.0
        %2431 = vmatpush1.xpose.msra.mxu0 0.0
        %2432 = vmatprep.subr.mxu0 0.0
        %2433 = vmatpush1.xpose.msra.mxu0 0.0
        %2434 = vmatprep.subr.mxu0 0.0
        %2435 = vmatpush1.xpose.msra.mxu0 0.0
        %2436 = vmatprep.subr.mxu0 0.0
        %2437 = vmatpush1.xpose.msra.mxu0 0.0
        %2438 = vmatprep.subr.mxu0 0.0
        %2439 = vmatpush1.xpose.msra.mxu0 0.0
        %2440 = vmatprep.subr.mxu0 0.0
        %2441 = vmatpush1.xpose.msra.mxu0 0.0
        %2442 = vmatprep.subr.mxu0 0.0
        %2443 = vmatpush1.xpose.msra.mxu0 0.0
        %2444 = vmatprep.subr.mxu0 0.0
        %2445 = vmatpush1.xpose.msra.mxu0 0.0
        %2446 = vmatprep.subr.mxu0 0.0
        %2447 = vmatpush1.xpose.msra.mxu0 0.0
        %2448 = vmatprep.subr.mxu0 0.0
        %2449 = vmatpush1.xpose.msra.mxu0 0.0
        %2450 = vmatprep.subr.mxu0 0.0
        %2451 = vmatpush1.xpose.msra.mxu0 0.0
        %2452 = vmatprep.subr.mxu0 0.0
        %2453 = vmatpush1.xpose.msra.mxu0 0.0
        %2454 = vmatprep.subr.mxu0 0.0
        %2455 = vmatpush1.xpose.msra.mxu0 %v2422
        %2456 = vmatprep.subr.mxu0 0.0
        %2457 = vmatpush2.xpose.msra.mxu0 0.0
        %2458 = vmatprep.subr.mxu0 0.0
        %2459 = vmatpush2.xpose.msra.mxu0 0.0
        %2460 = vmatprep.subr.mxu0 0.0
        %2461 = vmatpush2.xpose.msra.mxu0 0.0
        %2462 = vmatprep.subr.mxu0 0.0
        %2463 = vmatpush2.xpose.msra.mxu0 0.0
        %2464 = vmatprep.subr.mxu0 0.0
        %2465 = vmatpush2.xpose.msra.mxu0 0.0
        %2466 = vmatprep.subr.mxu0 0.0
        %2467 = vmatpush2.xpose.msra.mxu0 0.0
        %2468 = vmatprep.subr.mxu0 0.0
        %2469 = vmatpush2.xpose.msra.mxu0 0.0
        %2470 = vmatprep.subr.mxu0 0.0
        %2471 = vmatpush2.xpose.msra.mxu0 0.0
        %2472 = vmatprep.subr.mxu0 0.0
        %2473 = vmatpush2.xpose.msra.mxu0 0.0
        %2474 = vmatprep.subr.mxu0 0.0
        %2475 = vmatpush2.xpose.msra.mxu0 0.0
        %2476 = vmatprep.subr.mxu0 0.0
        %2477 = vmatpush2.xpose.msra.mxu0 0.0
        %2478 = vmatprep.subr.mxu0 0.0
        %2479 = vmatpush2.xpose.msra.mxu0 0.0
        %2480 = vmatprep.subr.mxu0 0.0
        %2481 = vmatpush2.xpose.msra.mxu0 0.0
        %2482 = vmatprep.subr.mxu0 0.0
        %2483 = vmatpush2.xpose.msra.mxu0 0.0
        %2484 = vmatprep.subr.mxu0 0.0
        %2485 = vmatpush2.xpose.msra.mxu0 0.0
        %2486 = vmatprep.subr.mxu0 0.0
        %2487 = vmatpush2.xpose.msra.mxu0 0.0
        %2488 = vmatprep.mubr.f32.mxu0 0.0
        %2489 = vmatmul.mubr.f32.gmra.mxu0 %v2419
        %v2490 = vpop.f32.mrf.mxu0
        %v2491 = vadd.f32 0.0, %v2490
        %v2492 = vpop.f32.mrf.mxu0
        %2493 = vdwg.mxu0
        %v2495 = vsel %vm2341, %v677, 0
        %v2498 = vsel %vm2341, %v1325, 0
        %2500 = vmatprep.subr.mxu0 0.0
        %2501 = vmatpush1.xpose.msra.mxu0 0.0
        %2502 = vmatprep.subr.mxu0 0.0
        %2503 = vmatpush1.xpose.msra.mxu0 0.0
        %2504 = vmatprep.subr.mxu0 0.0
        %2505 = vmatpush1.xpose.msra.mxu0 0.0
        %2506 = vmatprep.subr.mxu0 0.0
        %2507 = vmatpush1.xpose.msra.mxu0 0.0
        %2508 = vmatprep.subr.mxu0 0.0
        %2509 = vmatpush1.xpose.msra.mxu0 0.0
        %2510 = vmatprep.subr.mxu0 0.0
        %2511 = vmatpush1.xpose.msra.mxu0 0.0
        %2512 = vmatprep.subr.mxu0 0.0
        %2513 = vmatpush1.xpose.msra.mxu0 0.0
        %2514 = vmatprep.subr.mxu0 0.0
        %2515 = vmatpush1.xpose.msra.mxu0 0.0
        %2516 = vmatprep.subr.mxu0 0.0
        %2517 = vmatpush1.xpose.msra.mxu0 0.0
        %2518 = vmatprep.subr.mxu0 0.0
        %2519 = vmatpush1.xpose.msra.mxu0 0.0
        %2520 = vmatprep.subr.mxu0 0.0
        %2521 = vmatpush1.xpose.msra.mxu0 0.0
        %2522 = vmatprep.subr.mxu0 0.0
        %2523 = vmatpush1.xpose.msra.mxu0 0.0
        %2524 = vmatprep.subr.mxu0 0.0
        %2525 = vmatpush1.xpose.msra.mxu0 0.0
        %2526 = vmatprep.subr.mxu0 0.0
        %2527 = vmatpush1.xpose.msra.mxu0 0.0
        %2528 = vmatprep.subr.mxu0 0.0
        %2529 = vmatpush1.xpose.msra.mxu0 0.0
        %2530 = vmatprep.subr.mxu0 0.0
        %2531 = vmatpush1.xpose.msra.mxu0 %v2498
        %2532 = vmatprep.subr.mxu0 0.0
        %2533 = vmatpush2.xpose.msra.mxu0 0.0
        %2534 = vmatprep.subr.mxu0 0.0
        %2535 = vmatpush2.xpose.msra.mxu0 0.0
        %2536 = vmatprep.subr.mxu0 0.0
        %2537 = vmatpush2.xpose.msra.mxu0 0.0
        %2538 = vmatprep.subr.mxu0 0.0
        %2539 = vmatpush2.xpose.msra.mxu0 0.0
        %2540 = vmatprep.subr.mxu0 0.0
        %2541 = vmatpush2.xpose.msra.mxu0 0.0
        %2542 = vmatprep.subr.mxu0 0.0
        %2543 = vmatpush2.xpose.msra.mxu0 0.0
        %2544 = vmatprep.subr.mxu0 0.0
        %2545 = vmatpush2.xpose.msra.mxu0 0.0
        %2546 = vmatprep.subr.mxu0 0.0
        %2547 = vmatpush2.xpose.msra.mxu0 0.0
        %2548 = vmatprep.subr.mxu0 0.0
        %2549 = vmatpush2.xpose.msra.mxu0 0.0
        %2550 = vmatprep.subr.mxu0 0.0
        %2551 = vmatpush2.xpose.msra.mxu0 0.0
        %2552 = vmatprep.subr.mxu0 0.0
        %2553 = vmatpush2.xpose.msra.mxu0 0.0
        %2554 = vmatprep.subr.mxu0 0.0
        %2555 = vmatpush2.xpose.msra.mxu0 0.0
        %2556 = vmatprep.subr.mxu0 0.0
        %2557 = vmatpush2.xpose.msra.mxu0 0.0
        %2558 = vmatprep.subr.mxu0 0.0
        %2559 = vmatpush2.xpose.msra.mxu0 0.0
        %2560 = vmatprep.subr.mxu0 0.0
        %2561 = vmatpush2.xpose.msra.mxu0 0.0
        %2562 = vmatprep.subr.mxu0 0.0
        %2563 = vmatpush2.xpose.msra.mxu0 0.0
        %2564 = vmatprep.mubr.f32.mxu0 0.0
        %2565 = vmatmul.mubr.f32.gmra.mxu0 %v2495
        %v2566 = vpop.f32.mrf.mxu0
        %v2567 = vadd.f32 0.0, %v2566
        %v2568 = vpop.f32.mrf.mxu0
        %2569 = vdwg.mxu0
        %v2571 = vsel %vm2341, %v750, 0
        %v2574 = vsel %vm2341, %v1398, 0
        %2576 = vmatprep.subr.mxu0 0.0
        %2577 = vmatpush1.xpose.msra.mxu0 0.0
        %2578 = vmatprep.subr.mxu0 0.0
        %2579 = vmatpush1.xpose.msra.mxu0 0.0
        %2580 = vmatprep.subr.mxu0 0.0
        %2581 = vmatpush1.xpose.msra.mxu0 0.0
        %2582 = vmatprep.subr.mxu0 0.0
        %2583 = vmatpush1.xpose.msra.mxu0 0.0
        %2584 = vmatprep.subr.mxu0 0.0
        %2585 = vmatpush1.xpose.msra.mxu0 0.0
        %2586 = vmatprep.subr.mxu0 0.0
        %2587 = vmatpush1.xpose.msra.mxu0 0.0
        %2588 = vmatprep.subr.mxu0 0.0
        %2589 = vmatpush1.xpose.msra.mxu0 0.0
        %2590 = vmatprep.subr.mxu0 0.0
        %2591 = vmatpush1.xpose.msra.mxu0 0.0
        %2592 = vmatprep.subr.mxu0 0.0
        %2593 = vmatpush1.xpose.msra.mxu0 0.0
        %2594 = vmatprep.subr.mxu0 0.0
        %2595 = vmatpush1.xpose.msra.mxu0 0.0
        %2596 = vmatprep.subr.mxu0 0.0
        %2597 = vmatpush1.xpose.msra.mxu0 0.0
        %2598 = vmatprep.subr.mxu0 0.0
        %2599 = vmatpush1.xpose.msra.mxu0 0.0
        %2600 = vmatprep.subr.mxu0 0.0
        %2601 = vmatpush1.xpose.msra.mxu0 0.0
        %2602 = vmatprep.subr.mxu0 0.0
        %2603 = vmatpush1.xpose.msra.mxu0 0.0
        %2604 = vmatprep.subr.mxu0 0.0
        %2605 = vmatpush1.xpose.msra.mxu0 0.0
        %2606 = vmatprep.subr.mxu0 0.0
        %2607 = vmatpush1.xpose.msra.mxu0 %v2574
        %2608 = vmatprep.subr.mxu0 0.0
        %2609 = vmatpush2.xpose.msra.mxu0 0.0
        %2610 = vmatprep.subr.mxu0 0.0
        %2611 = vmatpush2.xpose.msra.mxu0 0.0
        %2612 = vmatprep.subr.mxu0 0.0
        %2613 = vmatpush2.xpose.msra.mxu0 0.0
        %2614 = vmatprep.subr.mxu0 0.0
        %2615 = vmatpush2.xpose.msra.mxu0 0.0
        %2616 = vmatprep.subr.mxu0 0.0
        %2617 = vmatpush2.xpose.msra.mxu0 0.0
        %2618 = vmatprep.subr.mxu0 0.0
        %2619 = vmatpush2.xpose.msra.mxu0 0.0
        %2620 = vmatprep.subr.mxu0 0.0
        %2621 = vmatpush2.xpose.msra.mxu0 0.0
        %2622 = vmatprep.subr.mxu0 0.0
        %2623 = vmatpush2.xpose.msra.mxu0 0.0
        %2624 = vmatprep.subr.mxu0 0.0
        %2625 = vmatpush2.xpose.msra.mxu0 0.0
        %2626 = vmatprep.subr.mxu0 0.0
        %2627 = vmatpush2.xpose.msra.mxu0 0.0
        %2628 = vmatprep.subr.mxu0 0.0
        %2629 = vmatpush2.xpose.msra.mxu0 0.0
        %2630 = vmatprep.subr.mxu0 0.0
        %2631 = vmatpush2.xpose.msra.mxu0 0.0
        %2632 = vmatprep.subr.mxu0 0.0
        %2633 = vmatpush2.xpose.msra.mxu0 0.0
        %2634 = vmatprep.subr.mxu0 0.0
        %2635 = vmatpush2.xpose.msra.mxu0 0.0
        %2636 = vmatprep.subr.mxu0 0.0
        %2637 = vmatpush2.xpose.msra.mxu0 0.0
        %2638 = vmatprep.subr.mxu0 0.0
        %2639 = vmatpush2.xpose.msra.mxu0 0.0
        %2640 = vmatprep.mubr.f32.mxu0 0.0
        %2641 = vmatmul.mubr.f32.gmra.mxu0 %v2571
        %v2642 = vpop.f32.mrf.mxu0
        %v2643 = vadd.f32 0.0, %v2642
        %v2644 = vpop.f32.mrf.mxu0
        %2645 = vdwg.mxu0
        %v2647 = vsel %vm2341, %v823, 0
        %v2650 = vsel %vm2341, %v1471, 0
        %2652 = vmatprep.subr.mxu0 0.0
        %2653 = vmatpush1.xpose.msra.mxu0 0.0
        %2654 = vmatprep.subr.mxu0 0.0
        %2655 = vmatpush1.xpose.msra.mxu0 0.0
        %2656 = vmatprep.subr.mxu0 0.0
        %2657 = vmatpush1.xpose.msra.mxu0 0.0
        %2658 = vmatprep.subr.mxu0 0.0
        %2659 = vmatpush1.xpose.msra.mxu0 0.0
        %2660 = vmatprep.subr.mxu0 0.0
        %2661 = vmatpush1.xpose.msra.mxu0 0.0
        %2662 = vmatprep.subr.mxu0 0.0
        %2663 = vmatpush1.xpose.msra.mxu0 0.0
        %2664 = vmatprep.subr.mxu0 0.0
        %2665 = vmatpush1.xpose.msra.mxu0 0.0
        %2666 = vmatprep.subr.mxu0 0.0
        %2667 = vmatpush1.xpose.msra.mxu0 0.0
        %2668 = vmatprep.subr.mxu0 0.0
        %2669 = vmatpush1.xpose.msra.mxu0 0.0
        %2670 = vmatprep.subr.mxu0 0.0
        %2671 = vmatpush1.xpose.msra.mxu0 0.0
        %2672 = vmatprep.subr.mxu0 0.0
        %2673 = vmatpush1.xpose.msra.mxu0 0.0
        %2674 = vmatprep.subr.mxu0 0.0
        %2675 = vmatpush1.xpose.msra.mxu0 0.0
        %2676 = vmatprep.subr.mxu0 0.0
        %2677 = vmatpush1.xpose.msra.mxu0 0.0
        %2678 = vmatprep.subr.mxu0 0.0
        %2679 = vmatpush1.xpose.msra.mxu0 0.0
        %2680 = vmatprep.subr.mxu0 0.0
        %2681 = vmatpush1.xpose.msra.mxu0 0.0
        %2682 = vmatprep.subr.mxu0 0.0
        %2683 = vmatpush1.xpose.msra.mxu0 %v2650
        %2684 = vmatprep.subr.mxu0 0.0
        %2685 = vmatpush2.xpose.msra.mxu0 0.0
        %2686 = vmatprep.subr.mxu0 0.0
        %2687 = vmatpush2.xpose.msra.mxu0 0.0
        %2688 = vmatprep.subr.mxu0 0.0
        %2689 = vmatpush2.xpose.msra.mxu0 0.0
        %2690 = vmatprep.subr.mxu0 0.0
        %2691 = vmatpush2.xpose.msra.mxu0 0.0
        %2692 = vmatprep.subr.mxu0 0.0
        %2693 = vmatpush2.xpose.msra.mxu0 0.0
        %2694 = vmatprep.subr.mxu0 0.0
        %2695 = vmatpush2.xpose.msra.mxu0 0.0
        %2696 = vmatprep.subr.mxu0 0.0
        %2697 = vmatpush2.xpose.msra.mxu0 0.0
        %2698 = vmatprep.subr.mxu0 0.0
        %2699 = vmatpush2.xpose.msra.mxu0 0.0
        %2700 = vmatprep.subr.mxu0 0.0
        %2701 = vmatpush2.xpose.msra.mxu0 0.0
        %2702 = vmatprep.subr.mxu0 0.0
        %2703 = vmatpush2.xpose.msra.mxu0 0.0
        %2704 = vmatprep.subr.mxu0 0.0
        %2705 = vmatpush2.xpose.msra.mxu0 0.0
        %2706 = vmatprep.subr.mxu0 0.0
        %2707 = vmatpush2.xpose.msra.mxu0 0.0
        %2708 = vmatprep.subr.mxu0 0.0
        %2709 = vmatpush2.xpose.msra.mxu0 0.0
        %2710 = vmatprep.subr.mxu0 0.0
        %2711 = vmatpush2.xpose.msra.mxu0 0.0
        %2712 = vmatprep.subr.mxu0 0.0
        %2713 = vmatpush2.xpose.msra.mxu0 0.0
        %2714 = vmatprep.subr.mxu0 0.0
        %2715 = vmatpush2.xpose.msra.mxu0 0.0
        %2716 = vmatprep.mubr.f32.mxu0 0.0
        %2717 = vmatmul.mubr.f32.gmra.mxu0 %v2647
        %v2718 = vpop.f32.mrf.mxu0
        %v2719 = vadd.f32 0.0, %v2718
        %v2720 = vpop.f32.mrf.mxu0
        %2721 = vdwg.mxu0
        %v2723 = vsel %vm2341, %v896, 0
        %v2726 = vsel %vm2341, %v1544, 0
        %2728 = vmatprep.subr.mxu0 0.0
        %2729 = vmatpush1.xpose.msra.mxu0 0.0
        %2730 = vmatprep.subr.mxu0 0.0
        %2731 = vmatpush1.xpose.msra.mxu0 0.0
        %2732 = vmatprep.subr.mxu0 0.0
        %2733 = vmatpush1.xpose.msra.mxu0 0.0
        %2734 = vmatprep.subr.mxu0 0.0
        %2735 = vmatpush1.xpose.msra.mxu0 0.0
        %2736 = vmatprep.subr.mxu0 0.0
        %2737 = vmatpush1.xpose.msra.mxu0 0.0
        %2738 = vmatprep.subr.mxu0 0.0
        %2739 = vmatpush1.xpose.msra.mxu0 0.0
        %2740 = vmatprep.subr.mxu0 0.0
        %2741 = vmatpush1.xpose.msra.mxu0 0.0
        %2742 = vmatprep.subr.mxu0 0.0
        %2743 = vmatpush1.xpose.msra.mxu0 0.0
        %2744 = vmatprep.subr.mxu0 0.0
        %2745 = vmatpush1.xpose.msra.mxu0 0.0
        %2746 = vmatprep.subr.mxu0 0.0
        %2747 = vmatpush1.xpose.msra.mxu0 0.0
        %2748 = vmatprep.subr.mxu0 0.0
        %2749 = vmatpush1.xpose.msra.mxu0 0.0
        %2750 = vmatprep.subr.mxu0 0.0
        %2751 = vmatpush1.xpose.msra.mxu0 0.0
        %2752 = vmatprep.subr.mxu0 0.0
        %2753 = vmatpush1.xpose.msra.mxu0 0.0
        %2754 = vmatprep.subr.mxu0 0.0
        %2755 = vmatpush1.xpose.msra.mxu0 0.0
        %2756 = vmatprep.subr.mxu0 0.0
        %2757 = vmatpush1.xpose.msra.mxu0 0.0
        %2758 = vmatprep.subr.mxu0 0.0
        %2759 = vmatpush1.xpose.msra.mxu0 %v2726
        %2760 = vmatprep.subr.mxu0 0.0
        %2761 = vmatpush2.xpose.msra.mxu0 0.0
        %2762 = vmatprep.subr.mxu0 0.0
        %2763 = vmatpush2.xpose.msra.mxu0 0.0
        %2764 = vmatprep.subr.mxu0 0.0
        %2765 = vmatpush2.xpose.msra.mxu0 0.0
        %2766 = vmatprep.subr.mxu0 0.0
        %2767 = vmatpush2.xpose.msra.mxu0 0.0
        %2768 = vmatprep.subr.mxu0 0.0
        %2769 = vmatpush2.xpose.msra.mxu0 0.0
        %2770 = vmatprep.subr.mxu0 0.0
        %2771 = vmatpush2.xpose.msra.mxu0 0.0
        %2772 = vmatprep.subr.mxu0 0.0
        %2773 = vmatpush2.xpose.msra.mxu0 0.0
        %2774 = vmatprep.subr.mxu0 0.0
        %2775 = vmatpush2.xpose.msra.mxu0 0.0
        %2776 = vmatprep.subr.mxu0 0.0
        %2777 = vmatpush2.xpose.msra.mxu0 0.0
        %2778 = vmatprep.subr.mxu0 0.0
        %2779 = vmatpush2.xpose.msra.mxu0 0.0
        %2780 = vmatprep.subr.mxu0 0.0
        %2781 = vmatpush2.xpose.msra.mxu0 0.0
        %2782 = vmatprep.subr.mxu0 0.0
        %2783 = vmatpush2.xpose.msra.mxu0 0.0
        %2784 = vmatprep.subr.mxu0 0.0
        %2785 = vmatpush2.xpose.msra.mxu0 0.0
        %2786 = vmatprep.subr.mxu0 0.0
        %2787 = vmatpush2.xpose.msra.mxu0 0.0
        %2788 = vmatprep.subr.mxu0 0.0
        %2789 = vmatpush2.xpose.msra.mxu0 0.0
        %2790 = vmatprep.subr.mxu0 0.0
        %2791 = vmatpush2.xpose.msra.mxu0 0.0
        %2792 = vmatprep.mubr.f32.mxu0 0.0
        %2793 = vmatmul.mubr.f32.gmra.mxu0 %v2723
        %v2794 = vpop.f32.mrf.mxu0
        %v2795 = vadd.f32 0.0, %v2794
        %v2796 = vpop.f32.mrf.mxu0
        %2797 = vdwg.mxu0
        %v2799 = vsel %vm2341, %v969, 0
        %v2802 = vsel %vm2341, %v1617, 0
        %2804 = vmatprep.subr.mxu0 0.0
        %2805 = vmatpush1.xpose.msra.mxu0 0.0
        %2806 = vmatprep.subr.mxu0 0.0
        %2807 = vmatpush1.xpose.msra.mxu0 0.0
        %2808 = vmatprep.subr.mxu0 0.0
        %2809 = vmatpush1.xpose.msra.mxu0 0.0
        %2810 = vmatprep.subr.mxu0 0.0
        %2811 = vmatpush1.xpose.msra.mxu0 0.0
        %2812 = vmatprep.subr.mxu0 0.0
        %2813 = vmatpush1.xpose.msra.mxu0 0.0
        %2814 = vmatprep.subr.mxu0 0.0
        %2815 = vmatpush1.xpose.msra.mxu0 0.0
        %2816 = vmatprep.subr.mxu0 0.0
        %2817 = vmatpush1.xpose.msra.mxu0 0.0
        %2818 = vmatprep.subr.mxu0 0.0
        %2819 = vmatpush1.xpose.msra.mxu0 0.0
        %2820 = vmatprep.subr.mxu0 0.0
        %2821 = vmatpush1.xpose.msra.mxu0 0.0
        %2822 = vmatprep.subr.mxu0 0.0
        %2823 = vmatpush1.xpose.msra.mxu0 0.0
        %2824 = vmatprep.subr.mxu0 0.0
        %2825 = vmatpush1.xpose.msra.mxu0 0.0
        %2826 = vmatprep.subr.mxu0 0.0
        %2827 = vmatpush1.xpose.msra.mxu0 0.0
        %2828 = vmatprep.subr.mxu0 0.0
        %2829 = vmatpush1.xpose.msra.mxu0 0.0
        %2830 = vmatprep.subr.mxu0 0.0
        %2831 = vmatpush1.xpose.msra.mxu0 0.0
        %2832 = vmatprep.subr.mxu0 0.0
        %2833 = vmatpush1.xpose.msra.mxu0 0.0
        %2834 = vmatprep.subr.mxu0 0.0
        %2835 = vmatpush1.xpose.msra.mxu0 %v2802
        %2836 = vmatprep.subr.mxu0 0.0
        %2837 = vmatpush2.xpose.msra.mxu0 0.0
        %2838 = vmatprep.subr.mxu0 0.0
        %2839 = vmatpush2.xpose.msra.mxu0 0.0
        %2840 = vmatprep.subr.mxu0 0.0
        %2841 = vmatpush2.xpose.msra.mxu0 0.0
        %2842 = vmatprep.subr.mxu0 0.0
        %2843 = vmatpush2.xpose.msra.mxu0 0.0
        %2844 = vmatprep.subr.mxu0 0.0
        %2845 = vmatpush2.xpose.msra.mxu0 0.0
        %2846 = vmatprep.subr.mxu0 0.0
        %2847 = vmatpush2.xpose.msra.mxu0 0.0
        %2848 = vmatprep.subr.mxu0 0.0
        %2849 = vmatpush2.xpose.msra.mxu0 0.0
        %2850 = vmatprep.subr.mxu0 0.0
        %2851 = vmatpush2.xpose.msra.mxu0 0.0
        %2852 = vmatprep.subr.mxu0 0.0
        %2853 = vmatpush2.xpose.msra.mxu0 0.0
        %2854 = vmatprep.subr.mxu0 0.0
        %2855 = vmatpush2.xpose.msra.mxu0 0.0
        %2856 = vmatprep.subr.mxu0 0.0
        %2857 = vmatpush2.xpose.msra.mxu0 0.0
        %2858 = vmatprep.subr.mxu0 0.0
        %2859 = vmatpush2.xpose.msra.mxu0 0.0
        %2860 = vmatprep.subr.mxu0 0.0
        %2861 = vmatpush2.xpose.msra.mxu0 0.0
        %2862 = vmatprep.subr.mxu0 0.0
        %2863 = vmatpush2.xpose.msra.mxu0 0.0
        %2864 = vmatprep.subr.mxu0 0.0
        %2865 = vmatpush2.xpose.msra.mxu0 0.0
        %2866 = vmatprep.subr.mxu0 0.0
        %2867 = vmatpush2.xpose.msra.mxu0 0.0
        %2868 = vmatprep.mubr.f32.mxu0 0.0
        %2869 = vmatmul.mubr.f32.gmra.mxu0 %v2799
        %v2870 = vpop.f32.mrf.mxu0
        %v2871 = vadd.f32 0.0, %v2870
        %v2872 = vpop.f32.mrf.mxu0
        %2873 = vdwg.mxu0
        %v2875 = vsel %vm2341, %v1042, 0
        %v2878 = vsel %vm2341, %v1690, 0
        %2880 = vmatprep.subr.mxu0 0.0
        %2881 = vmatpush1.xpose.msra.mxu0 0.0
        %2882 = vmatprep.subr.mxu0 0.0
        %2883 = vmatpush1.xpose.msra.mxu0 0.0
        %2884 = vmatprep.subr.mxu0 0.0
        %2885 = vmatpush1.xpose.msra.mxu0 0.0
        %2886 = vmatprep.subr.mxu0 0.0
        %2887 = vmatpush1.xpose.msra.mxu0 0.0
        %2888 = vmatprep.subr.mxu0 0.0
        %2889 = vmatpush1.xpose.msra.mxu0 0.0
        %2890 = vmatprep.subr.mxu0 0.0
        %2891 = vmatpush1.xpose.msra.mxu0 0.0
        %2892 = vmatprep.subr.mxu0 0.0
        %2893 = vmatpush1.xpose.msra.mxu0 0.0
        %2894 = vmatprep.subr.mxu0 0.0
        %2895 = vmatpush1.xpose.msra.mxu0 0.0
        %2896 = vmatprep.subr.mxu0 0.0
        %2897 = vmatpush1.xpose.msra.mxu0 0.0
        %2898 = vmatprep.subr.mxu0 0.0
        %2899 = vmatpush1.xpose.msra.mxu0 0.0
        %2900 = vmatprep.subr.mxu0 0.0
        %2901 = vmatpush1.xpose.msra.mxu0 0.0
        %2902 = vmatprep.subr.mxu0 0.0
        %2903 = vmatpush1.xpose.msra.mxu0 0.0
        %2904 = vmatprep.subr.mxu0 0.0
        %2905 = vmatpush1.xpose.msra.mxu0 0.0
        %2906 = vmatprep.subr.mxu0 0.0
        %2907 = vmatpush1.xpose.msra.mxu0 0.0
        %2908 = vmatprep.subr.mxu0 0.0
        %2909 = vmatpush1.xpose.msra.mxu0 0.0
        %2910 = vmatprep.subr.mxu0 0.0
        %2911 = vmatpush1.xpose.msra.mxu0 %v2878
        %2912 = vmatprep.subr.mxu0 0.0
        %2913 = vmatpush2.xpose.msra.mxu0 0.0
        %2914 = vmatprep.subr.mxu0 0.0
        %2915 = vmatpush2.xpose.msra.mxu0 0.0
        %2916 = vmatprep.subr.mxu0 0.0
        %2917 = vmatpush2.xpose.msra.mxu0 0.0
        %2918 = vmatprep.subr.mxu0 0.0
        %2919 = vmatpush2.xpose.msra.mxu0 0.0
        %2920 = vmatprep.subr.mxu0 0.0
        %2921 = vmatpush2.xpose.msra.mxu0 0.0
        %2922 = vmatprep.subr.mxu0 0.0
        %2923 = vmatpush2.xpose.msra.mxu0 0.0
        %2924 = vmatprep.subr.mxu0 0.0
        %2925 = vmatpush2.xpose.msra.mxu0 0.0
        %2926 = vmatprep.subr.mxu0 0.0
        %2927 = vmatpush2.xpose.msra.mxu0 0.0
        %2928 = vmatprep.subr.mxu0 0.0
        %2929 = vmatpush2.xpose.msra.mxu0 0.0
        %2930 = vmatprep.subr.mxu0 0.0
        %2931 = vmatpush2.xpose.msra.mxu0 0.0
        %2932 = vmatprep.subr.mxu0 0.0
        %2933 = vmatpush2.xpose.msra.mxu0 0.0
        %2934 = vmatprep.subr.mxu0 0.0
        %2935 = vmatpush2.xpose.msra.mxu0 0.0
        %2936 = vmatprep.subr.mxu0 0.0
        %2937 = vmatpush2.xpose.msra.mxu0 0.0
        %2938 = vmatprep.subr.mxu0 0.0
        %2939 = vmatpush2.xpose.msra.mxu0 0.0
        %2940 = vmatprep.subr.mxu0 0.0
        %2941 = vmatpush2.xpose.msra.mxu0 0.0
        %2942 = vmatprep.subr.mxu0 0.0
        %2943 = vmatpush2.xpose.msra.mxu0 0.0
        %2944 = vmatprep.mubr.f32.mxu0 0.0
        %2945 = vmatmul.mubr.f32.gmra.mxu0 %v2875
        %v2946 = vpop.f32.mrf.mxu0
        %v2947 = vadd.f32 0.0, %v2946
        %v2948 = vpop.f32.mrf.mxu0
        %2949 = vdwg.mxu0
        %v2950 = vmul.f32 %v2415, 0.5
        %v2951 = vmul.f32 %v2491, 0.5
        %v2952 = vmul.f32 %v2567, 0.5
        %v2953 = vmul.f32 %v2643, 0.5
        %v2954 = vmul.f32 %v2719, 0.5
        %v2955 = vmul.f32 %v2795, 0.5
        %v2956 = vmul.f32 %v2871, 0.5
        %v2957 = vmul.f32 %v2947, 0.5
        %vm2958 = vcmask 64512
        %v2959 = vsel %vm2958, %v2950, -inf
        %2960 = vmax.xlane.f32.xlu0 %v2959
        %v2961 = vpop.xlane.xlu0 %2960
        %v2962 = vsel %vm2958, %v2951, -inf
        %2963 = vmax.xlane.f32.xlu0 %v2962
        %v2964 = vpop.xlane.xlu0 %2963
        %v2965 = vsel %vm2958, %v2952, -inf
        %2966 = vmax.xlane.f32.xlu0 %v2965
        %v2967 = vpop.xlane.xlu0 %2966
        %v2968 = vsel %vm2958, %v2953, -inf
        %2969 = vmax.xlane.f32.xlu0 %v2968
        %v2970 = vpop.xlane.xlu0 %2969
        %v2971 = vsel %vm2958, %v2954, -inf
        %2972 = vmax.xlane.f32.xlu0 %v2971
        %v2973 = vpop.xlane.xlu0 %2972
        %v2974 = vsel %vm2958, %v2955, -inf
        %2975 = vmax.xlane.f32.xlu0 %v2974
        %v2976 = vpop.xlane.xlu0 %2975
        %v2977 = vsel %vm2958, %v2956, -inf
        %2978 = vmax.xlane.f32.xlu0 %v2977
        %v2979 = vpop.xlane.xlu0 %2978
        %v2980 = vsel %vm2958, %v2957, -inf
        %2981 = vmax.xlane.f32.xlu0 %v2980
        %v2982 = vpop.xlane.xlu0 %2981
        %v2983 = vsub.f32 %v2950, %v2961
        %v2984 = vsub.f32 %v2951, %v2964
        %v2985 = vsub.f32 %v2952, %v2967
        %v2986 = vsub.f32 %v2953, %v2970
        %v2987 = vsub.f32 %v2954, %v2973
        %v2988 = vsub.f32 %v2955, %v2976
        %v2989 = vsub.f32 %v2956, %v2979
        %v2990 = vsub.f32 %v2957, %v2982
        %v2991 = vmul.f32 %v2983, 1.442695
        %v2992 = vpow.pop %v2991
        %v2993 = vmul.f32 %v2984, 1.442695
        %v2994 = vpow.pop %v2993
        %v2995 = vmul.f32 %v2985, 1.442695
        %v2996 = vpow.pop %v2995
        %v2997 = vmul.f32 %v2986, 1.442695
        %v2998 = vpow.pop %v2997
        %v2999 = vmul.f32 %v2987, 1.442695
        %v3000 = vpow.pop %v2999
        %v3001 = vmul.f32 %v2988, 1.442695
        %v3002 = vpow.pop %v3001
        %v3003 = vmul.f32 %v2989, 1.442695
        %v3004 = vpow.pop %v3003
        %v3005 = vmul.f32 %v2990, 1.442695
        %v3006 = vpow.pop %v3005
        %v3007 = vsel %vm2958, %v2992, 0.0
        %3008 = vadd.xlane.f32.xlu0 %v3007
        %v3009 = vpop.xlane.xlu0 %3008
        %v3010 = vsel %vm2958, %v2994, 0.0
        %3011 = vadd.xlane.f32.xlu0 %v3010
        %v3012 = vpop.xlane.xlu0 %3011
        %v3013 = vsel %vm2958, %v2996, 0.0
        %3014 = vadd.xlane.f32.xlu0 %v3013
        %v3015 = vpop.xlane.xlu0 %3014
        %v3016 = vsel %vm2958, %v2998, 0.0
        %3017 = vadd.xlane.f32.xlu0 %v3016
        %v3018 = vpop.xlane.xlu0 %3017
        %v3019 = vsel %vm2958, %v3000, 0.0
        %3020 = vadd.xlane.f32.xlu0 %v3019
        %v3021 = vpop.xlane.xlu0 %3020
        %v3022 = vsel %vm2958, %v3002, 0.0
        %3023 = vadd.xlane.f32.xlu0 %v3022
        %v3024 = vpop.xlane.xlu0 %3023
        %v3025 = vsel %vm2958, %v3004, 0.0
        %3026 = vadd.xlane.f32.xlu0 %v3025
        %v3027 = vpop.xlane.xlu0 %3026
        %v3028 = vsel %vm2958, %v3006, 0.0
        %3029 = vadd.xlane.f32.xlu0 %v3028
        %v3030 = vpop.xlane.xlu0 %3029
        %v3031 = vrcp.pop %v3009
        %v3032 = vrcp.pop %v3012
        %v3033 = vrcp.pop %v3015
        %v3034 = vrcp.pop %v3018
        %v3035 = vrcp.pop %v3021
        %v3036 = vrcp.pop %v3024
        %v3037 = vrcp.pop %v3027
        %v3038 = vrcp.pop %v3030
        %v3039 = vmul.f32 %v2992, %v3031
        %v3040 = vmul.f32 %v2994, %v3032
        %v3041 = vmul.f32 %v2996, %v3033
        %v3042 = vmul.f32 %v2998, %v3034
        %v3043 = vmul.f32 %v3000, %v3035
        %v3044 = vmul.f32 %v3002, %v3036
        %v3045 = vmul.f32 %v3004, %v3037
        %v3046 = vmul.f32 %v3006, %v3038
        %v3048 = vsel %vm2958, %v3039, 0
        %3050 = vmatprep.subr.mxu0 0.0
        %3051 = vmatpush1.msra.mxu0 0.0
        %3052 = vmatprep.subr.mxu0 0.0
        %3053 = vmatpush1.msra.mxu0 0.0
        %3054 = vmatprep.subr.mxu0 0.0
        %3055 = vmatpush1.msra.mxu0 0.0
        %3056 = vmatprep.subr.mxu0 0.0
        %3057 = vmatpush1.msra.mxu0 0.0
        %3058 = vmatprep.subr.mxu0 0.0
        %3059 = vmatpush1.msra.mxu0 0.0
        %3060 = vmatprep.subr.mxu0 0.0
        %3061 = vmatpush1.msra.mxu0 0.0
        %3062 = vmatprep.subr.mxu0 0.0
        %3063 = vmatpush1.msra.mxu0 0.0
        %3064 = vmatprep.subr.mxu0 0.0
        %3065 = vmatpush1.msra.mxu0 0.0
        %3066 = vmatprep.subr.mxu0 0.0
        %3067 = vmatpush1.msra.mxu0 0.0
        %3068 = vmatprep.subr.mxu0 0.0
        %3069 = vmatpush1.msra.mxu0 0.0
        %3070 = vmatprep.subr.mxu0 0.0
        %3071 = vmatpush1.msra.mxu0 0.0
        %3072 = vmatprep.subr.mxu0 0.0
        %3073 = vmatpush1.msra.mxu0 0.0
        %3074 = vmatprep.subr.mxu0 0.0
        %3075 = vmatpush1.msra.mxu0 0.0
        %3076 = vmatprep.subr.mxu0 0.0
        %3077 = vmatpush1.msra.mxu0 0.0
        %3078 = vmatprep.subr.mxu0 0.0
        %3079 = vmatpush1.msra.mxu0 0.0
        %3080 = vmatprep.subr.mxu0 0.0
        %3081 = vmatpush1.msra.mxu0 %v1827
        %3082 = vmatprep.subr.mxu0 0.0
        %3083 = vmatpush2.msra.mxu0 0.0
        %3084 = vmatprep.subr.mxu0 0.0
        %3085 = vmatpush2.msra.mxu0 0.0
        %3086 = vmatprep.subr.mxu0 0.0
        %3087 = vmatpush2.msra.mxu0 0.0
        %3088 = vmatprep.subr.mxu0 0.0
        %3089 = vmatpush2.msra.mxu0 0.0
        %3090 = vmatprep.subr.mxu0 0.0
        %3091 = vmatpush2.msra.mxu0 0.0
        %3092 = vmatprep.subr.mxu0 0.0
        %3093 = vmatpush2.msra.mxu0 0.0
        %3094 = vmatprep.subr.mxu0 0.0
        %3095 = vmatpush2.msra.mxu0 0.0
        %3096 = vmatprep.subr.mxu0 0.0
        %3097 = vmatpush2.msra.mxu0 0.0
        %3098 = vmatprep.subr.mxu0 0.0
        %3099 = vmatpush2.msra.mxu0 0.0
        %3100 = vmatprep.subr.mxu0 0.0
        %3101 = vmatpush2.msra.mxu0 0.0
        %3102 = vmatprep.subr.mxu0 0.0
        %3103 = vmatpush2.msra.mxu0 0.0
        %3104 = vmatprep.subr.mxu0 0.0
        %3105 = vmatpush2.msra.mxu0 0.0
        %3106 = vmatprep.subr.mxu0 0.0
        %3107 = vmatpush2.msra.mxu0 0.0
        %3108 = vmatprep.subr.mxu0 0.0
        %3109 = vmatpush2.msra.mxu0 0.0
        %3110 = vmatprep.subr.mxu0 0.0
        %3111 = vmatpush2.msra.mxu0 0.0
        %3112 = vmatprep.subr.mxu0 0.0
        %3113 = vmatpush2.msra.mxu0 0.0
        %3114 = vmatprep.mubr.f32.mxu0 0.0
        %3115 = vmatmul.mubr.f32.gmra.mxu0 %v3048
        %v3116 = vpop.f32.mrf.mxu0
        %v3117 = vadd.f32 0.0, %v3116
        %v3118 = vpop.f32.mrf.mxu0
        %3119 = vdwg.mxu0
        %v3121 = vsel %vm2958, %v3040, 0
        %3123 = vmatprep.subr.mxu0 0.0
        %3124 = vmatpush1.msra.mxu0 0.0
        %3125 = vmatprep.subr.mxu0 0.0
        %3126 = vmatpush1.msra.mxu0 0.0
        %3127 = vmatprep.subr.mxu0 0.0
        %3128 = vmatpush1.msra.mxu0 0.0
        %3129 = vmatprep.subr.mxu0 0.0
        %3130 = vmatpush1.msra.mxu0 0.0
        %3131 = vmatprep.subr.mxu0 0.0
        %3132 = vmatpush1.msra.mxu0 0.0
        %3133 = vmatprep.subr.mxu0 0.0
        %3134 = vmatpush1.msra.mxu0 0.0
        %3135 = vmatprep.subr.mxu0 0.0
        %3136 = vmatpush1.msra.mxu0 0.0
        %3137 = vmatprep.subr.mxu0 0.0
        %3138 = vmatpush1.msra.mxu0 0.0
        %3139 = vmatprep.subr.mxu0 0.0
        %3140 = vmatpush1.msra.mxu0 0.0
        %3141 = vmatprep.subr.mxu0 0.0
        %3142 = vmatpush1.msra.mxu0 0.0
        %3143 = vmatprep.subr.mxu0 0.0
        %3144 = vmatpush1.msra.mxu0 0.0
        %3145 = vmatprep.subr.mxu0 0.0
        %3146 = vmatpush1.msra.mxu0 0.0
        %3147 = vmatprep.subr.mxu0 0.0
        %3148 = vmatpush1.msra.mxu0 0.0
        %3149 = vmatprep.subr.mxu0 0.0
        %3150 = vmatpush1.msra.mxu0 0.0
        %3151 = vmatprep.subr.mxu0 0.0
        %3152 = vmatpush1.msra.mxu0 0.0
        %3153 = vmatprep.subr.mxu0 0.0
        %3154 = vmatpush1.msra.mxu0 %v1900
        %3155 = vmatprep.subr.mxu0 0.0
        %3156 = vmatpush2.msra.mxu0 0.0
        %3157 = vmatprep.subr.mxu0 0.0
        %3158 = vmatpush2.msra.mxu0 0.0
        %3159 = vmatprep.subr.mxu0 0.0
        %3160 = vmatpush2.msra.mxu0 0.0
        %3161 = vmatprep.subr.mxu0 0.0
        %3162 = vmatpush2.msra.mxu0 0.0
        %3163 = vmatprep.subr.mxu0 0.0
        %3164 = vmatpush2.msra.mxu0 0.0
        %3165 = vmatprep.subr.mxu0 0.0
        %3166 = vmatpush2.msra.mxu0 0.0
        %3167 = vmatprep.subr.mxu0 0.0
        %3168 = vmatpush2.msra.mxu0 0.0
        %3169 = vmatprep.subr.mxu0 0.0
        %3170 = vmatpush2.msra.mxu0 0.0
        %3171 = vmatprep.subr.mxu0 0.0
        %3172 = vmatpush2.msra.mxu0 0.0
        %3173 = vmatprep.subr.mxu0 0.0
        %3174 = vmatpush2.msra.mxu0 0.0
        %3175 = vmatprep.subr.mxu0 0.0
        %3176 = vmatpush2.msra.mxu0 0.0
        %3177 = vmatprep.subr.mxu0 0.0
        %3178 = vmatpush2.msra.mxu0 0.0
        %3179 = vmatprep.subr.mxu0 0.0
        %3180 = vmatpush2.msra.mxu0 0.0
        %3181 = vmatprep.subr.mxu0 0.0
        %3182 = vmatpush2.msra.mxu0 0.0
        %3183 = vmatprep.subr.mxu0 0.0
        %3184 = vmatpush2.msra.mxu0 0.0
        %3185 = vmatprep.subr.mxu0 0.0
        %3186 = vmatpush2.msra.mxu0 0.0
        %3187 = vmatprep.mubr.f32.mxu0 0.0
        %3188 = vmatmul.mubr.f32.gmra.mxu0 %v3121
        %v3189 = vpop.f32.mrf.mxu0
        %v3190 = vadd.f32 0.0, %v3189
        %v3191 = vpop.f32.mrf.mxu0
        %3192 = vdwg.mxu0
        %v3194 = vsel %vm2958, %v3041, 0
        %3196 = vmatprep.subr.mxu0 0.0
        %3197 = vmatpush1.msra.mxu0 0.0
        %3198 = vmatprep.subr.mxu0 0.0
        %3199 = vmatpush1.msra.mxu0 0.0
        %3200 = vmatprep.subr.mxu0 0.0
        %3201 = vmatpush1.msra.mxu0 0.0
        %3202 = vmatprep.subr.mxu0 0.0
        %3203 = vmatpush1.msra.mxu0 0.0
        %3204 = vmatprep.subr.mxu0 0.0
        %3205 = vmatpush1.msra.mxu0 0.0
        %3206 = vmatprep.subr.mxu0 0.0
        %3207 = vmatpush1.msra.mxu0 0.0
        %3208 = vmatprep.subr.mxu0 0.0
        %3209 = vmatpush1.msra.mxu0 0.0
        %3210 = vmatprep.subr.mxu0 0.0
        %3211 = vmatpush1.msra.mxu0 0.0
        %3212 = vmatprep.subr.mxu0 0.0
        %3213 = vmatpush1.msra.mxu0 0.0
        %3214 = vmatprep.subr.mxu0 0.0
        %3215 = vmatpush1.msra.mxu0 0.0
        %3216 = vmatprep.subr.mxu0 0.0
        %3217 = vmatpush1.msra.mxu0 0.0
        %3218 = vmatprep.subr.mxu0 0.0
        %3219 = vmatpush1.msra.mxu0 0.0
        %3220 = vmatprep.subr.mxu0 0.0
        %3221 = vmatpush1.msra.mxu0 0.0
        %3222 = vmatprep.subr.mxu0 0.0
        %3223 = vmatpush1.msra.mxu0 0.0
        %3224 = vmatprep.subr.mxu0 0.0
        %3225 = vmatpush1.msra.mxu0 0.0
        %3226 = vmatprep.subr.mxu0 0.0
        %3227 = vmatpush1.msra.mxu0 %v1973
        %3228 = vmatprep.subr.mxu0 0.0
        %3229 = vmatpush2.msra.mxu0 0.0
        %3230 = vmatprep.subr.mxu0 0.0
        %3231 = vmatpush2.msra.mxu0 0.0
        %3232 = vmatprep.subr.mxu0 0.0
        %3233 = vmatpush2.msra.mxu0 0.0
        %3234 = vmatprep.subr.mxu0 0.0
        %3235 = vmatpush2.msra.mxu0 0.0
        %3236 = vmatprep.subr.mxu0 0.0
        %3237 = vmatpush2.msra.mxu0 0.0
        %3238 = vmatprep.subr.mxu0 0.0
        %3239 = vmatpush2.msra.mxu0 0.0
        %3240 = vmatprep.subr.mxu0 0.0
        %3241 = vmatpush2.msra.mxu0 0.0
        %3242 = vmatprep.subr.mxu0 0.0
        %3243 = vmatpush2.msra.mxu0 0.0
        %3244 = vmatprep.subr.mxu0 0.0
        %3245 = vmatpush2.msra.mxu0 0.0
        %3246 = vmatprep.subr.mxu0 0.0
        %3247 = vmatpush2.msra.mxu0 0.0
        %3248 = vmatprep.subr.mxu0 0.0
        %3249 = vmatpush2.msra.mxu0 0.0
        %3250 = vmatprep.subr.mxu0 0.0
        %3251 = vmatpush2.msra.mxu0 0.0
        %3252 = vmatprep.subr.mxu0 0.0
        %3253 = vmatpush2.msra.mxu0 0.0
        %3254 = vmatprep.subr.mxu0 0.0
        %3255 = vmatpush2.msra.mxu0 0.0
        %3256 = vmatprep.subr.mxu0 0.0
        %3257 = vmatpush2.msra.mxu0 0.0
        %3258 = vmatprep.subr.mxu0 0.0
        %3259 = vmatpush2.msra.mxu0 0.0
        %3260 = vmatprep.mubr.f32.mxu0 0.0
        %3261 = vmatmul.mubr.f32.gmra.mxu0 %v3194
        %v3262 = vpop.f32.mrf.mxu0
        %v3263 = vadd.f32 0.0, %v3262
        %v3264 = vpop.f32.mrf.mxu0
        %3265 = vdwg.mxu0
        %v3267 = vsel %vm2958, %v3042, 0
        %3269 = vmatprep.subr.mxu0 0.0
        %3270 = vmatpush1.msra.mxu0 0.0
        %3271 = vmatprep.subr.mxu0 0.0
        %3272 = vmatpush1.msra.mxu0 0.0
        %3273 = vmatprep.subr.mxu0 0.0
        %3274 = vmatpush1.msra.mxu0 0.0
        %3275 = vmatprep.subr.mxu0 0.0
        %3276 = vmatpush1.msra.mxu0 0.0
        %3277 = vmatprep.subr.mxu0 0.0
        %3278 = vmatpush1.msra.mxu0 0.0
        %3279 = vmatprep.subr.mxu0 0.0
        %3280 = vmatpush1.msra.mxu0 0.0
        %3281 = vmatprep.subr.mxu0 0.0
        %3282 = vmatpush1.msra.mxu0 0.0
        %3283 = vmatprep.subr.mxu0 0.0
        %3284 = vmatpush1.msra.mxu0 0.0
        %3285 = vmatprep.subr.mxu0 0.0
        %3286 = vmatpush1.msra.mxu0 0.0
        %3287 = vmatprep.subr.mxu0 0.0
        %3288 = vmatpush1.msra.mxu0 0.0
        %3289 = vmatprep.subr.mxu0 0.0
        %3290 = vmatpush1.msra.mxu0 0.0
        %3291 = vmatprep.subr.mxu0 0.0
        %3292 = vmatpush1.msra.mxu0 0.0
        %3293 = vmatprep.subr.mxu0 0.0
        %3294 = vmatpush1.msra.mxu0 0.0
        %3295 = vmatprep.subr.mxu0 0.0
        %3296 = vmatpush1.msra.mxu0 0.0
        %3297 = vmatprep.subr.mxu0 0.0
        %3298 = vmatpush1.msra.mxu0 0.0
        %3299 = vmatprep.subr.mxu0 0.0
        %3300 = vmatpush1.msra.mxu0 %v2046
        %3301 = vmatprep.subr.mxu0 0.0
        %3302 = vmatpush2.msra.mxu0 0.0
        %3303 = vmatprep.subr.mxu0 0.0
        %3304 = vmatpush2.msra.mxu0 0.0
        %3305 = vmatprep.subr.mxu0 0.0
        %3306 = vmatpush2.msra.mxu0 0.0
        %3307 = vmatprep.subr.mxu0 0.0
        %3308 = vmatpush2.msra.mxu0 0.0
        %3309 = vmatprep.subr.mxu0 0.0
        %3310 = vmatpush2.msra.mxu0 0.0
        %3311 = vmatprep.subr.mxu0 0.0
        %3312 = vmatpush2.msra.mxu0 0.0
        %3313 = vmatprep.subr.mxu0 0.0
        %3314 = vmatpush2.msra.mxu0 0.0
        %3315 = vmatprep.subr.mxu0 0.0
        %3316 = vmatpush2.msra.mxu0 0.0
        %3317 = vmatprep.subr.mxu0 0.0
        %3318 = vmatpush2.msra.mxu0 0.0
        %3319 = vmatprep.subr.mxu0 0.0
        %3320 = vmatpush2.msra.mxu0 0.0
        %3321 = vmatprep.subr.mxu0 0.0
        %3322 = vmatpush2.msra.mxu0 0.0
        %3323 = vmatprep.subr.mxu0 0.0
        %3324 = vmatpush2.msra.mxu0 0.0
        %3325 = vmatprep.subr.mxu0 0.0
        %3326 = vmatpush2.msra.mxu0 0.0
        %3327 = vmatprep.subr.mxu0 0.0
        %3328 = vmatpush2.msra.mxu0 0.0
        %3329 = vmatprep.subr.mxu0 0.0
        %3330 = vmatpush2.msra.mxu0 0.0
        %3331 = vmatprep.subr.mxu0 0.0
        %3332 = vmatpush2.msra.mxu0 0.0
        %3333 = vmatprep.mubr.f32.mxu0 0.0
        %3334 = vmatmul.mubr.f32.gmra.mxu0 %v3267
        %v3335 = vpop.f32.mrf.mxu0
        %v3336 = vadd.f32 0.0, %v3335
        %v3337 = vpop.f32.mrf.mxu0
        %3338 = vdwg.mxu0
        %v3340 = vsel %vm2958, %v3043, 0
        %3342 = vmatprep.subr.mxu0 0.0
        %3343 = vmatpush1.msra.mxu0 0.0
        %3344 = vmatprep.subr.mxu0 0.0
        %3345 = vmatpush1.msra.mxu0 0.0
        %3346 = vmatprep.subr.mxu0 0.0
        %3347 = vmatpush1.msra.mxu0 0.0
        %3348 = vmatprep.subr.mxu0 0.0
        %3349 = vmatpush1.msra.mxu0 0.0
        %3350 = vmatprep.subr.mxu0 0.0
        %3351 = vmatpush1.msra.mxu0 0.0
        %3352 = vmatprep.subr.mxu0 0.0
        %3353 = vmatpush1.msra.mxu0 0.0
        %3354 = vmatprep.subr.mxu0 0.0
        %3355 = vmatpush1.msra.mxu0 0.0
        %3356 = vmatprep.subr.mxu0 0.0
        %3357 = vmatpush1.msra.mxu0 0.0
        %3358 = vmatprep.subr.mxu0 0.0
        %3359 = vmatpush1.msra.mxu0 0.0
        %3360 = vmatprep.subr.mxu0 0.0
        %3361 = vmatpush1.msra.mxu0 0.0
        %3362 = vmatprep.subr.mxu0 0.0
        %3363 = vmatpush1.msra.mxu0 0.0
        %3364 = vmatprep.subr.mxu0 0.0
        %3365 = vmatpush1.msra.mxu0 0.0
        %3366 = vmatprep.subr.mxu0 0.0
        %3367 = vmatpush1.msra.mxu0 0.0
        %3368 = vmatprep.subr.mxu0 0.0
        %3369 = vmatpush1.msra.mxu0 0.0
        %3370 = vmatprep.subr.mxu0 0.0
        %3371 = vmatpush1.msra.mxu0 0.0
        %3372 = vmatprep.subr.mxu0 0.0
        %3373 = vmatpush1.msra.mxu0 %v2119
        %3374 = vmatprep.subr.mxu0 0.0
        %3375 = vmatpush2.msra.mxu0 0.0
        %3376 = vmatprep.subr.mxu0 0.0
        %3377 = vmatpush2.msra.mxu0 0.0
        %3378 = vmatprep.subr.mxu0 0.0
        %3379 = vmatpush2.msra.mxu0 0.0
        %3380 = vmatprep.subr.mxu0 0.0
        %3381 = vmatpush2.msra.mxu0 0.0
        %3382 = vmatprep.subr.mxu0 0.0
        %3383 = vmatpush2.msra.mxu0 0.0
        %3384 = vmatprep.subr.mxu0 0.0
        %3385 = vmatpush2.msra.mxu0 0.0
        %3386 = vmatprep.subr.mxu0 0.0
        %3387 = vmatpush2.msra.mxu0 0.0
        %3388 = vmatprep.subr.mxu0 0.0
        %3389 = vmatpush2.msra.mxu0 0.0
        %3390 = vmatprep.subr.mxu0 0.0
        %3391 = vmatpush2.msra.mxu0 0.0
        %3392 = vmatprep.subr.mxu0 0.0
        %3393 = vmatpush2.msra.mxu0 0.0
        %3394 = vmatprep.subr.mxu0 0.0
        %3395 = vmatpush2.msra.mxu0 0.0
        %3396 = vmatprep.subr.mxu0 0.0
        %3397 = vmatpush2.msra.mxu0 0.0
        %3398 = vmatprep.subr.mxu0 0.0
        %3399 = vmatpush2.msra.mxu0 0.0
        %3400 = vmatprep.subr.mxu0 0.0
        %3401 = vmatpush2.msra.mxu0 0.0
        %3402 = vmatprep.subr.mxu0 0.0
        %3403 = vmatpush2.msra.mxu0 0.0
        %3404 = vmatprep.subr.mxu0 0.0
        %3405 = vmatpush2.msra.mxu0 0.0
        %3406 = vmatprep.mubr.f32.mxu0 0.0
        %3407 = vmatmul.mubr.f32.gmra.mxu0 %v3340
        %v3408 = vpop.f32.mrf.mxu0
        %v3409 = vadd.f32 0.0, %v3408
        %v3410 = vpop.f32.mrf.mxu0
        %3411 = vdwg.mxu0
        %v3413 = vsel %vm2958, %v3044, 0
        %3415 = vmatprep.subr.mxu0 0.0
        %3416 = vmatpush1.msra.mxu0 0.0
        %3417 = vmatprep.subr.mxu0 0.0
        %3418 = vmatpush1.msra.mxu0 0.0
        %3419 = vmatprep.subr.mxu0 0.0
        %3420 = vmatpush1.msra.mxu0 0.0
        %3421 = vmatprep.subr.mxu0 0.0
        %3422 = vmatpush1.msra.mxu0 0.0
        %3423 = vmatprep.subr.mxu0 0.0
        %3424 = vmatpush1.msra.mxu0 0.0
        %3425 = vmatprep.subr.mxu0 0.0
        %3426 = vmatpush1.msra.mxu0 0.0
        %3427 = vmatprep.subr.mxu0 0.0
        %3428 = vmatpush1.msra.mxu0 0.0
        %3429 = vmatprep.subr.mxu0 0.0
        %3430 = vmatpush1.msra.mxu0 0.0
        %3431 = vmatprep.subr.mxu0 0.0
        %3432 = vmatpush1.msra.mxu0 0.0
        %3433 = vmatprep.subr.mxu0 0.0
        %3434 = vmatpush1.msra.mxu0 0.0
        %3435 = vmatprep.subr.mxu0 0.0
        %3436 = vmatpush1.msra.mxu0 0.0
        %3437 = vmatprep.subr.mxu0 0.0
        %3438 = vmatpush1.msra.mxu0 0.0
        %3439 = vmatprep.subr.mxu0 0.0
        %3440 = vmatpush1.msra.mxu0 0.0
        %3441 = vmatprep.subr.mxu0 0.0
        %3442 = vmatpush1.msra.mxu0 0.0
        %3443 = vmatprep.subr.mxu0 0.0
        %3444 = vmatpush1.msra.mxu0 0.0
        %3445 = vmatprep.subr.mxu0 0.0
        %3446 = vmatpush1.msra.mxu0 %v2192
        %3447 = vmatprep.subr.mxu0 0.0
        %3448 = vmatpush2.msra.mxu0 0.0
        %3449 = vmatprep.subr.mxu0 0.0
        %3450 = vmatpush2.msra.mxu0 0.0
        %3451 = vmatprep.subr.mxu0 0.0
        %3452 = vmatpush2.msra.mxu0 0.0
        %3453 = vmatprep.subr.mxu0 0.0
        %3454 = vmatpush2.msra.mxu0 0.0
        %3455 = vmatprep.subr.mxu0 0.0
        %3456 = vmatpush2.msra.mxu0 0.0
        %3457 = vmatprep.subr.mxu0 0.0
        %3458 = vmatpush2.msra.mxu0 0.0
        %3459 = vmatprep.subr.mxu0 0.0
        %3460 = vmatpush2.msra.mxu0 0.0
        %3461 = vmatprep.subr.mxu0 0.0
        %3462 = vmatpush2.msra.mxu0 0.0
        %3463 = vmatprep.subr.mxu0 0.0
        %3464 = vmatpush2.msra.mxu0 0.0
        %3465 = vmatprep.subr.mxu0 0.0
        %3466 = vmatpush2.msra.mxu0 0.0
        %3467 = vmatprep.subr.mxu0 0.0
        %3468 = vmatpush2.msra.mxu0 0.0
        %3469 = vmatprep.subr.mxu0 0.0
        %3470 = vmatpush2.msra.mxu0 0.0
        %3471 = vmatprep.subr.mxu0 0.0
        %3472 = vmatpush2.msra.mxu0 0.0
        %3473 = vmatprep.subr.mxu0 0.0
        %3474 = vmatpush2.msra.mxu0 0.0
        %3475 = vmatprep.subr.mxu0 0.0
        %3476 = vmatpush2.msra.mxu0 0.0
        %3477 = vmatprep.subr.mxu0 0.0
        %3478 = vmatpush2.msra.mxu0 0.0
        %3479 = vmatprep.mubr.f32.mxu0 0.0
        %3480 = vmatmul.mubr.f32.gmra.mxu0 %v3413
        %v3481 = vpop.f32.mrf.mxu0
        %v3482 = vadd.f32 0.0, %v3481
        %v3483 = vpop.f32.mrf.mxu0
        %3484 = vdwg.mxu0
        %v3486 = vsel %vm2958, %v3045, 0
        %3488 = vmatprep.subr.mxu0 0.0
        %3489 = vmatpush1.msra.mxu0 0.0
        %3490 = vmatprep.subr.mxu0 0.0
        %3491 = vmatpush1.msra.mxu0 0.0
        %3492 = vmatprep.subr.mxu0 0.0
        %3493 = vmatpush1.msra.mxu0 0.0
        %3494 = vmatprep.subr.mxu0 0.0
        %3495 = vmatpush1.msra.mxu0 0.0
        %3496 = vmatprep.subr.mxu0 0.0
        %3497 = vmatpush1.msra.mxu0 0.0
        %3498 = vmatprep.subr.mxu0 0.0
        %3499 = vmatpush1.msra.mxu0 0.0
        %3500 = vmatprep.subr.mxu0 0.0
        %3501 = vmatpush1.msra.mxu0 0.0
        %3502 = vmatprep.subr.mxu0 0.0
        %3503 = vmatpush1.msra.mxu0 0.0
        %3504 = vmatprep.subr.mxu0 0.0
        %3505 = vmatpush1.msra.mxu0 0.0
        %3506 = vmatprep.subr.mxu0 0.0
        %3507 = vmatpush1.msra.mxu0 0.0
        %3508 = vmatprep.subr.mxu0 0.0
        %3509 = vmatpush1.msra.mxu0 0.0
        %3510 = vmatprep.subr.mxu0 0.0
        %3511 = vmatpush1.msra.mxu0 0.0
        %3512 = vmatprep.subr.mxu0 0.0
        %3513 = vmatpush1.msra.mxu0 0.0
        %3514 = vmatprep.subr.mxu0 0.0
        %3515 = vmatpush1.msra.mxu0 0.0
        %3516 = vmatprep.subr.mxu0 0.0
        %3517 = vmatpush1.msra.mxu0 0.0
        %3518 = vmatprep.subr.mxu0 0.0
        %3519 = vmatpush1.msra.mxu0 %v2265
        %3520 = vmatprep.subr.mxu0 0.0
        %3521 = vmatpush2.msra.mxu0 0.0
        %3522 = vmatprep.subr.mxu0 0.0
        %3523 = vmatpush2.msra.mxu0 0.0
        %3524 = vmatprep.subr.mxu0 0.0
        %3525 = vmatpush2.msra.mxu0 0.0
        %3526 = vmatprep.subr.mxu0 0.0
        %3527 = vmatpush2.msra.mxu0 0.0
        %3528 = vmatprep.subr.mxu0 0.0
        %3529 = vmatpush2.msra.mxu0 0.0
        %3530 = vmatprep.subr.mxu0 0.0
        %3531 = vmatpush2.msra.mxu0 0.0
        %3532 = vmatprep.subr.mxu0 0.0
        %3533 = vmatpush2.msra.mxu0 0.0
        %3534 = vmatprep.subr.mxu0 0.0
        %3535 = vmatpush2.msra.mxu0 0.0
        %3536 = vmatprep.subr.mxu0 0.0
        %3537 = vmatpush2.msra.mxu0 0.0
        %3538 = vmatprep.subr.mxu0 0.0
        %3539 = vmatpush2.msra.mxu0 0.0
        %3540 = vmatprep.subr.mxu0 0.0
        %3541 = vmatpush2.msra.mxu0 0.0
        %3542 = vmatprep.subr.mxu0 0.0
        %3543 = vmatpush2.msra.mxu0 0.0
        %3544 = vmatprep.subr.mxu0 0.0
        %3545 = vmatpush2.msra.mxu0 0.0
        %3546 = vmatprep.subr.mxu0 0.0
        %3547 = vmatpush2.msra.mxu0 0.0
        %3548 = vmatprep.subr.mxu0 0.0
        %3549 = vmatpush2.msra.mxu0 0.0
        %3550 = vmatprep.subr.mxu0 0.0
        %3551 = vmatpush2.msra.mxu0 0.0
        %3552 = vmatprep.mubr.f32.mxu0 0.0
        %3553 = vmatmul.mubr.f32.gmra.mxu0 %v3486
        %v3554 = vpop.f32.mrf.mxu0
        %v3555 = vadd.f32 0.0, %v3554
        %v3556 = vpop.f32.mrf.mxu0
        %3557 = vdwg.mxu0
        %v3559 = vsel %vm2958, %v3046, 0
        %3561 = vmatprep.subr.mxu0 0.0
        %3562 = vmatpush1.msra.mxu0 0.0
        %3563 = vmatprep.subr.mxu0 0.0
        %3564 = vmatpush1.msra.mxu0 0.0
        %3565 = vmatprep.subr.mxu0 0.0
        %3566 = vmatpush1.msra.mxu0 0.0
        %3567 = vmatprep.subr.mxu0 0.0
        %3568 = vmatpush1.msra.mxu0 0.0
        %3569 = vmatprep.subr.mxu0 0.0
        %3570 = vmatpush1.msra.mxu0 0.0
        %3571 = vmatprep.subr.mxu0 0.0
        %3572 = vmatpush1.msra.mxu0 0.0
        %3573 = vmatprep.subr.mxu0 0.0
        %3574 = vmatpush1.msra.mxu0 0.0
        %3575 = vmatprep.subr.mxu0 0.0
        %3576 = vmatpush1.msra.mxu0 0.0
        %3577 = vmatprep.subr.mxu0 0.0
        %3578 = vmatpush1.msra.mxu0 0.0
        %3579 = vmatprep.subr.mxu0 0.0
        %3580 = vmatpush1.msra.mxu0 0.0
        %3581 = vmatprep.subr.mxu0 0.0
        %3582 = vmatpush1.msra.mxu0 0.0
        %3583 = vmatprep.subr.mxu0 0.0
        %3584 = vmatpush1.msra.mxu0 0.0
        %3585 = vmatprep.subr.mxu0 0.0
        %3586 = vmatpush1.msra.mxu0 0.0
        %3587 = vmatprep.subr.mxu0 0.0
        %3588 = vmatpush1.msra.mxu0 0.0
        %3589 = vmatprep.subr.mxu0 0.0
        %3590 = vmatpush1.msra.mxu0 0.0
        %3591 = vmatprep.subr.mxu0 0.0
        %3592 = vmatpush1.msra.mxu0 %v2338
        %3593 = vmatprep.subr.mxu0 0.0
        %3594 = vmatpush2.msra.mxu0 0.0
        %3595 = vmatprep.subr.mxu0 0.0
        %3596 = vmatpush2.msra.mxu0 0.0
        %3597 = vmatprep.subr.mxu0 0.0
        %3598 = vmatpush2.msra.mxu0 0.0
        %3599 = vmatprep.subr.mxu0 0.0
        %3600 = vmatpush2.msra.mxu0 0.0
        %3601 = vmatprep.subr.mxu0 0.0
        %3602 = vmatpush2.msra.mxu0 0.0
        %3603 = vmatprep.subr.mxu0 0.0
        %3604 = vmatpush2.msra.mxu0 0.0
        %3605 = vmatprep.subr.mxu0 0.0
        %3606 = vmatpush2.msra.mxu0 0.0
        %3607 = vmatprep.subr.mxu0 0.0
        %3608 = vmatpush2.msra.mxu0 0.0
        %3609 = vmatprep.subr.mxu0 0.0
        %3610 = vmatpush2.msra.mxu0 0.0
        %3611 = vmatprep.subr.mxu0 0.0
        %3612 = vmatpush2.msra.mxu0 0.0
        %3613 = vmatprep.subr.mxu0 0.0
        %3614 = vmatpush2.msra.mxu0 0.0
        %3615 = vmatprep.subr.mxu0 0.0
        %3616 = vmatpush2.msra.mxu0 0.0
        %3617 = vmatprep.subr.mxu0 0.0
        %3618 = vmatpush2.msra.mxu0 0.0
        %3619 = vmatprep.subr.mxu0 0.0
        %3620 = vmatpush2.msra.mxu0 0.0
        %3621 = vmatprep.subr.mxu0 0.0
        %3622 = vmatpush2.msra.mxu0 0.0
        %3623 = vmatprep.subr.mxu0 0.0
        %3624 = vmatpush2.msra.mxu0 0.0
        %3625 = vmatprep.mubr.f32.mxu0 0.0
        %3626 = vmatmul.mubr.f32.gmra.mxu0 %v3559
        %v3627 = vpop.f32.mrf.mxu0
        %v3628 = vadd.f32 0.0, %v3627
        %v3629 = vpop.f32.mrf.mxu0
        %3630 = vdwg.mxu0
        %v3631 = vld [vmem:[#allocation8] sm:$0xf]
        %v3632 = vld [vmem:[#allocation8 + $0x4] sm:$0xf]
        %v3633 = vld [vmem:[#allocation8 + $0x8] sm:$0xf]
        %v3634 = vld [vmem:[#allocation8 + $0xc] sm:$0xf]
        %v3635 = vld [vmem:[#allocation8 + $0x10] sm:$0xf]
        %v3636 = vld [vmem:[#allocation8 + $0x14] sm:$0xf]
        %v3637 = vld [vmem:[#allocation8 + $0x18] sm:$0xf]
        %v3638 = vld [vmem:[#allocation8 + $0x1c] sm:$0xf]
        %v3640 = vsel %vm2341, %v3117, 0
        %vm3642 = vcmask 1043456
        %v3644 = vsel %vm3642, %v3631, 0
        %3646 = vmatprep.subr.mxu0 0.0
        %3647 = vmatpush1.msra.mxu0 0.0
        %3648 = vmatprep.subr.mxu0 0.0
        %3649 = vmatpush1.msra.mxu0 0.0
        %3650 = vmatprep.subr.mxu0 0.0
        %3651 = vmatpush1.msra.mxu0 0.0
        %3652 = vmatprep.subr.mxu0 0.0
        %3653 = vmatpush1.msra.mxu0 0.0
        %3654 = vmatprep.subr.mxu0 0.0
        %3655 = vmatpush1.msra.mxu0 0.0
        %3656 = vmatprep.subr.mxu0 0.0
        %3657 = vmatpush1.msra.mxu0 0.0
        %3658 = vmatprep.subr.mxu0 0.0
        %3659 = vmatpush1.msra.mxu0 0.0
        %3660 = vmatprep.subr.mxu0 0.0
        %3661 = vmatpush1.msra.mxu0 0.0
        %3662 = vmatprep.subr.mxu0 0.0
        %3663 = vmatpush1.msra.mxu0 0.0
        %3664 = vmatprep.subr.mxu0 0.0
        %3665 = vmatpush1.msra.mxu0 0.0
        %3666 = vmatprep.subr.mxu0 0.0
        %3667 = vmatpush1.msra.mxu0 0.0
        %3668 = vmatprep.subr.mxu0 0.0
        %3669 = vmatpush1.msra.mxu0 0.0
        %3670 = vmatprep.subr.mxu0 0.0
        %3671 = vmatpush1.msra.mxu0 0.0
        %3672 = vmatprep.subr.mxu0 0.0
        %3673 = vmatpush1.msra.mxu0 0.0
        %3674 = vmatprep.subr.mxu0 0.0
        %3675 = vmatpush1.msra.mxu0 0.0
        %3676 = vmatprep.subr.mxu0 0.0
        %3677 = vmatpush1.msra.mxu0 %v3644
        %3678 = vmatprep.subr.mxu0 0.0
        %3679 = vmatpush2.msra.mxu0 0.0
        %3680 = vmatprep.subr.mxu0 0.0
        %3681 = vmatpush2.msra.mxu0 0.0
        %3682 = vmatprep.subr.mxu0 0.0
        %3683 = vmatpush2.msra.mxu0 0.0
        %3684 = vmatprep.subr.mxu0 0.0
        %3685 = vmatpush2.msra.mxu0 0.0
        %3686 = vmatprep.subr.mxu0 0.0
        %3687 = vmatpush2.msra.mxu0 0.0
        %3688 = vmatprep.subr.mxu0 0.0
        %3689 = vmatpush2.msra.mxu0 0.0
        %3690 = vmatprep.subr.mxu0 0.0
        %3691 = vmatpush2.msra.mxu0 0.0
        %3692 = vmatprep.subr.mxu0 0.0
        %3693 = vmatpush2.msra.mxu0 0.0
        %3694 = vmatprep.subr.mxu0 0.0
        %3695 = vmatpush2.msra.mxu0 0.0
        %3696 = vmatprep.subr.mxu0 0.0
        %3697 = vmatpush2.msra.mxu0 0.0
        %3698 = vmatprep.subr.mxu0 0.0
        %3699 = vmatpush2.msra.mxu0 0.0
        %3700 = vmatprep.subr.mxu0 0.0
        %3701 = vmatpush2.msra.mxu0 0.0
        %3702 = vmatprep.subr.mxu0 0.0
        %3703 = vmatpush2.msra.mxu0 0.0
        %3704 = vmatprep.subr.mxu0 0.0
        %3705 = vmatpush2.msra.mxu0 0.0
        %3706 = vmatprep.subr.mxu0 0.0
        %3707 = vmatpush2.msra.mxu0 0.0
        %3708 = vmatprep.subr.mxu0 0.0
        %3709 = vmatpush2.msra.mxu0 0.0
        %3710 = vmatprep.mubr.f32.mxu0 0.0
        %3711 = vmatmul.mubr.f32.gmra.mxu0 %v3640
        %v3712 = vpop.f32.mrf.mxu0
        %v3713 = vadd.f32 0.0, %v3712
        %v3714 = vpop.f32.mrf.mxu0
        %3715 = vdwg.mxu0
        %v3717 = vsel %vm2341, %v3190, 0
        %v3720 = vsel %vm3642, %v3632, 0
        %3722 = vmatprep.subr.mxu0 0.0
        %3723 = vmatpush1.msra.mxu0 0.0
        %3724 = vmatprep.subr.mxu0 0.0
        %3725 = vmatpush1.msra.mxu0 0.0
        %3726 = vmatprep.subr.mxu0 0.0
        %3727 = vmatpush1.msra.mxu0 0.0
        %3728 = vmatprep.subr.mxu0 0.0
        %3729 = vmatpush1.msra.mxu0 0.0
        %3730 = vmatprep.subr.mxu0 0.0
        %3731 = vmatpush1.msra.mxu0 0.0
        %3732 = vmatprep.subr.mxu0 0.0
        %3733 = vmatpush1.msra.mxu0 0.0
        %3734 = vmatprep.subr.mxu0 0.0
        %3735 = vmatpush1.msra.mxu0 0.0
        %3736 = vmatprep.subr.mxu0 0.0
        %3737 = vmatpush1.msra.mxu0 0.0
        %3738 = vmatprep.subr.mxu0 0.0
        %3739 = vmatpush1.msra.mxu0 0.0
        %3740 = vmatprep.subr.mxu0 0.0
        %3741 = vmatpush1.msra.mxu0 0.0
        %3742 = vmatprep.subr.mxu0 0.0
        %3743 = vmatpush1.msra.mxu0 0.0
        %3744 = vmatprep.subr.mxu0 0.0
        %3745 = vmatpush1.msra.mxu0 0.0
        %3746 = vmatprep.subr.mxu0 0.0
        %3747 = vmatpush1.msra.mxu0 0.0
        %3748 = vmatprep.subr.mxu0 0.0
        %3749 = vmatpush1.msra.mxu0 0.0
        %3750 = vmatprep.subr.mxu0 0.0
        %3751 = vmatpush1.msra.mxu0 0.0
        %3752 = vmatprep.subr.mxu0 0.0
        %3753 = vmatpush1.msra.mxu0 %v3720
        %3754 = vmatprep.subr.mxu0 0.0
        %3755 = vmatpush2.msra.mxu0 0.0
        %3756 = vmatprep.subr.mxu0 0.0
        %3757 = vmatpush2.msra.mxu0 0.0
        %3758 = vmatprep.subr.mxu0 0.0
        %3759 = vmatpush2.msra.mxu0 0.0
        %3760 = vmatprep.subr.mxu0 0.0
        %3761 = vmatpush2.msra.mxu0 0.0
        %3762 = vmatprep.subr.mxu0 0.0
        %3763 = vmatpush2.msra.mxu0 0.0
        %3764 = vmatprep.subr.mxu0 0.0
        %3765 = vmatpush2.msra.mxu0 0.0
        %3766 = vmatprep.subr.mxu0 0.0
        %3767 = vmatpush2.msra.mxu0 0.0
        %3768 = vmatprep.subr.mxu0 0.0
        %3769 = vmatpush2.msra.mxu0 0.0
        %3770 = vmatprep.subr.mxu0 0.0
        %3771 = vmatpush2.msra.mxu0 0.0
        %3772 = vmatprep.subr.mxu0 0.0
        %3773 = vmatpush2.msra.mxu0 0.0
        %3774 = vmatprep.subr.mxu0 0.0
        %3775 = vmatpush2.msra.mxu0 0.0
        %3776 = vmatprep.subr.mxu0 0.0
        %3777 = vmatpush2.msra.mxu0 0.0
        %3778 = vmatprep.subr.mxu0 0.0
        %3779 = vmatpush2.msra.mxu0 0.0
        %3780 = vmatprep.subr.mxu0 0.0
        %3781 = vmatpush2.msra.mxu0 0.0
        %3782 = vmatprep.subr.mxu0 0.0
        %3783 = vmatpush2.msra.mxu0 0.0
        %3784 = vmatprep.subr.mxu0 0.0
        %3785 = vmatpush2.msra.mxu0 0.0
        %3786 = vmatprep.mubr.f32.mxu0 0.0
        %3787 = vmatmul.mubr.f32.gmra.mxu0 %v3717
        %v3788 = vpop.f32.mrf.mxu0
        %v3789 = vadd.f32 0.0, %v3788
        %v3790 = vpop.f32.mrf.mxu0
        %3791 = vdwg.mxu0
        %v3793 = vsel %vm2341, %v3263, 0
        %v3796 = vsel %vm3642, %v3633, 0
        %3798 = vmatprep.subr.mxu0 0.0
        %3799 = vmatpush1.msra.mxu0 0.0
        %3800 = vmatprep.subr.mxu0 0.0
        %3801 = vmatpush1.msra.mxu0 0.0
        %3802 = vmatprep.subr.mxu0 0.0
        %3803 = vmatpush1.msra.mxu0 0.0
        %3804 = vmatprep.subr.mxu0 0.0
        %3805 = vmatpush1.msra.mxu0 0.0
        %3806 = vmatprep.subr.mxu0 0.0
        %3807 = vmatpush1.msra.mxu0 0.0
        %3808 = vmatprep.subr.mxu0 0.0
        %3809 = vmatpush1.msra.mxu0 0.0
        %3810 = vmatprep.subr.mxu0 0.0
        %3811 = vmatpush1.msra.mxu0 0.0
        %3812 = vmatprep.subr.mxu0 0.0
        %3813 = vmatpush1.msra.mxu0 0.0
        %3814 = vmatprep.subr.mxu0 0.0
        %3815 = vmatpush1.msra.mxu0 0.0
        %3816 = vmatprep.subr.mxu0 0.0
        %3817 = vmatpush1.msra.mxu0 0.0
        %3818 = vmatprep.subr.mxu0 0.0
        %3819 = vmatpush1.msra.mxu0 0.0
        %3820 = vmatprep.subr.mxu0 0.0
        %3821 = vmatpush1.msra.mxu0 0.0
        %3822 = vmatprep.subr.mxu0 0.0
        %3823 = vmatpush1.msra.mxu0 0.0
        %3824 = vmatprep.subr.mxu0 0.0
        %3825 = vmatpush1.msra.mxu0 0.0
        %3826 = vmatprep.subr.mxu0 0.0
        %3827 = vmatpush1.msra.mxu0 0.0
        %3828 = vmatprep.subr.mxu0 0.0
        %3829 = vmatpush1.msra.mxu0 %v3796
        %3830 = vmatprep.subr.mxu0 0.0
        %3831 = vmatpush2.msra.mxu0 0.0
        %3832 = vmatprep.subr.mxu0 0.0
        %3833 = vmatpush2.msra.mxu0 0.0
        %3834 = vmatprep.subr.mxu0 0.0
        %3835 = vmatpush2.msra.mxu0 0.0
        %3836 = vmatprep.subr.mxu0 0.0
        %3837 = vmatpush2.msra.mxu0 0.0
        %3838 = vmatprep.subr.mxu0 0.0
        %3839 = vmatpush2.msra.mxu0 0.0
        %3840 = vmatprep.subr.mxu0 0.0
        %3841 = vmatpush2.msra.mxu0 0.0
        %3842 = vmatprep.subr.mxu0 0.0
        %3843 = vmatpush2.msra.mxu0 0.0
        %3844 = vmatprep.subr.mxu0 0.0
        %3845 = vmatpush2.msra.mxu0 0.0
        %3846 = vmatprep.subr.mxu0 0.0
        %3847 = vmatpush2.msra.mxu0 0.0
        %3848 = vmatprep.subr.mxu0 0.0
        %3849 = vmatpush2.msra.mxu0 0.0
        %3850 = vmatprep.subr.mxu0 0.0
        %3851 = vmatpush2.msra.mxu0 0.0
        %3852 = vmatprep.subr.mxu0 0.0
        %3853 = vmatpush2.msra.mxu0 0.0
        %3854 = vmatprep.subr.mxu0 0.0
        %3855 = vmatpush2.msra.mxu0 0.0
        %3856 = vmatprep.subr.mxu0 0.0
        %3857 = vmatpush2.msra.mxu0 0.0
        %3858 = vmatprep.subr.mxu0 0.0
        %3859 = vmatpush2.msra.mxu0 0.0
        %3860 = vmatprep.subr.mxu0 0.0
        %3861 = vmatpush2.msra.mxu0 0.0
        %3862 = vmatprep.mubr.f32.mxu0 0.0
        %3863 = vmatmul.mubr.f32.gmra.mxu0 %v3793
        %v3864 = vpop.f32.mrf.mxu0
        %v3865 = vadd.f32 0.0, %v3864
        %v3866 = vpop.f32.mrf.mxu0
        %3867 = vdwg.mxu0
        %v3869 = vsel %vm2341, %v3336, 0
        %v3872 = vsel %vm3642, %v3634, 0
        %3874 = vmatprep.subr.mxu0 0.0
        %3875 = vmatpush1.msra.mxu0 0.0
        %3876 = vmatprep.subr.mxu0 0.0
        %3877 = vmatpush1.msra.mxu0 0.0
        %3878 = vmatprep.subr.mxu0 0.0
        %3879 = vmatpush1.msra.mxu0 0.0
        %3880 = vmatprep.subr.mxu0 0.0
        %3881 = vmatpush1.msra.mxu0 0.0
        %3882 = vmatprep.subr.mxu0 0.0
        %3883 = vmatpush1.msra.mxu0 0.0
        %3884 = vmatprep.subr.mxu0 0.0
        %3885 = vmatpush1.msra.mxu0 0.0
        %3886 = vmatprep.subr.mxu0 0.0
        %3887 = vmatpush1.msra.mxu0 0.0
        %3888 = vmatprep.subr.mxu0 0.0
        %3889 = vmatpush1.msra.mxu0 0.0
        %3890 = vmatprep.subr.mxu0 0.0
        %3891 = vmatpush1.msra.mxu0 0.0
        %3892 = vmatprep.subr.mxu0 0.0
        %3893 = vmatpush1.msra.mxu0 0.0
        %3894 = vmatprep.subr.mxu0 0.0
        %3895 = vmatpush1.msra.mxu0 0.0
        %3896 = vmatprep.subr.mxu0 0.0
        %3897 = vmatpush1.msra.mxu0 0.0
        %3898 = vmatprep.subr.mxu0 0.0
        %3899 = vmatpush1.msra.mxu0 0.0
        %3900 = vmatprep.subr.mxu0 0.0
        %3901 = vmatpush1.msra.mxu0 0.0
        %3902 = vmatprep.subr.mxu0 0.0
        %3903 = vmatpush1.msra.mxu0 0.0
        %3904 = vmatprep.subr.mxu0 0.0
        %3905 = vmatpush1.msra.mxu0 %v3872
        %3906 = vmatprep.subr.mxu0 0.0
        %3907 = vmatpush2.msra.mxu0 0.0
        %3908 = vmatprep.subr.mxu0 0.0
        %3909 = vmatpush2.msra.mxu0 0.0
        %3910 = vmatprep.subr.mxu0 0.0
        %3911 = vmatpush2.msra.mxu0 0.0
        %3912 = vmatprep.subr.mxu0 0.0
        %3913 = vmatpush2.msra.mxu0 0.0
        %3914 = vmatprep.subr.mxu0 0.0
        %3915 = vmatpush2.msra.mxu0 0.0
        %3916 = vmatprep.subr.mxu0 0.0
        %3917 = vmatpush2.msra.mxu0 0.0
        %3918 = vmatprep.subr.mxu0 0.0
        %3919 = vmatpush2.msra.mxu0 0.0
        %3920 = vmatprep.subr.mxu0 0.0
        %3921 = vmatpush2.msra.mxu0 0.0
        %3922 = vmatprep.subr.mxu0 0.0
        %3923 = vmatpush2.msra.mxu0 0.0
        %3924 = vmatprep.subr.mxu0 0.0
        %3925 = vmatpush2.msra.mxu0 0.0
        %3926 = vmatprep.subr.mxu0 0.0
        %3927 = vmatpush2.msra.mxu0 0.0
        %3928 = vmatprep.subr.mxu0 0.0
        %3929 = vmatpush2.msra.mxu0 0.0
        %3930 = vmatprep.subr.mxu0 0.0
        %3931 = vmatpush2.msra.mxu0 0.0
        %3932 = vmatprep.subr.mxu0 0.0
        %3933 = vmatpush2.msra.mxu0 0.0
        %3934 = vmatprep.subr.mxu0 0.0
        %3935 = vmatpush2.msra.mxu0 0.0
        %3936 = vmatprep.subr.mxu0 0.0
        %3937 = vmatpush2.msra.mxu0 0.0
        %3938 = vmatprep.mubr.f32.mxu0 0.0
        %3939 = vmatmul.mubr.f32.gmra.mxu0 %v3869
        %v3940 = vpop.f32.mrf.mxu0
        %v3941 = vadd.f32 0.0, %v3940
        %v3942 = vpop.f32.mrf.mxu0
        %3943 = vdwg.mxu0
        %v3945 = vsel %vm2341, %v3409, 0
        %v3948 = vsel %vm3642, %v3635, 0
        %3950 = vmatprep.subr.mxu0 0.0
        %3951 = vmatpush1.msra.mxu0 0.0
        %3952 = vmatprep.subr.mxu0 0.0
        %3953 = vmatpush1.msra.mxu0 0.0
        %3954 = vmatprep.subr.mxu0 0.0
        %3955 = vmatpush1.msra.mxu0 0.0
        %3956 = vmatprep.subr.mxu0 0.0
        %3957 = vmatpush1.msra.mxu0 0.0
        %3958 = vmatprep.subr.mxu0 0.0
        %3959 = vmatpush1.msra.mxu0 0.0
        %3960 = vmatprep.subr.mxu0 0.0
        %3961 = vmatpush1.msra.mxu0 0.0
        %3962 = vmatprep.subr.mxu0 0.0
        %3963 = vmatpush1.msra.mxu0 0.0
        %3964 = vmatprep.subr.mxu0 0.0
        %3965 = vmatpush1.msra.mxu0 0.0
        %3966 = vmatprep.subr.mxu0 0.0
        %3967 = vmatpush1.msra.mxu0 0.0
        %3968 = vmatprep.subr.mxu0 0.0
        %3969 = vmatpush1.msra.mxu0 0.0
        %3970 = vmatprep.subr.mxu0 0.0
        %3971 = vmatpush1.msra.mxu0 0.0
        %3972 = vmatprep.subr.mxu0 0.0
        %3973 = vmatpush1.msra.mxu0 0.0
        %3974 = vmatprep.subr.mxu0 0.0
        %3975 = vmatpush1.msra.mxu0 0.0
        %3976 = vmatprep.subr.mxu0 0.0
        %3977 = vmatpush1.msra.mxu0 0.0
        %3978 = vmatprep.subr.mxu0 0.0
        %3979 = vmatpush1.msra.mxu0 0.0
        %3980 = vmatprep.subr.mxu0 0.0
        %3981 = vmatpush1.msra.mxu0 %v3948
        %3982 = vmatprep.subr.mxu0 0.0
        %3983 = vmatpush2.msra.mxu0 0.0
        %3984 = vmatprep.subr.mxu0 0.0
        %3985 = vmatpush2.msra.mxu0 0.0
        %3986 = vmatprep.subr.mxu0 0.0
        %3987 = vmatpush2.msra.mxu0 0.0
        %3988 = vmatprep.subr.mxu0 0.0
        %3989 = vmatpush2.msra.mxu0 0.0
        %3990 = vmatprep.subr.mxu0 0.0
        %3991 = vmatpush2.msra.mxu0 0.0
        %3992 = vmatprep.subr.mxu0 0.0
        %3993 = vmatpush2.msra.mxu0 0.0
        %3994 = vmatprep.subr.mxu0 0.0
        %3995 = vmatpush2.msra.mxu0 0.0
        %3996 = vmatprep.subr.mxu0 0.0
        %3997 = vmatpush2.msra.mxu0 0.0
        %3998 = vmatprep.subr.mxu0 0.0
        %3999 = vmatpush2.msra.mxu0 0.0
        %4000 = vmatprep.subr.mxu0 0.0
        %4001 = vmatpush2.msra.mxu0 0.0
        %4002 = vmatprep.subr.mxu0 0.0
        %4003 = vmatpush2.msra.mxu0 0.0
        %4004 = vmatprep.subr.mxu0 0.0
        %4005 = vmatpush2.msra.mxu0 0.0
        %4006 = vmatprep.subr.mxu0 0.0
        %4007 = vmatpush2.msra.mxu0 0.0
        %4008 = vmatprep.subr.mxu0 0.0
        %4009 = vmatpush2.msra.mxu0 0.0
        %4010 = vmatprep.subr.mxu0 0.0
        %4011 = vmatpush2.msra.mxu0 0.0
        %4012 = vmatprep.subr.mxu0 0.0
        %4013 = vmatpush2.msra.mxu0 0.0
        %4014 = vmatprep.mubr.f32.mxu0 0.0
        %4015 = vmatmul.mubr.f32.gmra.mxu0 %v3945
        %v4016 = vpop.f32.mrf.mxu0
        %v4017 = vadd.f32 0.0, %v4016
        %v4018 = vpop.f32.mrf.mxu0
        %4019 = vdwg.mxu0
        %v4021 = vsel %vm2341, %v3482, 0
        %v4024 = vsel %vm3642, %v3636, 0
        %4026 = vmatprep.subr.mxu0 0.0
        %4027 = vmatpush1.msra.mxu0 0.0
        %4028 = vmatprep.subr.mxu0 0.0
        %4029 = vmatpush1.msra.mxu0 0.0
        %4030 = vmatprep.subr.mxu0 0.0
        %4031 = vmatpush1.msra.mxu0 0.0
        %4032 = vmatprep.subr.mxu0 0.0
        %4033 = vmatpush1.msra.mxu0 0.0
        %4034 = vmatprep.subr.mxu0 0.0
        %4035 = vmatpush1.msra.mxu0 0.0
        %4036 = vmatprep.subr.mxu0 0.0
        %4037 = vmatpush1.msra.mxu0 0.0
        %4038 = vmatprep.subr.mxu0 0.0
        %4039 = vmatpush1.msra.mxu0 0.0
        %4040 = vmatprep.subr.mxu0 0.0
        %4041 = vmatpush1.msra.mxu0 0.0
        %4042 = vmatprep.subr.mxu0 0.0
        %4043 = vmatpush1.msra.mxu0 0.0
        %4044 = vmatprep.subr.mxu0 0.0
        %4045 = vmatpush1.msra.mxu0 0.0
        %4046 = vmatprep.subr.mxu0 0.0
        %4047 = vmatpush1.msra.mxu0 0.0
        %4048 = vmatprep.subr.mxu0 0.0
        %4049 = vmatpush1.msra.mxu0 0.0
        %4050 = vmatprep.subr.mxu0 0.0
        %4051 = vmatpush1.msra.mxu0 0.0
        %4052 = vmatprep.subr.mxu0 0.0
        %4053 = vmatpush1.msra.mxu0 0.0
        %4054 = vmatprep.subr.mxu0 0.0
        %4055 = vmatpush1.msra.mxu0 0.0
        %4056 = vmatprep.subr.mxu0 0.0
        %4057 = vmatpush1.msra.mxu0 %v4024
        %4058 = vmatprep.subr.mxu0 0.0
        %4059 = vmatpush2.msra.mxu0 0.0
        %4060 = vmatprep.subr.mxu0 0.0
        %4061 = vmatpush2.msra.mxu0 0.0
        %4062 = vmatprep.subr.mxu0 0.0
        %4063 = vmatpush2.msra.mxu0 0.0
        %4064 = vmatprep.subr.mxu0 0.0
        %4065 = vmatpush2.msra.mxu0 0.0
        %4066 = vmatprep.subr.mxu0 0.0
        %4067 = vmatpush2.msra.mxu0 0.0
        %4068 = vmatprep.subr.mxu0 0.0
        %4069 = vmatpush2.msra.mxu0 0.0
        %4070 = vmatprep.subr.mxu0 0.0
        %4071 = vmatpush2.msra.mxu0 0.0
        %4072 = vmatprep.subr.mxu0 0.0
        %4073 = vmatpush2.msra.mxu0 0.0
        %4074 = vmatprep.subr.mxu0 0.0
        %4075 = vmatpush2.msra.mxu0 0.0
        %4076 = vmatprep.subr.mxu0 0.0
        %4077 = vmatpush2.msra.mxu0 0.0
        %4078 = vmatprep.subr.mxu0 0.0
        %4079 = vmatpush2.msra.mxu0 0.0
        %4080 = vmatprep.subr.mxu0 0.0
        %4081 = vmatpush2.msra.mxu0 0.0
        %4082 = vmatprep.subr.mxu0 0.0
        %4083 = vmatpush2.msra.mxu0 0.0
        %4084 = vmatprep.subr.mxu0 0.0
        %4085 = vmatpush2.msra.mxu0 0.0
        %4086 = vmatprep.subr.mxu0 0.0
        %4087 = vmatpush2.msra.mxu0 0.0
        %4088 = vmatprep.subr.mxu0 0.0
        %4089 = vmatpush2.msra.mxu0 0.0
        %4090 = vmatprep.mubr.f32.mxu0 0.0
        %4091 = vmatmul.mubr.f32.gmra.mxu0 %v4021
        %v4092 = vpop.f32.mrf.mxu0
        %v4093 = vadd.f32 0.0, %v4092
        %v4094 = vpop.f32.mrf.mxu0
        %4095 = vdwg.mxu0
        %v4097 = vsel %vm2341, %v3555, 0
        %v4100 = vsel %vm3642, %v3637, 0
        %4102 = vmatprep.subr.mxu0 0.0
        %4103 = vmatpush1.msra.mxu0 0.0
        %4104 = vmatprep.subr.mxu0 0.0
        %4105 = vmatpush1.msra.mxu0 0.0
        %4106 = vmatprep.subr.mxu0 0.0
        %4107 = vmatpush1.msra.mxu0 0.0
        %4108 = vmatprep.subr.mxu0 0.0
        %4109 = vmatpush1.msra.mxu0 0.0
        %4110 = vmatprep.subr.mxu0 0.0
        %4111 = vmatpush1.msra.mxu0 0.0
        %4112 = vmatprep.subr.mxu0 0.0
        %4113 = vmatpush1.msra.mxu0 0.0
        %4114 = vmatprep.subr.mxu0 0.0
        %4115 = vmatpush1.msra.mxu0 0.0
        %4116 = vmatprep.subr.mxu0 0.0
        %4117 = vmatpush1.msra.mxu0 0.0
        %4118 = vmatprep.subr.mxu0 0.0
        %4119 = vmatpush1.msra.mxu0 0.0
        %4120 = vmatprep.subr.mxu0 0.0
        %4121 = vmatpush1.msra.mxu0 0.0
        %4122 = vmatprep.subr.mxu0 0.0
        %4123 = vmatpush1.msra.mxu0 0.0
        %4124 = vmatprep.subr.mxu0 0.0
        %4125 = vmatpush1.msra.mxu0 0.0
        %4126 = vmatprep.subr.mxu0 0.0
        %4127 = vmatpush1.msra.mxu0 0.0
        %4128 = vmatprep.subr.mxu0 0.0
        %4129 = vmatpush1.msra.mxu0 0.0
        %4130 = vmatprep.subr.mxu0 0.0
        %4131 = vmatpush1.msra.mxu0 0.0
        %4132 = vmatprep.subr.mxu0 0.0
        %4133 = vmatpush1.msra.mxu0 %v4100
        %4134 = vmatprep.subr.mxu0 0.0
        %4135 = vmatpush2.msra.mxu0 0.0
        %4136 = vmatprep.subr.mxu0 0.0
        %4137 = vmatpush2.msra.mxu0 0.0
        %4138 = vmatprep.subr.mxu0 0.0
        %4139 = vmatpush2.msra.mxu0 0.0
        %4140 = vmatprep.subr.mxu0 0.0
        %4141 = vmatpush2.msra.mxu0 0.0
        %4142 = vmatprep.subr.mxu0 0.0
        %4143 = vmatpush2.msra.mxu0 0.0
        %4144 = vmatprep.subr.mxu0 0.0
        %4145 = vmatpush2.msra.mxu0 0.0
        %4146 = vmatprep.subr.mxu0 0.0
        %4147 = vmatpush2.msra.mxu0 0.0
        %4148 = vmatprep.subr.mxu0 0.0
        %4149 = vmatpush2.msra.mxu0 0.0
        %4150 = vmatprep.subr.mxu0 0.0
        %4151 = vmatpush2.msra.mxu0 0.0
        %4152 = vmatprep.subr.mxu0 0.0
        %4153 = vmatpush2.msra.mxu0 0.0
        %4154 = vmatprep.subr.mxu0 0.0
        %4155 = vmatpush2.msra.mxu0 0.0
        %4156 = vmatprep.subr.mxu0 0.0
        %4157 = vmatpush2.msra.mxu0 0.0
        %4158 = vmatprep.subr.mxu0 0.0
        %4159 = vmatpush2.msra.mxu0 0.0
        %4160 = vmatprep.subr.mxu0 0.0
        %4161 = vmatpush2.msra.mxu0 0.0
        %4162 = vmatprep.subr.mxu0 0.0
        %4163 = vmatpush2.msra.mxu0 0.0
        %4164 = vmatprep.subr.mxu0 0.0
        %4165 = vmatpush2.msra.mxu0 0.0
        %4166 = vmatprep.mubr.f32.mxu0 0.0
        %4167 = vmatmul.mubr.f32.gmra.mxu0 %v4097
        %v4168 = vpop.f32.mrf.mxu0
        %v4169 = vadd.f32 0.0, %v4168
        %v4170 = vpop.f32.mrf.mxu0
        %4171 = vdwg.mxu0
        %v4173 = vsel %vm2341, %v3628, 0
        %v4176 = vsel %vm3642, %v3638, 0
        %4178 = vmatprep.subr.mxu0 0.0
        %4179 = vmatpush1.msra.mxu0 0.0
        %4180 = vmatprep.subr.mxu0 0.0
        %4181 = vmatpush1.msra.mxu0 0.0
        %4182 = vmatprep.subr.mxu0 0.0
        %4183 = vmatpush1.msra.mxu0 0.0
        %4184 = vmatprep.subr.mxu0 0.0
        %4185 = vmatpush1.msra.mxu0 0.0
        %4186 = vmatprep.subr.mxu0 0.0
        %4187 = vmatpush1.msra.mxu0 0.0
        %4188 = vmatprep.subr.mxu0 0.0
        %4189 = vmatpush1.msra.mxu0 0.0
        %4190 = vmatprep.subr.mxu0 0.0
        %4191 = vmatpush1.msra.mxu0 0.0
        %4192 = vmatprep.subr.mxu0 0.0
        %4193 = vmatpush1.msra.mxu0 0.0
        %4194 = vmatprep.subr.mxu0 0.0
        %4195 = vmatpush1.msra.mxu0 0.0
        %4196 = vmatprep.subr.mxu0 0.0
        %4197 = vmatpush1.msra.mxu0 0.0
        %4198 = vmatprep.subr.mxu0 0.0
        %4199 = vmatpush1.msra.mxu0 0.0
        %4200 = vmatprep.subr.mxu0 0.0
        %4201 = vmatpush1.msra.mxu0 0.0
        %4202 = vmatprep.subr.mxu0 0.0
        %4203 = vmatpush1.msra.mxu0 0.0
        %4204 = vmatprep.subr.mxu0 0.0
        %4205 = vmatpush1.msra.mxu0 0.0
        %4206 = vmatprep.subr.mxu0 0.0
        %4207 = vmatpush1.msra.mxu0 0.0
        %4208 = vmatprep.subr.mxu0 0.0
        %4209 = vmatpush1.msra.mxu0 %v4176
        %4210 = vmatprep.subr.mxu0 0.0
        %4211 = vmatpush2.msra.mxu0 0.0
        %4212 = vmatprep.subr.mxu0 0.0
        %4213 = vmatpush2.msra.mxu0 0.0
        %4214 = vmatprep.subr.mxu0 0.0
        %4215 = vmatpush2.msra.mxu0 0.0
        %4216 = vmatprep.subr.mxu0 0.0
        %4217 = vmatpush2.msra.mxu0 0.0
        %4218 = vmatprep.subr.mxu0 0.0
        %4219 = vmatpush2.msra.mxu0 0.0
        %4220 = vmatprep.subr.mxu0 0.0
        %4221 = vmatpush2.msra.mxu0 0.0
        %4222 = vmatprep.subr.mxu0 0.0
        %4223 = vmatpush2.msra.mxu0 0.0
        %4224 = vmatprep.subr.mxu0 0.0
        %4225 = vmatpush2.msra.mxu0 0.0
        %4226 = vmatprep.subr.mxu0 0.0
        %4227 = vmatpush2.msra.mxu0 0.0
        %4228 = vmatprep.subr.mxu0 0.0
        %4229 = vmatpush2.msra.mxu0 0.0
        %4230 = vmatprep.subr.mxu0 0.0
        %4231 = vmatpush2.msra.mxu0 0.0
        %4232 = vmatprep.subr.mxu0 0.0
        %4233 = vmatpush2.msra.mxu0 0.0
        %4234 = vmatprep.subr.mxu0 0.0
        %4235 = vmatpush2.msra.mxu0 0.0
        %4236 = vmatprep.subr.mxu0 0.0
        %4237 = vmatpush2.msra.mxu0 0.0
        %4238 = vmatprep.subr.mxu0 0.0
        %4239 = vmatpush2.msra.mxu0 0.0
        %4240 = vmatprep.subr.mxu0 0.0
        %4241 = vmatpush2.msra.mxu0 0.0
        %4242 = vmatprep.mubr.f32.mxu0 0.0
        %4243 = vmatmul.mubr.f32.gmra.mxu0 %v4173
        %v4244 = vpop.f32.mrf.mxu0
        %v4245 = vadd.f32 0.0, %v4244
        %v4246 = vpop.f32.mrf.mxu0
        %4247 = vdwg.mxu0
        %v4248 = vsel %vm457, %v3713, 0.0
        %v4249 = vsel %vm457, %v3789, 0.0
        %v4250 = vadd.f32 %v4248, %v4249
        %v4251 = vsel %vm457, %v3865, 0.0
        %v4252 = vadd.f32 %v4250, %v4251
        %v4253 = vsel %vm457, %v3941, 0.0
        %v4254 = vadd.f32 %v4252, %v4253
        %v4255 = vsel %vm457, %v4017, 0.0
        %v4256 = vadd.f32 %v4254, %v4255
        %v4257 = vsel %vm457, %v4093, 0.0
        %v4258 = vadd.f32 %v4256, %v4257
        %v4259 = vsel %vm457, %v4169, 0.0
        %v4260 = vadd.f32 %v4258, %v4259
        %v4261 = vsel %vm457, %v4245, 0.0
        %v4262 = vadd.f32 %v4260, %v4261
        %v4263 = vld [vmem:[%s8] sm:$0x1]
        %v4265 = vlaneseq
        %v4266 = vshrl.u32 %v4265, 7
        %v4267 = vsub.s32 0, %v4266
        %v4268 = vrot.slane %v4263, %v4267
        %v4270 = vadd.f32 %v4262, %v4268
        %4271 = vst.msk [vmem:[%s391] sm:$0xff] %vm457, %v4270
        %s4272 = sand.u32 %s230, 1
        %s4273 = scalar_lea.sflag [#allocation4], %s4272
        %s4274 = sand.u32 %s230, 1
        %s4275 = smul.addr %s4274, 8
        %s4276 = scalar_lea.vmem [#allocation10], %s4275
        // Predicated region
        $region73: #{attention_forward.1} parent=55 // pred_check
          %p4277 = pneg %p240
        $region74: #{attention_forward.1} parent=55 // pred_check_branch
          %4279 = sbr.rel (%p4277) target = $region76
        $region75: #{attention_forward.1} parent=55 // pred_region
          %s4281 = ssub.s32 128, 128
          %4282 = vsyncadd %s4273, %s4281
          %s4283 = smul.addr %s28, 128
          %s4284 = scalar_lea.hbm %s9, %s4283
          %s4286 = sshll.u32 %s4276, 4
          %s4287 = int_to_ptr.vmem [resolvable:$true] %s4286
          %4289 = dma.vmem_to_hbm [thread:$0]  %s4287, 128, %s4284, %s4273
        $region76: #{attention_forward.1} parent=55 // pred_fallthru
          _
      $region56: #{attention_forward.1} parent=5 // pred_fallthru
        _
      %p4290 = scmp.le.s32.totalorder 2, %s23
      // Predicated region
      $region77: #{attention_forward.1} parent=5 // pred_check
        %p4291 = pneg %p4290
      $region78: #{attention_forward.1} parent=5 // pred_check_branch
        %4293 = sbr.rel (%p4291) target = $region80
      $region79: #{attention_forward.1} parent=5 // pred_region
        %s4294 = ssub.s32 %s23, 2
        // Predicated region
        $region81: #{attention_forward.1} parent=79 // pred_check
          %p4295 = pneg %p246
        $region82: #{attention_forward.1} parent=79 // pred_check_branch
          %4297 = sbr.rel (%p4295) target = $region84
        $region83: #{attention_forward.1} parent=79 // pred_region
          %s4298 = sand.u32 %s231, 1
          %s4299 = scalar_lea.sflag [#allocation4], %s4298
          %s4300 = sand.u32 %s231, 1
          %s4301 = smul.addr %s4300, 8
          %s4302 = scalar_lea.vmem [#allocation10], %s4301
          %4303 = dma.done %s4299, 128
        $region84: #{attention_forward.1} parent=79 // pred_fallthru
          _
      $region80: #{attention_forward.1} parent=5 // pred_fallthru
        _
    $region6: #{attention_forward.1} parent=1 // loop_footer
      %s27 = sadd.s32 1, %s23
    $region7: #{attention_forward.1} parent=1 // loop_footer_branch
      %22 = sbr.rel target = $region3
    $region8: #{attention_forward.1} parent=1 // loop_exit
      _
    %4304 = vsyncpa [#allocation3], 1
    %s4305 = scalar_lea.sflag [#allocation3], 1
    %4306 = vsyncpa %s4305, 1
    %4307 = vsyncpa [#allocation6], 1
    %4308 = vsyncpa [#allocation9], 1
    %4309 = vsyncpa [#allocation4], 1
    %s4310 = scalar_lea.sflag [#allocation4], 1
    %4311 = vsyncpa %s4310, 1

</llo_original>
